<compile_context>
chip_gen: v7x
topology: tpu7x:2x2x1
jax: 0.10.0
libtpu: 0.0.40
codegen_flags: <defaults>
</compile_context>

<pallas_src>
import jax
import jax.numpy as jnp
from jax.experimental import pallas as pl
from jax.experimental.pallas import tpu as pltpu

LANE = 128   # TPU lane width; channels are zero-padded to this *in VMEM only*
PADL = 8     # sublane-aligned left offset of the conv interior inside xpad


# --------------------------------------------------------------------------
# Fused kernel: maxpool2x2 -> (conv3x3 + BN + SiLU) -> (conv3x3 + BN + SiLU)
# --------------------------------------------------------------------------
def _down_fused_kernel(x_ref, w1_ref, s1_ref, b1_ref, w2_ref, s2_ref, b2_ref,
                       o_ref, xpad_ref, col_ref):
    # x_ref : (1, H, Wo, 2*Cin)   input, even/odd columns interleaved on lanes
    # w*_ref: (9*LANE, LANE)      im2col conv weights (bf16, channel padded)
    # s*/b* : (1, LANE)           folded conv-bias + BatchNorm affine (f32)
    # o_ref : (1, Ho, Wo, Cout)
    # xpad  : (Ho+2, Wo+PADL+1, LANE) f32 zero-padded activation staging
    # col   : (Ho*Wo, 9*LANE)     bf16 im2col buffer (shared by both convs)
    Cin2 = x_ref.shape[3]
    Cin = Cin2 // 2
    Ho, Wo, Cout = o_ref.shape[1], o_ref.shape[2], o_ref.shape[3]
    HW = Ho * Wo

    # ---------------- MaxPool2d(2), entirely in VMEM ----------------------
    xv = x_ref[0].astype(jnp.float32)                        # (H, Wo, 2*Cin)
    cmax = jnp.maximum(xv[:, :, :Cin], xv[:, :, Cin:Cin2])   # column pairs
    cmax = cmax.reshape(Ho, 2, Wo, Cin)                      # split rows (free)
    pooled = jnp.maximum(cmax[:, 0], cmax[:, 1])             # (Ho, Wo, Cin)

    # ---- stage into zero-padded VMEM tile (channel pad + spatial pad=1) --
    xpad_ref[...] = jnp.zeros_like(xpad_ref)
    xpad_ref[1:Ho + 1, PADL:PADL + Wo, :Cin] = pooled.astype(xpad_ref.dtype)

    def conv3x3_bn_silu(w_ref, s_ref, b_ref):
        # im2col -> one MXU matmul with K = 9*LANE, f32 accumulation
        for t in range(9):
            dy, dx = t // 3, t % 3
            patch = xpad_ref[dy:dy + Ho, PADL - 1 + dx:PADL - 1 + dx + Wo, :]
            col_ref[:, t * LANE:(t + 1) * LANE] = (
                patch.reshape(HW, LANE).astype(col_ref.dtype))
        acc = jnp.dot(col_ref[...], w_ref[...],
                      preferred_element_type=jnp.float32)    # (HW, LANE) f32
        y = acc * s_ref[...] + b_ref[...]     # conv bias + BatchNorm (eval)
        return y * jax.nn.sigmoid(y)          # SiLU / swish, f32

    y1 = conv3x3_bn_silu(w1_ref, s1_ref, b1_ref)             # (HW, LANE)
    # re-stage conv1 output (padded lanes are exactly zero by construction)
    xpad_ref[1:Ho + 1, PADL:PADL + Wo, :] = (
        y1.reshape(Ho, Wo, LANE).astype(xpad_ref.dtype))
    y2 = conv3x3_bn_silu(w2_ref, s2_ref, b2_ref)             # (HW, LANE)

    # lane-dense write of only the real output channels
    o_ref[0] = y2[:, :Cout].reshape(Ho, Wo, Cout).astype(o_ref.dtype)


# --------------------------------------------------------------------------
# Down.forward wrapper (accepts / returns PyTorch-convention NCHW)
# --------------------------------------------------------------------------
def down_forward(x_nchw, params, out_channels):
    N, Cin, H, W = x_nchw.shape
    Ho, Wo = H // 2, W // 2                      # MaxPool2d(2) floors
    assert Cin <= LANE and out_channels <= LANE

    # NCHW -> NHWC on the *unpadded* channels (tiny), then a free reshape that
    # interleaves even/odd columns onto the lane axis for the in-kernel pool.
    x = jnp.transpose(x_nchw[:, :, :2 * Ho, :2 * Wo], (0, 2, 3, 1))
    x = x.reshape(N, 2 * Ho, Wo, 2 * Cin)

    out_nhwc = pl.pallas_call(
        _down_fused_kernel,
        out_shape=jax.ShapeDtypeStruct((N, Ho, Wo, out_channels), x.dtype),
        grid=(N,),
        in_specs=[
            pl.BlockSpec((1, 2 * Ho, Wo, 2 * Cin), lambda n: (n, 0, 0, 0)),
            pl.BlockSpec((9 * LANE, LANE), lambda n: (0, 0)),   # w1
            pl.BlockSpec((1, LANE), lambda n: (0, 0)),          # scale1
            pl.BlockSpec((1, LANE), lambda n: (0, 0)),          # bias1
            pl.BlockSpec((9 * LANE, LANE), lambda n: (0, 0)),   # w2
            pl.BlockSpec((1, LANE), lambda n: (0, 0)),          # scale2
            pl.BlockSpec((1, LANE), lambda n: (0, 0)),          # bias2
        ],
        out_specs=pl.BlockSpec((1, Ho, Wo, out_channels),
                               lambda n: (n, 0, 0, 0)),
        scratch_shapes=[
            pltpu.VMEM((Ho + 2, Wo + PADL + 1, LANE), jnp.float32),  # xpad
            pltpu.VMEM((Ho * Wo, 9 * LANE), jnp.bfloat16),           # im2col
        ],
        compiler_params=pltpu.CompilerParams(
            dimension_semantics=("parallel",),
            vmem_limit_bytes=32 * 1024 * 1024),
    )(x, params["w1"], params["scale1"], params["bias1"],
      params["w2"], params["scale2"], params["bias2"])

    # NHWC -> NCHW on the small, unpadded output
    return jnp.transpose(out_nhwc, (0, 3, 1, 2))


# --------------------------------------------------------------------------
# Parameter construction (deterministic, PyTorch-like init) and folding
# --------------------------------------------------------------------------
def _conv_init(key, cin, cout, dtype=jnp.float32):
    # PyTorch Conv2d default init: U(-1/sqrt(fan_in), 1/sqrt(fan_in)), OIHW
    kw, kb = jax.random.split(key)
    bound = 1.0 / (cin * 9) ** 0.5
    w_oihw = jax.random.uniform(kw, (cout, cin, 3, 3), dtype, -bound, bound)
    b = jax.random.uniform(kb, (cout,), dtype, -bound, bound)
    return w_oihw, b


def _fold_and_pack(w_oihw, conv_b, gamma, beta, rmean, rvar, eps=1e-5):
    cout, cin = w_oihw.shape[0], w_oihw.shape[1]
    # OIHW -> HWIO, zero-pad channels to LANE, flatten the 9 taps into K.
    w = jnp.transpose(w_oihw, (2, 3, 1, 0))                      # (3,3,cin,cout)
    w = jnp.pad(w, ((0, 0), (0, 0), (0, LANE - cin), (0, LANE - cout)))
    w = w.reshape(9 * LANE, LANE).astype(jnp.bfloat16)           # im2col weight
    scale = gamma / jnp.sqrt(rvar + eps)                         # (cout,)
    bias = (conv_b - rmean) * scale + beta                       # (cout,)
    scale = jnp.pad(scale, (0, LANE - cout)).reshape(1, LANE).astype(jnp.float32)
    bias = jnp.pad(bias, (0, LANE - cout)).reshape(1, LANE).astype(jnp.float32)
    return w, scale, bias


def init_down_params(key, in_channels, out_channels, dtype=jnp.float32):
    mid = out_channels  # DoubleConv default: mid_channels = out_channels
    k1, k2 = jax.random.split(key)
    w1, b1 = _conv_init(k1, in_channels, mid, dtype)
    w2, b2 = _conv_init(k2, mid, out_channels, dtype)

    # BatchNorm defaults (eval mode): gamma=1, beta=0, mean=0, var=1
    def bn_defaults(c):
        return (jnp.ones((c,), dtype), jnp.zeros((c,), dtype),
                jnp.zeros((c,), dtype), jnp.ones((c,), dtype))

    w1p, s1, bb1 = _fold_and_pack(w1, b1, *bn_defaults(mid))
    w2p, s2, bb2 = _fold_and_pack(w2, b2, *bn_defaults(out_channels))
    return {"w1": w1p, "scale1": s1, "bias1": bb1,
            "w2": w2p, "scale2": s2, "bias2": bb2}


# --------------------------------------------------------------------------
if __name__ == "__main__":
    in_channels, out_channels = 4, 8
    key = jax.random.PRNGKey(0)
    kx, kp = jax.random.split(key)

    x = jax.random.normal(kx, (2, in_channels, 16, 16), jnp.float32)  # NCHW
    params = init_down_params(kp, in_channels, out_channels)

    out = down_forward(x, params, out_channels)
    out = jax.block_until_ready(out)
    assert out.shape == (2, out_channels, 8, 8), out.shape
    assert bool(jnp.all(jnp.isfinite(out)))
    print("KERNEL_OK")
</pallas_src>

<mosaic_0001>
module attributes {stable_mosaic.version = 11 : i64} {
  func.func @_down_fused_kernel(%arg0: i32, %arg1: memref<1x16x8x8xf32, #tpu.memory_space<vmem>>, %arg2: memref<1152x128xbf16, #tpu.memory_space<vmem>>, %arg3: memref<1x128xf32, #tpu.memory_space<vmem>>, %arg4: memref<1x128xf32, #tpu.memory_space<vmem>>, %arg5: memref<1152x128xbf16, #tpu.memory_space<vmem>>, %arg6: memref<1x128xf32, #tpu.memory_space<vmem>>, %arg7: memref<1x128xf32, #tpu.memory_space<vmem>>, %arg8: memref<1x8x8x8xf32, #tpu.memory_space<vmem>>, %arg9: memref<10x17x128xf32, #tpu.memory_space<vmem>>, %arg10: memref<64x1152xbf16, #tpu.memory_space<vmem>>) attributes {dimension_semantics = [#tpu.dimension_semantics<parallel>], iteration_bounds = array<i64: 2>, scalar_prefetch = 0 : i64, scratch_operands = 2 : i64, tpu.core_type = #tpu.core_type<tc>, window_params = [{transform_indices = @transform_0, window_bounds = array<i64: 1, 16, 8, 8>}, {pipeline_mode = #tpu.pipeline_mode<synchronous>, transform_indices = @transform_1, window_bounds = array<i64: 1152, 128>}, {pipeline_mode = #tpu.pipeline_mode<synchronous>, transform_indices = @transform_2, window_bounds = array<i64: 1, 128>}, {pipeline_mode = #tpu.pipeline_mode<synchronous>, transform_indices = @transform_3, window_bounds = array<i64: 1, 128>}, {pipeline_mode = #tpu.pipeline_mode<synchronous>, transform_indices = @transform_4, window_bounds = array<i64: 1152, 128>}, {pipeline_mode = #tpu.pipeline_mode<synchronous>, transform_indices = @transform_5, window_bounds = array<i64: 1, 128>}, {pipeline_mode = #tpu.pipeline_mode<synchronous>, transform_indices = @transform_6, window_bounds = array<i64: 1, 128>}, {transform_indices = @transform_7, window_bounds = array<i64: 1, 8, 8, 8>}]} {
    %c0 = arith.constant 0 : index
    %c0_0 = arith.constant 0 : index
    %c0_1 = arith.constant 0 : index
    %c0_2 = arith.constant 0 : index
    %0 = vector.load %arg1[%c0, %c0_0, %c0_1, %c0_2] : memref<1x16x8x8xf32, #tpu.memory_space<vmem>>, vector<1x16x8x8xf32>
    %1 = vector.shape_cast %0 : vector<1x16x8x8xf32> to vector<16x8x8xf32>
    %2 = vector.extract_strided_slice %1 {offsets = [0, 0, 0], sizes = [16, 8, 4], strides = [1, 1, 1]} : vector<16x8x8xf32> to vector<16x8x4xf32>
    %3 = vector.extract_strided_slice %1 {offsets = [0, 0, 4], sizes = [16, 8, 4], strides = [1, 1, 1]} : vector<16x8x8xf32> to vector<16x8x4xf32>
    %4 = arith.maximumf %2, %3 : vector<16x8x4xf32>
    %5 = vector.shape_cast %4 : vector<16x8x4xf32> to vector<8x2x8x4xf32>
    %6 = vector.extract_strided_slice %5 {offsets = [0, 0, 0, 0], sizes = [8, 1, 8, 4], strides = [1, 1, 1, 1]} : vector<8x2x8x4xf32> to vector<8x1x8x4xf32>
    %7 = vector.shape_cast %6 : vector<8x1x8x4xf32> to vector<8x8x4xf32>
    %8 = vector.extract_strided_slice %5 {offsets = [0, 1, 0, 0], sizes = [8, 1, 8, 4], strides = [1, 1, 1, 1]} : vector<8x2x8x4xf32> to vector<8x1x8x4xf32>
    %9 = vector.shape_cast %8 : vector<8x1x8x4xf32> to vector<8x8x4xf32>
    %10 = arith.maximumf %7, %9 : vector<8x8x4xf32>
    %cst = arith.constant 0.000000e+00 : f32
    %11 = vector.broadcast %cst : f32 to vector<10x17x128xf32>
    %c0_3 = arith.constant 0 : index
    %c0_4 = arith.constant 0 : index
    %c0_5 = arith.constant 0 : index
    %12 = vector.load %arg9[%c0_3, %c0_4, %c0_5] : memref<10x17x128xf32, #tpu.memory_space<vmem>>, vector<10x17x128xf32>
    tpu.vector_store %arg9[%c0_3, %c0_4, %c0_5], %11 {strides = array<i32>} : memref<10x17x128xf32, #tpu.memory_space<vmem>>, vector<10x17x128xf32>,
    %c1 = arith.constant 1 : index
    %c8 = arith.constant 8 : index
    %c0_6 = arith.constant 0 : index
    %13 = vector.load %arg9[%c1, %c8, %c0_6] : memref<10x17x128xf32, #tpu.memory_space<vmem>>, vector<8x8x4xf32>
    tpu.vector_store %arg9[%c1, %c8, %c0_6], %10 {strides = array<i32>} : memref<10x17x128xf32, #tpu.memory_space<vmem>>, vector<8x8x4xf32>,
    %c0_7 = arith.constant 0 : index
    %c7 = arith.constant 7 : index
    %c0_8 = arith.constant 0 : index
    %14 = vector.load %arg9[%c0_7, %c7, %c0_8] : memref<10x17x128xf32, #tpu.memory_space<vmem>>, vector<8x8x128xf32>
    %15 = vector.shape_cast %14 : vector<8x8x128xf32> to vector<64x128xf32>
    %16 = arith.truncf %15 : vector<64x128xf32> to vector<64x128xbf16>
    %c0_9 = arith.constant 0 : index
    %c0_10 = arith.constant 0 : index
    %17 = vector.load %arg10[%c0_9, %c0_10] : memref<64x1152xbf16, #tpu.memory_space<vmem>>, vector<64x128xbf16>
    tpu.vector_store %arg10[%c0_9, %c0_10], %16 {strides = array<i32>} : memref<64x1152xbf16, #tpu.memory_space<vmem>>, vector<64x128xbf16>,
    %c0_11 = arith.constant 0 : index
    %c8_12 = arith.constant 8 : index
    %c0_13 = arith.constant 0 : index
    %18 = vector.load %arg9[%c0_11, %c8_12, %c0_13] : memref<10x17x128xf32, #tpu.memory_space<vmem>>, vector<8x8x128xf32>
    %19 = vector.shape_cast %18 : vector<8x8x128xf32> to vector<64x128xf32>
    %20 = arith.truncf %19 : vector<64x128xf32> to vector<64x128xbf16>
    %c0_14 = arith.constant 0 : index
    %c128 = arith.constant 128 : index
    %21 = vector.load %arg10[%c0_14, %c128] : memref<64x1152xbf16, #tpu.memory_space<vmem>>, vector<64x128xbf16>
    tpu.vector_store %arg10[%c0_14, %c128], %20 {strides = array<i32>} : memref<64x1152xbf16, #tpu.memory_space<vmem>>, vector<64x128xbf16>,
    %c0_15 = arith.constant 0 : index
    %c9 = arith.constant 9 : index
    %c0_16 = arith.constant 0 : index
    %22 = vector.load %arg9[%c0_15, %c9, %c0_16] : memref<10x17x128xf32, #tpu.memory_space<vmem>>, vector<8x8x128xf32>
    %23 = vector.shape_cast %22 : vector<8x8x128xf32> to vector<64x128xf32>
    %24 = arith.truncf %23 : vector<64x128xf32> to vector<64x128xbf16>
    %c0_17 = arith.constant 0 : index
    %c256 = arith.constant 256 : index
    %25 = vector.load %arg10[%c0_17, %c256] : memref<64x1152xbf16, #tpu.memory_space<vmem>>, vector<64x128xbf16>
    tpu.vector_store %arg10[%c0_17, %c256], %24 {strides = array<i32>} : memref<64x1152xbf16, #tpu.memory_space<vmem>>, vector<64x128xbf16>,
    %c1_18 = arith.constant 1 : index
    %c7_19 = arith.constant 7 : index
    %c0_20 = arith.constant 0 : index
    %26 = vector.load %arg9[%c1_18, %c7_19, %c0_20] : memref<10x17x128xf32, #tpu.memory_space<vmem>>, vector<8x8x128xf32>
    %27 = vector.shape_cast %26 : vector<8x8x128xf32> to vector<64x128xf32>
    %28 = arith.truncf %27 : vector<64x128xf32> to vector<64x128xbf16>
    %c0_21 = arith.constant 0 : index
    %c384 = arith.constant 384 : index
    %29 = vector.load %arg10[%c0_21, %c384] : memref<64x1152xbf16, #tpu.memory_space<vmem>>, vector<64x128xbf16>
    tpu.vector_store %arg10[%c0_21, %c384], %28 {strides = array<i32>} : memref<64x1152xbf16, #tpu.memory_space<vmem>>, vector<64x128xbf16>,
    %c1_22 = arith.constant 1 : index
    %c8_23 = arith.constant 8 : index
    %c0_24 = arith.constant 0 : index
    %30 = vector.load %arg9[%c1_22, %c8_23, %c0_24] : memref<10x17x128xf32, #tpu.memory_space<vmem>>, vector<8x8x128xf32>
    %31 = vector.shape_cast %30 : vector<8x8x128xf32> to vector<64x128xf32>
    %32 = arith.truncf %31 : vector<64x128xf32> to vector<64x128xbf16>
    %c0_25 = arith.constant 0 : index
    %c512 = arith.constant 512 : index
    %33 = vector.load %arg10[%c0_25, %c512] : memref<64x1152xbf16, #tpu.memory_space<vmem>>, vector<64x128xbf16>
    tpu.vector_store %arg10[%c0_25, %c512], %32 {strides = array<i32>} : memref<64x1152xbf16, #tpu.memory_space<vmem>>, vector<64x128xbf16>,
    %c1_26 = arith.constant 1 : index
    %c9_27 = arith.constant 9 : index
    %c0_28 = arith.constant 0 : index
    %34 = vector.load %arg9[%c1_26, %c9_27, %c0_28] : memref<10x17x128xf32, #tpu.memory_space<vmem>>, vector<8x8x128xf32>
    %35 = vector.shape_cast %34 : vector<8x8x128xf32> to vector<64x128xf32>
    %36 = arith.truncf %35 : vector<64x128xf32> to vector<64x128xbf16>
    %c0_29 = arith.constant 0 : index
    %c640 = arith.constant 640 : index
    %37 = vector.load %arg10[%c0_29, %c640] : memref<64x1152xbf16, #tpu.memory_space<vmem>>, vector<64x128xbf16>
    tpu.vector_store %arg10[%c0_29, %c640], %36 {strides = array<i32>} : memref<64x1152xbf16, #tpu.memory_space<vmem>>, vector<64x128xbf16>,
    %c2 = arith.constant 2 : index
    %c7_30 = arith.constant 7 : index
    %c0_31 = arith.constant 0 : index
    %38 = vector.load %arg9[%c2, %c7_30, %c0_31] : memref<10x17x128xf32, #tpu.memory_space<vmem>>, vector<8x8x128xf32>
    %39 = vector.shape_cast %38 : vector<8x8x128xf32> to vector<64x128xf32>
    %40 = arith.truncf %39 : vector<64x128xf32> to vector<64x128xbf16>
    %c0_32 = arith.constant 0 : index
    %c768 = arith.constant 768 : index
    %41 = vector.load %arg10[%c0_32, %c768] : memref<64x1152xbf16, #tpu.memory_space<vmem>>, vector<64x128xbf16>
    tpu.vector_store %arg10[%c0_32, %c768], %40 {strides = array<i32>} : memref<64x1152xbf16, #tpu.memory_space<vmem>>, vector<64x128xbf16>,
    %c2_33 = arith.constant 2 : index
    %c8_34 = arith.constant 8 : index
    %c0_35 = arith.constant 0 : index
    %42 = vector.load %arg9[%c2_33, %c8_34, %c0_35] : memref<10x17x128xf32, #tpu.memory_space<vmem>>, vector<8x8x128xf32>
    %43 = vector.shape_cast %42 : vector<8x8x128xf32> to vector<64x128xf32>
    %44 = arith.truncf %43 : vector<64x128xf32> to vector<64x128xbf16>
    %c0_36 = arith.constant 0 : index
    %c896 = arith.constant 896 : index
    %45 = vector.load %arg10[%c0_36, %c896] : memref<64x1152xbf16, #tpu.memory_space<vmem>>, vector<64x128xbf16>
    tpu.vector_store %arg10[%c0_36, %c896], %44 {strides = array<i32>} : memref<64x1152xbf16, #tpu.memory_space<vmem>>, vector<64x128xbf16>,
    %c2_37 = arith.constant 2 : index
    %c9_38 = arith.constant 9 : index
    %c0_39 = arith.constant 0 : index
    %46 = vector.load %arg9[%c2_37, %c9_38, %c0_39] : memref<10x17x128xf32, #tpu.memory_space<vmem>>, vector<8x8x128xf32>
    %47 = vector.shape_cast %46 : vector<8x8x128xf32> to vector<64x128xf32>
    %48 = arith.truncf %47 : vector<64x128xf32> to vector<64x128xbf16>
    %c0_40 = arith.constant 0 : index
    %c1024 = arith.constant 1024 : index
    %49 = vector.load %arg10[%c0_40, %c1024] : memref<64x1152xbf16, #tpu.memory_space<vmem>>, vector<64x128xbf16>
    tpu.vector_store %arg10[%c0_40, %c1024], %48 {strides = array<i32>} : memref<64x1152xbf16, #tpu.memory_space<vmem>>, vector<64x128xbf16>,
    %c0_41 = arith.constant 0 : index
    %c0_42 = arith.constant 0 : index
    %50 = vector.load %arg10[%c0_41, %c0_42] : memref<64x1152xbf16, #tpu.memory_space<vmem>>, vector<64x1152xbf16>
    %c0_43 = arith.constant 0 : index
    %c0_44 = arith.constant 0 : index
    %51 = vector.load %arg2[%c0_43, %c0_44] : memref<1152x128xbf16, #tpu.memory_space<vmem>>, vector<1152x128xbf16>
    %cst_45 = arith.constant dense<0.000000e+00> : vector<64x128xf32>
    %52 = tpu.matmul %50, %51, %cst_45 {dimension_numbers = #tpu.dot_dimension_numbers<[1], [0], [0], [1], [0, 0, 1, 1], [], []>} : vector<64x1152xbf16>, vector<1152x128xbf16>, vector<64x128xf32> -> vector<64x128xf32>
    %c0_46 = arith.constant 0 : index
    %c0_47 = arith.constant 0 : index
    %53 = vector.load %arg3[%c0_46, %c0_47] : memref<1x128xf32, #tpu.memory_space<vmem>>, vector<1x128xf32>
    %54 = vector.broadcast %53 : vector<1x128xf32> to vector<64x128xf32>
    %55 = arith.mulf %52, %54 : vector<64x128xf32>
    %c0_48 = arith.constant 0 : index
    %c0_49 = arith.constant 0 : index
    %56 = vector.load %arg4[%c0_48, %c0_49] : memref<1x128xf32, #tpu.memory_space<vmem>>, vector<1x128xf32>
    %57 = vector.broadcast %56 : vector<1x128xf32> to vector<64x128xf32>
    %58 = arith.addf %55, %57 : vector<64x128xf32>
    %59 = arith.negf %58 : vector<64x128xf32>
    %60 = math.exp %59 : vector<64x128xf32>
    %cst_50 = arith.constant 1.000000e+00 : f32
    %61 = vector.broadcast %cst_50 : f32 to vector<64x128xf32>
    %62 = arith.addf %61, %60 : vector<64x128xf32>
    %63 = arith.divf %61, %62 : vector<64x128xf32>
    %64 = arith.mulf %58, %63 : vector<64x128xf32>
    %65 = vector.shape_cast %64 : vector<64x128xf32> to vector<8x8x128xf32>
    %c1_51 = arith.constant 1 : index
    %c8_52 = arith.constant 8 : index
    %c0_53 = arith.constant 0 : index
    %66 = vector.load %arg9[%c1_51, %c8_52, %c0_53] : memref<10x17x128xf32, #tpu.memory_space<vmem>>, vector<8x8x128xf32>
    tpu.vector_store %arg9[%c1_51, %c8_52, %c0_53], %65 {strides = array<i32>} : memref<10x17x128xf32, #tpu.memory_space<vmem>>, vector<8x8x128xf32>,
    %c0_54 = arith.constant 0 : index
    %c7_55 = arith.constant 7 : index
    %c0_56 = arith.constant 0 : index
    %67 = vector.load %arg9[%c0_54, %c7_55, %c0_56] : memref<10x17x128xf32, #tpu.memory_space<vmem>>, vector<8x8x128xf32>
    %68 = vector.shape_cast %67 : vector<8x8x128xf32> to vector<64x128xf32>
    %69 = arith.truncf %68 : vector<64x128xf32> to vector<64x128xbf16>
    %c0_57 = arith.constant 0 : index
    %c0_58 = arith.constant 0 : index
    %70 = vector.load %arg10[%c0_57, %c0_58] : memref<64x1152xbf16, #tpu.memory_space<vmem>>, vector<64x128xbf16>
    tpu.vector_store %arg10[%c0_57, %c0_58], %69 {strides = array<i32>} : memref<64x1152xbf16, #tpu.memory_space<vmem>>, vector<64x128xbf16>,
    %c0_59 = arith.constant 0 : index
    %c8_60 = arith.constant 8 : index
    %c0_61 = arith.constant 0 : index
    %71 = vector.load %arg9[%c0_59, %c8_60, %c0_61] : memref<10x17x128xf32, #tpu.memory_space<vmem>>, vector<8x8x128xf32>
    %72 = vector.shape_cast %71 : vector<8x8x128xf32> to vector<64x128xf32>
    %73 = arith.truncf %72 : vector<64x128xf32> to vector<64x128xbf16>
    %c0_62 = arith.constant 0 : index
    %c128_63 = arith.constant 128 : index
    %74 = vector.load %arg10[%c0_62, %c128_63] : memref<64x1152xbf16, #tpu.memory_space<vmem>>, vector<64x128xbf16>
    tpu.vector_store %arg10[%c0_62, %c128_63], %73 {strides = array<i32>} : memref<64x1152xbf16, #tpu.memory_space<vmem>>, vector<64x128xbf16>,
    %c0_64 = arith.constant 0 : index
    %c9_65 = arith.constant 9 : index
    %c0_66 = arith.constant 0 : index
    %75 = vector.load %arg9[%c0_64, %c9_65, %c0_66] : memref<10x17x128xf32, #tpu.memory_space<vmem>>, vector<8x8x128xf32>
    %76 = vector.shape_cast %75 : vector<8x8x128xf32> to vector<64x128xf32>
    %77 = arith.truncf %76 : vector<64x128xf32> to vector<64x128xbf16>
    %c0_67 = arith.constant 0 : index
    %c256_68 = arith.constant 256 : index
    %78 = vector.load %arg10[%c0_67, %c256_68] : memref<64x1152xbf16, #tpu.memory_space<vmem>>, vector<64x128xbf16>
    tpu.vector_store %arg10[%c0_67, %c256_68], %77 {strides = array<i32>} : memref<64x1152xbf16, #tpu.memory_space<vmem>>, vector<64x128xbf16>,
    %c1_69 = arith.constant 1 : index
    %c7_70 = arith.constant 7 : index
    %c0_71 = arith.constant 0 : index
    %79 = vector.load %arg9[%c1_69, %c7_70, %c0_71] : memref<10x17x128xf32, #tpu.memory_space<vmem>>, vector<8x8x128xf32>
    %80 = vector.shape_cast %79 : vector<8x8x128xf32> to vector<64x128xf32>
    %81 = arith.truncf %80 : vector<64x128xf32> to vector<64x128xbf16>
    %c0_72 = arith.constant 0 : index
    %c384_73 = arith.constant 384 : index
    %82 = vector.load %arg10[%c0_72, %c384_73] : memref<64x1152xbf16, #tpu.memory_space<vmem>>, vector<64x128xbf16>
    tpu.vector_store %arg10[%c0_72, %c384_73], %81 {strides = array<i32>} : memref<64x1152xbf16, #tpu.memory_space<vmem>>, vector<64x128xbf16>,
    %c1_74 = arith.constant 1 : index
    %c8_75 = arith.constant 8 : index
    %c0_76 = arith.constant 0 : index
    %83 = vector.load %arg9[%c1_74, %c8_75, %c0_76] : memref<10x17x128xf32, #tpu.memory_space<vmem>>, vector<8x8x128xf32>
    %84 = vector.shape_cast %83 : vector<8x8x128xf32> to vector<64x128xf32>
    %85 = arith.truncf %84 : vector<64x128xf32> to vector<64x128xbf16>
    %c0_77 = arith.constant 0 : index
    %c512_78 = arith.constant 512 : index
    %86 = vector.load %arg10[%c0_77, %c512_78] : memref<64x1152xbf16, #tpu.memory_space<vmem>>, vector<64x128xbf16>
    tpu.vector_store %arg10[%c0_77, %c512_78], %85 {strides = array<i32>} : memref<64x1152xbf16, #tpu.memory_space<vmem>>, vector<64x128xbf16>,
    %c1_79 = arith.constant 1 : index
    %c9_80 = arith.constant 9 : index
    %c0_81 = arith.constant 0 : index
    %87 = vector.load %arg9[%c1_79, %c9_80, %c0_81] : memref<10x17x128xf32, #tpu.memory_space<vmem>>, vector<8x8x128xf32>
    %88 = vector.shape_cast %87 : vector<8x8x128xf32> to vector<64x128xf32>
    %89 = arith.truncf %88 : vector<64x128xf32> to vector<64x128xbf16>
    %c0_82 = arith.constant 0 : index
    %c640_83 = arith.constant 640 : index
    %90 = vector.load %arg10[%c0_82, %c640_83] : memref<64x1152xbf16, #tpu.memory_space<vmem>>, vector<64x128xbf16>
    tpu.vector_store %arg10[%c0_82, %c640_83], %89 {strides = array<i32>} : memref<64x1152xbf16, #tpu.memory_space<vmem>>, vector<64x128xbf16>,
    %c2_84 = arith.constant 2 : index
    %c7_85 = arith.constant 7 : index
    %c0_86 = arith.constant 0 : index
    %91 = vector.load %arg9[%c2_84, %c7_85, %c0_86] : memref<10x17x128xf32, #tpu.memory_space<vmem>>, vector<8x8x128xf32>
    %92 = vector.shape_cast %91 : vector<8x8x128xf32> to vector<64x128xf32>
    %93 = arith.truncf %92 : vector<64x128xf32> to vector<64x128xbf16>
    %c0_87 = arith.constant 0 : index
    %c768_88 = arith.constant 768 : index
    %94 = vector.load %arg10[%c0_87, %c768_88] : memref<64x1152xbf16, #tpu.memory_space<vmem>>, vector<64x128xbf16>
    tpu.vector_store %arg10[%c0_87, %c768_88], %93 {strides = array<i32>} : memref<64x1152xbf16, #tpu.memory_space<vmem>>, vector<64x128xbf16>,
    %c2_89 = arith.constant 2 : index
    %c8_90 = arith.constant 8 : index
    %c0_91 = arith.constant 0 : index
    %95 = vector.load %arg9[%c2_89, %c8_90, %c0_91] : memref<10x17x128xf32, #tpu.memory_space<vmem>>, vector<8x8x128xf32>
    %96 = vector.shape_cast %95 : vector<8x8x128xf32> to vector<64x128xf32>
    %97 = arith.truncf %96 : vector<64x128xf32> to vector<64x128xbf16>
    %c0_92 = arith.constant 0 : index
    %c896_93 = arith.constant 896 : index
    %98 = vector.load %arg10[%c0_92, %c896_93] : memref<64x1152xbf16, #tpu.memory_space<vmem>>, vector<64x128xbf16>
    tpu.vector_store %arg10[%c0_92, %c896_93], %97 {strides = array<i32>} : memref<64x1152xbf16, #tpu.memory_space<vmem>>, vector<64x128xbf16>,
    %c2_94 = arith.constant 2 : index
    %c9_95 = arith.constant 9 : index
    %c0_96 = arith.constant 0 : index
    %99 = vector.load %arg9[%c2_94, %c9_95, %c0_96] : memref<10x17x128xf32, #tpu.memory_space<vmem>>, vector<8x8x128xf32>
    %100 = vector.shape_cast %99 : vector<8x8x128xf32> to vector<64x128xf32>
    %101 = arith.truncf %100 : vector<64x128xf32> to vector<64x128xbf16>
    %c0_97 = arith.constant 0 : index
    %c1024_98 = arith.constant 1024 : index
    %102 = vector.load %arg10[%c0_97, %c1024_98] : memref<64x1152xbf16, #tpu.memory_space<vmem>>, vector<64x128xbf16>
    tpu.vector_store %arg10[%c0_97, %c1024_98], %101 {strides = array<i32>} : memref<64x1152xbf16, #tpu.memory_space<vmem>>, vector<64x128xbf16>,
    %c0_99 = arith.constant 0 : index
    %c0_100 = arith.constant 0 : index
    %103 = vector.load %arg10[%c0_99, %c0_100] : memref<64x1152xbf16, #tpu.memory_space<vmem>>, vector<64x1152xbf16>
    %c0_101 = arith.constant 0 : index
    %c0_102 = arith.constant 0 : index
    %104 = vector.load %arg5[%c0_101, %c0_102] : memref<1152x128xbf16, #tpu.memory_space<vmem>>, vector<1152x128xbf16>
    %cst_103 = arith.constant dense<0.000000e+00> : vector<64x128xf32>
    %105 = tpu.matmul %103, %104, %cst_103 {dimension_numbers = #tpu.dot_dimension_numbers<[1], [0], [0], [1], [0, 0, 1, 1], [], []>} : vector<64x1152xbf16>, vector<1152x128xbf16>, vector<64x128xf32> -> vector<64x128xf32>
    %c0_104 = arith.constant 0 : index
    %c0_105 = arith.constant 0 : index
    %106 = vector.load %arg6[%c0_104, %c0_105] : memref<1x128xf32, #tpu.memory_space<vmem>>, vector<1x128xf32>
    %107 = vector.broadcast %106 : vector<1x128xf32> to vector<64x128xf32>
    %108 = arith.mulf %105, %107 : vector<64x128xf32>
    %c0_106 = arith.constant 0 : index
    %c0_107 = arith.constant 0 : index
    %109 = vector.load %arg7[%c0_106, %c0_107] : memref<1x128xf32, #tpu.memory_space<vmem>>, vector<1x128xf32>
    %110 = vector.broadcast %109 : vector<1x128xf32> to vector<64x128xf32>
    %111 = arith.addf %108, %110 : vector<64x128xf32>
    %112 = arith.negf %111 : vector<64x128xf32>
    %113 = math.exp %112 : vector<64x128xf32>
    %cst_108 = arith.constant 1.000000e+00 : f32
    %114 = vector.broadcast %cst_108 : f32 to vector<64x128xf32>
    %115 = arith.addf %114, %113 : vector<64x128xf32>
    %116 = arith.divf %114, %115 : vector<64x128xf32>
    %117 = arith.mulf %111, %116 : vector<64x128xf32>
    %118 = vector.extract_strided_slice %117 {offsets = [0, 0], sizes = [64, 8], strides = [1, 1]} : vector<64x128xf32> to vector<64x8xf32>
    %119 = vector.shape_cast %118 : vector<64x8xf32> to vector<8x8x8xf32>
    %c0_109 = arith.constant 0 : index
    %c0_110 = arith.constant 0 : index
    %c0_111 = arith.constant 0 : index
    %c0_112 = arith.constant 0 : index
    %120 = vector.load %arg8[%c0_109, %c0_110, %c0_111, %c0_112] : memref<1x8x8x8xf32, #tpu.memory_space<vmem>>, vector<1x8x8x8xf32>
    %121 = vector.shape_cast %120 : vector<1x8x8x8xf32> to vector<8x8x8xf32>
    %122 = vector.shape_cast %119 : vector<8x8x8xf32> to vector<1x8x8x8xf32>
    tpu.vector_store %arg8[%c0_109, %c0_110, %c0_111, %c0_112], %122 {strides = array<i32>} : memref<1x8x8x8xf32, #tpu.memory_space<vmem>>, vector<1x8x8x8xf32>,
    return
  }
  func.func @transform_0(%arg0: i32) -> (i32, i32, i32, i32) {
    %c0_i32 = arith.constant 0 : i32
    %c0_i32_0 = arith.constant 0 : i32
    %c0_i32_1 = arith.constant 0 : i32
    %c0_i32_2 = arith.constant 0 : i32
    return %arg0, %c0_i32, %c0_i32_0, %c0_i32_1 : i32, i32, i32, i32
  }
  func.func @transform_1(%arg0: i32) -> (i32, i32) {
    %c0_i32 = arith.constant 0 : i32
    %c0_i32_0 = arith.constant 0 : i32
    %c0_i32_1 = arith.constant 0 : i32
    return %c0_i32, %c0_i32_0 : i32, i32
  }
  func.func @transform_2(%arg0: i32) -> (i32, i32) {
    %c0_i32 = arith.constant 0 : i32
    %c0_i32_0 = arith.constant 0 : i32
    %c0_i32_1 = arith.constant 0 : i32
    return %c0_i32, %c0_i32_0 : i32, i32
  }
  func.func @transform_3(%arg0: i32) -> (i32, i32) {
    %c0_i32 = arith.constant 0 : i32
    %c0_i32_0 = arith.constant 0 : i32
    %c0_i32_1 = arith.constant 0 : i32
    return %c0_i32, %c0_i32_0 : i32, i32
  }
  func.func @transform_4(%arg0: i32) -> (i32, i32) {
    %c0_i32 = arith.constant 0 : i32
    %c0_i32_0 = arith.constant 0 : i32
    %c0_i32_1 = arith.constant 0 : i32
    return %c0_i32, %c0_i32_0 : i32, i32
  }
  func.func @transform_5(%arg0: i32) -> (i32, i32) {
    %c0_i32 = arith.constant 0 : i32
    %c0_i32_0 = arith.constant 0 : i32
    %c0_i32_1 = arith.constant 0 : i32
    return %c0_i32, %c0_i32_0 : i32, i32
  }
  func.func @transform_6(%arg0: i32) -> (i32, i32) {
    %c0_i32 = arith.constant 0 : i32
    %c0_i32_0 = arith.constant 0 : i32
    %c0_i32_1 = arith.constant 0 : i32
    return %c0_i32, %c0_i32_0 : i32, i32
  }
  func.func @transform_7(%arg0: i32) -> (i32, i32, i32, i32) {
    %c0_i32 = arith.constant 0 : i32
    %c0_i32_0 = arith.constant 0 : i32
    %c0_i32_1 = arith.constant 0 : i32
    %c0_i32_2 = arith.constant 0 : i32
    return %arg0, %c0_i32, %c0_i32_0, %c0_i32_1 : i32, i32, i32, i32
  }
}

</mosaic_0001>

<llo_original>
// kernel: tpu_custom_call.1
$region0: #{tpu_custom_call.1}
  #allocation0 [shape = 'u32[]', space=smem, size = 0x4, offset = 0x4, fixed_abs, tag = 'smem constant byte address 0x4 - core index']
  #allocation1 [shape = 'u32[144,128]{1,0:T(1,128)}', space=vmem, size = 0x12000, scoped, tag = 'internal scratch']
  #allocation2 [shape = 'f32[10,17,128]{2,1,0:T(8,128)}', space=vmem, size = 0x1e000, scoped, tag = 'scratch operand']
  #allocation3 [shape = 'bf16[64,1152]{1,0:T(16,128)(2,1)}', space=vmem, size = 0x24000, scoped, tag = 'scratch operand']
  %s0 = inlined_call_operand.vmem [shape: f32[2,16,8,8], index: 0, kind: input, shape index: {}]
  %s1 = inlined_call_operand.hbm [shape: bf16[1152,128], index: 1, kind: input, shape index: {}]
  %s2 = inlined_call_operand.vmem [shape: f32[1,128], index: 2, kind: input, shape index: {}]
  %s3 = inlined_call_operand.vmem [shape: f32[1,128], index: 3, kind: input, shape index: {}]
  %s4 = inlined_call_operand.hbm [shape: bf16[1152,128], index: 4, kind: input, shape index: {}]
  %s5 = inlined_call_operand.vmem [shape: f32[1,128], index: 5, kind: input, shape index: {}]
  %s6 = inlined_call_operand.vmem [shape: f32[1,128], index: 6, kind: input, shape index: {}]
  %s7 = inlined_call_operand.hbm [shape: f32[2,8,8,8], index: 7, kind: output, shape index: {}]
  %s8 = sld [smem:[#allocation0]]
  $region69: #{tpu_custom_call.1} parent=0
    _
  %s10 = ssub.s32 1, %s8
  %s11 = scalar_select 0, %s10, %s8
  $region1: #{tpu_custom_call.1} parent=0
    #allocation4 [shape = 'u8[294912]{0}', space=vmem, size = 0x48000, scoped, tag = 'input window, operand 1, single buffered']
    #allocation5 [shape = 's32[2]{0}', space=sflag, size = 0x8, scoped, tag = 'scoped memory for tpu_custom_call.1']
    #allocation6 [shape = 's32[2]{0}', space=sflag, size = 0x8, scoped, tag = 'scoped memory for tpu_custom_call.1']
    #allocation7 [shape = 'u8[294912]{0}', space=vmem, size = 0x48000, scoped, tag = 'input window, operand 4, single buffered']
    #allocation8 [shape = 's32[1]{0}', space=sflag, size = 0x4, scoped, tag = 'scoped memory for tpu_custom_call.1']
    #allocation9 [shape = 'u8[65536]{0}', space=vmem, size = 0x10000, scoped, tag = 'output window, operand 0']
    %12 = vsyncpa [#allocation5], 0
    %13 = vsyncpa [#allocation8], 0
    %14 = vsyncpa [#allocation6], 0
    %s15 = scalar_lea.sflag [#allocation6], 1
    %16 = vsyncpa %s15, 0
    loop: start=0, step=1, limit=4
    $region2: #{tpu_custom_call.1} parent=1 // loop_pre_header
      _
    $region3: #{tpu_custom_call.1} parent=1 // loop_header
      %s18 = sphi 0, %s22
      %p19 = scmp.ge.s32.totalorder %s18, 4
      %s28 = sphi 0, %s30
      %s31 = sphi 0, %s28
      %s32 = sphi 0, %s31
      %s48 = sphi 0, %s32
      %s52 = sphi 0, %s52
      %s54 = sphi 0, %s52
      %s55 = sphi 0, %s54
      %s69 = sphi 0, %s55
      %s73 = sphi 0, %s73
      %s75 = sphi 0, %s73
      %s76 = sphi 0, %s75
      %s90 = sphi 0, %s76
      %s94 = sphi 0, %s94
      %s96 = sphi 0, %s94
      %s97 = sphi 0, %s96
      %s111 = sphi 0, %s97
      %s115 = sphi 0, %s115
      %s117 = sphi 0, %s115
      %s118 = sphi 0, %s117
      %s132 = sphi 0, %s118
      %s136 = sphi 0, %s136
      %s138 = sphi 0, %s136
      %s139 = sphi 0, %s138
      %s153 = sphi 0, %s139
      %s157 = sphi 0, %s157
      %s159 = sphi 0, %s157
      %s160 = sphi 0, %s159
      %s174 = sphi 0, %s160
      %s180 = sphi 0, %s182
      %s183 = sphi 0, %s180
      %s184 = sphi 0, %s183
      %s200 = sphi 0, %s184
    $region4: #{tpu_custom_call.1} parent=1 // loop_header_branch
      %21 = sbr.rel (%p19) target = $region8
    $region5: #{tpu_custom_call.1} parent=1 // loop_body
      %s23 = ssub.s32 %s18, 1
      %s24 = ssub.s32 %s18, 2
      %s25 = sadd.s32 %s18, 1
      %s26 = ssub.s32 %s18, %s25
      %p27 = scmp.eq.s32.totalorder %s26, 0
      %s29 = sadd.s32 %s28, 1
      %s30 = scalar_select %p27, %s28, %s29
      %p33 = pneg %p27
      %p34 = scmp.eq.s32.totalorder %s18, 1
      %p35 = por %p33, %p34
      %p36 = scmp.ne.s32.totalorder %s28, %s31
      %p37 = scmp.eq.s32.totalorder %s18, 0
      %p38 = por %p36, %p37
      %p39 = scmp.ne.s32.totalorder %s28, %s31
      %p40 = scmp.eq.s32.totalorder %s23, 1
      %p41 = por %p39, %p40
      %p42 = scmp.ne.s32.totalorder %s31, %s32
      %p43 = scmp.eq.s32.totalorder %s23, 0
      %p44 = por %p42, %p43
      %p45 = scmp.ne.s32.totalorder %s31, %s32
      %p46 = scmp.eq.s32.totalorder %s24, 1
      %p47 = por %p45, %p46
      %p49 = scmp.ne.s32.totalorder %s32, %s48
      %p50 = scmp.eq.s32.totalorder %s24, 0
      %p51 = por %p49, %p50
      %s53 = sadd.s32 %s52, 1
      %p56 = scmp.eq.s32.totalorder %s18, 1
      %p57 = scmp.ne.s32.totalorder %s52, %s54
      %p58 = scmp.eq.s32.totalorder %s18, 0
      %p59 = por %p57, %p58
      %p60 = scmp.ne.s32.totalorder %s52, %s54
      %p61 = scmp.eq.s32.totalorder %s23, 1
      %p62 = por %p60, %p61
      %p63 = scmp.ne.s32.totalorder %s54, %s55
      %p64 = scmp.eq.s32.totalorder %s23, 0
      %p65 = por %p63, %p64
      %p66 = scmp.ne.s32.totalorder %s54, %s55
      %p67 = scmp.eq.s32.totalorder %s24, 1
      %p68 = por %p66, %p67
      %p70 = scmp.ne.s32.totalorder %s55, %s69
      %p71 = scmp.eq.s32.totalorder %s24, 0
      %p72 = por %p70, %p71
      %s74 = sadd.s32 %s73, 1
      %p77 = scmp.eq.s32.totalorder %s18, 1
      %p78 = scmp.ne.s32.totalorder %s73, %s75
      %p79 = scmp.eq.s32.totalorder %s18, 0
      %p80 = por %p78, %p79
      %p81 = scmp.ne.s32.totalorder %s73, %s75
      %p82 = scmp.eq.s32.totalorder %s23, 1
      %p83 = por %p81, %p82
      %p84 = scmp.ne.s32.totalorder %s75, %s76
      %p85 = scmp.eq.s32.totalorder %s23, 0
      %p86 = por %p84, %p85
      %p87 = scmp.ne.s32.totalorder %s75, %s76
      %p88 = scmp.eq.s32.totalorder %s24, 1
      %p89 = por %p87, %p88
      %p91 = scmp.ne.s32.totalorder %s76, %s90
      %p92 = scmp.eq.s32.totalorder %s24, 0
      %p93 = por %p91, %p92
      %s95 = sadd.s32 %s94, 1
      %p98 = scmp.eq.s32.totalorder %s18, 1
      %p99 = scmp.ne.s32.totalorder %s94, %s96
      %p100 = scmp.eq.s32.totalorder %s18, 0
      %p101 = por %p99, %p100
      %p102 = scmp.ne.s32.totalorder %s94, %s96
      %p103 = scmp.eq.s32.totalorder %s23, 1
      %p104 = por %p102, %p103
      %p105 = scmp.ne.s32.totalorder %s96, %s97
      %p106 = scmp.eq.s32.totalorder %s23, 0
      %p107 = por %p105, %p106
      %p108 = scmp.ne.s32.totalorder %s96, %s97
      %p109 = scmp.eq.s32.totalorder %s24, 1
      %p110 = por %p108, %p109
      %p112 = scmp.ne.s32.totalorder %s97, %s111
      %p113 = scmp.eq.s32.totalorder %s24, 0
      %p114 = por %p112, %p113
      %s116 = sadd.s32 %s115, 1
      %p119 = scmp.eq.s32.totalorder %s18, 1
      %p120 = scmp.ne.s32.totalorder %s115, %s117
      %p121 = scmp.eq.s32.totalorder %s18, 0
      %p122 = por %p120, %p121
      %p123 = scmp.ne.s32.totalorder %s115, %s117
      %p124 = scmp.eq.s32.totalorder %s23, 1
      %p125 = por %p123, %p124
      %p126 = scmp.ne.s32.totalorder %s117, %s118
      %p127 = scmp.eq.s32.totalorder %s23, 0
      %p128 = por %p126, %p127
      %p129 = scmp.ne.s32.totalorder %s117, %s118
      %p130 = scmp.eq.s32.totalorder %s24, 1
      %p131 = por %p129, %p130
      %p133 = scmp.ne.s32.totalorder %s118, %s132
      %p134 = scmp.eq.s32.totalorder %s24, 0
      %p135 = por %p133, %p134
      %s137 = sadd.s32 %s136, 1
      %p140 = scmp.eq.s32.totalorder %s18, 1
      %p141 = scmp.ne.s32.totalorder %s136, %s138
      %p142 = scmp.eq.s32.totalorder %s18, 0
      %p143 = por %p141, %p142
      %p144 = scmp.ne.s32.totalorder %s136, %s138
      %p145 = scmp.eq.s32.totalorder %s23, 1
      %p146 = por %p144, %p145
      %p147 = scmp.ne.s32.totalorder %s138, %s139
      %p148 = scmp.eq.s32.totalorder %s23, 0
      %p149 = por %p147, %p148
      %p150 = scmp.ne.s32.totalorder %s138, %s139
      %p151 = scmp.eq.s32.totalorder %s24, 1
      %p152 = por %p150, %p151
      %p154 = scmp.ne.s32.totalorder %s139, %s153
      %p155 = scmp.eq.s32.totalorder %s24, 0
      %p156 = por %p154, %p155
      %s158 = sadd.s32 %s157, 1
      %p161 = scmp.eq.s32.totalorder %s18, 1
      %p162 = scmp.ne.s32.totalorder %s157, %s159
      %p163 = scmp.eq.s32.totalorder %s18, 0
      %p164 = por %p162, %p163
      %p165 = scmp.ne.s32.totalorder %s157, %s159
      %p166 = scmp.eq.s32.totalorder %s23, 1
      %p167 = por %p165, %p166
      %p168 = scmp.ne.s32.totalorder %s159, %s160
      %p169 = scmp.eq.s32.totalorder %s23, 0
      %p170 = por %p168, %p169
      %p171 = scmp.ne.s32.totalorder %s159, %s160
      %p172 = scmp.eq.s32.totalorder %s24, 1
      %p173 = por %p171, %p172
      %p175 = scmp.ne.s32.totalorder %s160, %s174
      %p176 = scmp.eq.s32.totalorder %s24, 0
      %p177 = por %p175, %p176
      %s178 = ssub.s32 %s18, %s25
      %p179 = scmp.eq.s32.totalorder %s178, 0
      %s181 = sadd.s32 %s180, 1
      %s182 = scalar_select %p179, %s180, %s181
      %p185 = pneg %p179
      %p186 = scmp.eq.s32.totalorder %s18, 1
      %p187 = por %p185, %p186
      %p188 = scmp.ne.s32.totalorder %s180, %s183
      %p189 = scmp.eq.s32.totalorder %s18, 0
      %p190 = por %p188, %p189
      %p191 = scmp.ne.s32.totalorder %s180, %s183
      %p192 = scmp.eq.s32.totalorder %s23, 1
      %p193 = por %p191, %p192
      %p194 = scmp.ne.s32.totalorder %s183, %s184
      %p195 = scmp.eq.s32.totalorder %s23, 0
      %p196 = por %p194, %p195
      %p197 = scmp.ne.s32.totalorder %s183, %s184
      %p198 = scmp.eq.s32.totalorder %s24, 1
      %p199 = por %p197, %p198
      %p201 = scmp.ne.s32.totalorder %s184, %s200
      %p202 = scmp.eq.s32.totalorder %s24, 0
      %p203 = por %p201, %p202
      %p204 = scmp.le.s32.totalorder 1, %s18
      %p205 = scmp.lt.s32.totalorder %s18, 3
      %p206 = pnand %p204, %p205
      %p207 = pneg %p206
      // Predicated region
      $region9: #{tpu_custom_call.1} parent=5 // pred_check
        _
      $region10: #{tpu_custom_call.1} parent=5 // pred_check_branch
        %209 = sbr.rel (%p206) target = $region12
      $region11: #{tpu_custom_call.1} parent=5 // pred_region
        %s210 = ssub.s32 %s18, 1
        // Predicated region
        $region13: #{tpu_custom_call.1} parent=11 // pred_check
          %p211 = pneg %p65
        $region14: #{tpu_custom_call.1} parent=11 // pred_check_branch
          %213 = sbr.rel (%p211) target = $region16
        $region15: #{tpu_custom_call.1} parent=11 // pred_region
          %s215 = ssub.s32 9216, 9216
          %216 = vsyncadd [#allocation5], %s215
          %s217 = sshll.u32 [#allocation4], 4
          %s218 = int_to_ptr.vmem [resolvable:$true] %s217
          %223 = dma.hbm_to_vmem [thread:$0]  %s1, 9216, %s218, [#allocation5], 64, 64, 4
        $region16: #{tpu_custom_call.1} parent=11 // pred_fallthru
          _
        // Predicated region
        $region17: #{tpu_custom_call.1} parent=11 // pred_check
          %p224 = pneg %p86
        $region18: #{tpu_custom_call.1} parent=11 // pred_check_branch
          %226 = sbr.rel (%p224) target = $region20
        $region19: #{tpu_custom_call.1} parent=11 // pred_region
          _
        $region20: #{tpu_custom_call.1} parent=11 // pred_fallthru
          _
        // Predicated region
        $region21: #{tpu_custom_call.1} parent=11 // pred_check
          %p227 = pneg %p107
        $region22: #{tpu_custom_call.1} parent=11 // pred_check_branch
          %229 = sbr.rel (%p227) target = $region24
        $region23: #{tpu_custom_call.1} parent=11 // pred_region
          _
        $region24: #{tpu_custom_call.1} parent=11 // pred_fallthru
          _
        // Predicated region
        $region25: #{tpu_custom_call.1} parent=11 // pred_check
          %p230 = pneg %p128
        $region26: #{tpu_custom_call.1} parent=11 // pred_check_branch
          %232 = sbr.rel (%p230) target = $region28
        $region27: #{tpu_custom_call.1} parent=11 // pred_region
          %s234 = ssub.s32 9216, 9216
          %235 = vsyncadd [#allocation8], %s234
          %s236 = sshll.u32 [#allocation7], 4
          %s237 = int_to_ptr.vmem [resolvable:$true] %s236
          %242 = dma.hbm_to_vmem [thread:$0]  %s4, 9216, %s237, [#allocation8], 64, 64, 4
        $region28: #{tpu_custom_call.1} parent=11 // pred_fallthru
          _
        // Predicated region
        $region29: #{tpu_custom_call.1} parent=11 // pred_check
          %p243 = pneg %p149
        $region30: #{tpu_custom_call.1} parent=11 // pred_check_branch
          %245 = sbr.rel (%p243) target = $region32
        $region31: #{tpu_custom_call.1} parent=11 // pred_region
          _
        $region32: #{tpu_custom_call.1} parent=11 // pred_fallthru
          _
        // Predicated region
        $region33: #{tpu_custom_call.1} parent=11 // pred_check
          %p246 = pneg %p170
        $region34: #{tpu_custom_call.1} parent=11 // pred_check_branch
          %248 = sbr.rel (%p246) target = $region36
        $region35: #{tpu_custom_call.1} parent=11 // pred_region
          _
        $region36: #{tpu_custom_call.1} parent=11 // pred_fallthru
          _
      $region12: #{tpu_custom_call.1} parent=5 // pred_fallthru
        _
      %p249 = scmp.lt.s32.totalorder %s18, 2
      // Predicated region
      $region37: #{tpu_custom_call.1} parent=5 // pred_check
        %p250 = pneg %p249
      $region38: #{tpu_custom_call.1} parent=5 // pred_check_branch
        %252 = sbr.rel (%p250) target = $region40
      $region39: #{tpu_custom_call.1} parent=5 // pred_region
        // Predicated region
        $region41: #{tpu_custom_call.1} parent=39 // pred_check
          %p253 = pneg %p38
        $region42: #{tpu_custom_call.1} parent=39 // pred_check_branch
          %255 = sbr.rel (%p253) target = $region44
        $region43: #{tpu_custom_call.1} parent=39 // pred_region
          %p256 = scmp.lt.s32.totalorder %s18, 1
          %s257 = scalar_select %p256, %s18, 1
          %s258 = smul.addr %s257, 16
          %s259 = smul.addr %s258, 8
          %s260 = scalar_lea.vmem %s0, %s259
        $region44: #{tpu_custom_call.1} parent=39 // pred_fallthru
          _
      $region40: #{tpu_custom_call.1} parent=5 // pred_fallthru
        _
      %p261 = scmp.le.s32.totalorder 1, %s18
      %p262 = scmp.lt.s32.totalorder %s18, 3
      %p263 = pnand %p261, %p262
      %p264 = pneg %p263
      // Predicated region
      $region45: #{tpu_custom_call.1} parent=5 // pred_check
        _
      $region46: #{tpu_custom_call.1} parent=5 // pred_check_branch
        %266 = sbr.rel (%p263) target = $region48
      $region47: #{tpu_custom_call.1} parent=5 // pred_region
        %s267 = ssub.s32 %s18, 1
        // Predicated region
        $region49: #{tpu_custom_call.1} parent=47 // pred_check
          %p268 = pneg %p65
        $region50: #{tpu_custom_call.1} parent=47 // pred_check_branch
          %270 = sbr.rel (%p268) target = $region52
        $region51: #{tpu_custom_call.1} parent=47 // pred_region
          %271 = dma.done [#allocation5], 9216
        $region52: #{tpu_custom_call.1} parent=47 // pred_fallthru
          _
        // Predicated region
        $region53: #{tpu_custom_call.1} parent=47 // pred_check
          %p272 = pneg %p128
        $region54: #{tpu_custom_call.1} parent=47 // pred_check_branch
          %274 = sbr.rel (%p272) target = $region56
        $region55: #{tpu_custom_call.1} parent=47 // pred_region
          %275 = dma.done [#allocation8], 9216
        $region56: #{tpu_custom_call.1} parent=47 // pred_fallthru
          _
        %p276 = scmp.lt.s32.totalorder %s23, 1
        %s277 = scalar_select %p276, %s23, 1
        %s278 = smul.addr %s277, 16
        %s279 = smul.addr %s278, 8
        %s280 = scalar_lea.vmem %s0, %s279
        %p281 = pneg %p44
        %p282 = pneg %p41
        %p283 = pneg %p65
        %p284 = pneg %p62
        %p285 = pneg %p86
        %p286 = pneg %p83
        %p287 = pneg %p107
        %p288 = pneg %p104
        %p289 = pneg %p128
        %p290 = pneg %p125
        %p291 = pneg %p149
        %p292 = pneg %p146
        %p293 = pneg %p170
        %p294 = pneg %p167
        %p295 = pneg %p196
        %p296 = pneg %p193
        %s297 = sand.u32 %s183, 1
        %s298 = scalar_lea.sflag [#allocation6], %s297
        %s299 = sand.u32 %s183, 1
        %s300 = smul.addr %s299, 64
        %s301 = scalar_lea.vmem [#allocation9], %s300
        %p302 = scmp.lt.s32.totalorder %s23, 1
        %s303 = scalar_select %p302, %s23, 1
        %s304 = smul.addr %s303, 16
        %s305 = smul.addr %s304, 8
        %s306 = scalar_lea.vmem %s0, %s305
        %v308 = vld [vmem:[%s306] sm:$0xff]
        %v309 = vld [vmem:[%s306 + $0x8] sm:$0xff]
        %v310 = vld [vmem:[%s306 + $0x10] sm:$0xff]
        %v311 = vld [vmem:[%s306 + $0x18] sm:$0xff]
        %v312 = vld [vmem:[%s306 + $0x20] sm:$0xff]
        %v313 = vld [vmem:[%s306 + $0x28] sm:$0xff]
        %v314 = vld [vmem:[%s306 + $0x30] sm:$0xff]
        %v315 = vld [vmem:[%s306 + $0x38] sm:$0xff]
        %v316 = vld [vmem:[%s306 + $0x40] sm:$0xff]
        %v317 = vld [vmem:[%s306 + $0x48] sm:$0xff]
        %v318 = vld [vmem:[%s306 + $0x50] sm:$0xff]
        %v319 = vld [vmem:[%s306 + $0x58] sm:$0xff]
        %v320 = vld [vmem:[%s306 + $0x60] sm:$0xff]
        %v321 = vld [vmem:[%s306 + $0x68] sm:$0xff]
        %v322 = vld [vmem:[%s306 + $0x70] sm:$0xff]
        %v323 = vld [vmem:[%s306 + $0x78] sm:$0xff]
        %340 = vrot.lane.b32.xlu0 %v308, 124
        %v341 = vpop.permute.xlu0 %340
        %342 = vrot.lane.b32.xlu0 %v309, 124
        %v343 = vpop.permute.xlu0 %342
        %344 = vrot.lane.b32.xlu0 %v310, 124
        %v345 = vpop.permute.xlu0 %344
        %346 = vrot.lane.b32.xlu0 %v311, 124
        %v347 = vpop.permute.xlu0 %346
        %348 = vrot.lane.b32.xlu0 %v312, 124
        %v349 = vpop.permute.xlu0 %348
        %350 = vrot.lane.b32.xlu0 %v313, 124
        %v351 = vpop.permute.xlu0 %350
        %352 = vrot.lane.b32.xlu0 %v314, 124
        %v353 = vpop.permute.xlu0 %352
        %354 = vrot.lane.b32.xlu0 %v315, 124
        %v355 = vpop.permute.xlu0 %354
        %356 = vrot.lane.b32.xlu0 %v316, 124
        %v357 = vpop.permute.xlu0 %356
        %358 = vrot.lane.b32.xlu0 %v317, 124
        %v359 = vpop.permute.xlu0 %358
        %360 = vrot.lane.b32.xlu0 %v318, 124
        %v361 = vpop.permute.xlu0 %360
        %362 = vrot.lane.b32.xlu0 %v319, 124
        %v363 = vpop.permute.xlu0 %362
        %364 = vrot.lane.b32.xlu0 %v320, 124
        %v365 = vpop.permute.xlu0 %364
        %366 = vrot.lane.b32.xlu0 %v321, 124
        %v367 = vpop.permute.xlu0 %366
        %368 = vrot.lane.b32.xlu0 %v322, 124
        %v369 = vpop.permute.xlu0 %368
        %370 = vrot.lane.b32.xlu0 %v323, 124
        %v371 = vpop.permute.xlu0 %370
        %v388 = vmax.f32 %v308, %v341
        %v389 = vmax.f32 %v309, %v343
        %v390 = vmax.f32 %v310, %v345
        %v391 = vmax.f32 %v311, %v347
        %v392 = vmax.f32 %v312, %v349
        %v393 = vmax.f32 %v313, %v351
        %v394 = vmax.f32 %v314, %v353
        %v395 = vmax.f32 %v315, %v355
        %v396 = vmax.f32 %v316, %v357
        %v397 = vmax.f32 %v317, %v359
        %v398 = vmax.f32 %v318, %v361
        %v399 = vmax.f32 %v319, %v363
        %v400 = vmax.f32 %v320, %v365
        %v401 = vmax.f32 %v321, %v367
        %v402 = vmax.f32 %v322, %v369
        %v403 = vmax.f32 %v323, %v371
        %v404 = vmax.f32 %v388, %v389
        %v405 = vmax.f32 %v390, %v391
        %v406 = vmax.f32 %v392, %v393
        %v407 = vmax.f32 %v394, %v395
        %v408 = vmax.f32 %v396, %v397
        %v409 = vmax.f32 %v398, %v399
        %v410 = vmax.f32 %v400, %v401
        %v411 = vmax.f32 %v402, %v403
        %412 = vst [vmem:[#allocation2] sm:$0xff] 0.0
        %413 = vst [vmem:[#allocation2 + $0x8] sm:$0xff] 0.0
        %414 = vst [vmem:[#allocation2 + $0x10] sm:$0x1] 0.0
        %415 = vst [vmem:[#allocation2 + $0x18] sm:$0xff] 0.0
        %416 = vst [vmem:[#allocation2 + $0x20] sm:$0xff] 0.0
        %417 = vst [vmem:[#allocation2 + $0x28] sm:$0x1] 0.0
        %418 = vst [vmem:[#allocation2 + $0x30] sm:$0xff] 0.0
        %419 = vst [vmem:[#allocation2 + $0x38] sm:$0xff] 0.0
        %420 = vst [vmem:[#allocation2 + $0x40] sm:$0x1] 0.0
        %421 = vst [vmem:[#allocation2 + $0x48] sm:$0xff] 0.0
        %422 = vst [vmem:[#allocation2 + $0x50] sm:$0xff] 0.0
        %423 = vst [vmem:[#allocation2 + $0x58] sm:$0x1] 0.0
        %424 = vst [vmem:[#allocation2 + $0x60] sm:$0xff] 0.0
        %425 = vst [vmem:[#allocation2 + $0x68] sm:$0xff] 0.0
        %426 = vst [vmem:[#allocation2 + $0x70] sm:$0x1] 0.0
        %427 = vst [vmem:[#allocation2 + $0x78] sm:$0xff] 0.0
        %428 = vst [vmem:[#allocation2 + $0x80] sm:$0xff] 0.0
        %429 = vst [vmem:[#allocation2 + $0x88] sm:$0x1] 0.0
        %430 = vst [vmem:[#allocation2 + $0x90] sm:$0xff] 0.0
        %431 = vst [vmem:[#allocation2 + $0x98] sm:$0xff] 0.0
        %432 = vst [vmem:[#allocation2 + $0xa0] sm:$0x1] 0.0
        %433 = vst [vmem:[#allocation2 + $0xa8] sm:$0xff] 0.0
        %434 = vst [vmem:[#allocation2 + $0xb0] sm:$0xff] 0.0
        %435 = vst [vmem:[#allocation2 + $0xb8] sm:$0x1] 0.0
        %436 = vst [vmem:[#allocation2 + $0xc0] sm:$0xff] 0.0
        %437 = vst [vmem:[#allocation2 + $0xc8] sm:$0xff] 0.0
        %438 = vst [vmem:[#allocation2 + $0xd0] sm:$0x1] 0.0
        %439 = vst [vmem:[#allocation2 + $0xd8] sm:$0xff] 0.0
        %440 = vst [vmem:[#allocation2 + $0xe0] sm:$0xff] 0.0
        %441 = vst [vmem:[#allocation2 + $0xe8] sm:$0x1] 0.0
        %s442 = scalar_lea.vmem [#allocation2], 24
        %vm443 = vcmask 31744
        %444 = vst.msk [vmem:[%s442 + $0x8] sm:$0xff] %vm443, %v404
        %445 = vst.msk [vmem:[%s442 + $0x20] sm:$0xff] %vm443, %v405
        %446 = vst.msk [vmem:[%s442 + $0x38] sm:$0xff] %vm443, %v406
        %447 = vst.msk [vmem:[%s442 + $0x50] sm:$0xff] %vm443, %v407
        %448 = vst.msk [vmem:[%s442 + $0x68] sm:$0xff] %vm443, %v408
        %449 = vst.msk [vmem:[%s442 + $0x80] sm:$0xff] %vm443, %v409
        %450 = vst.msk [vmem:[%s442 + $0x98] sm:$0xff] %vm443, %v410
        %451 = vst.msk [vmem:[%s442 + $0xb0] sm:$0xff] %vm443, %v411
        %v452 = vld [vmem:[#allocation2 + $0x7] sm:$0xff]
        %v453 = vld [vmem:[#allocation2 + $0x1f] sm:$0xff]
        %v454 = vld [vmem:[#allocation2 + $0x37] sm:$0xff]
        %v455 = vld [vmem:[#allocation2 + $0x4f] sm:$0xff]
        %v456 = vld [vmem:[#allocation2 + $0x67] sm:$0xff]
        %v457 = vld [vmem:[#allocation2 + $0x7f] sm:$0xff]
        %v458 = vld [vmem:[#allocation2 + $0x97] sm:$0xff]
        %v459 = vld [vmem:[#allocation2 + $0xaf] sm:$0xff]
        %v460 = vpack.c.bf16 %v453, %v452
        %v461 = vpack.c.bf16 %v455, %v454
        %v462 = vpack.c.bf16 %v457, %v456
        %v463 = vpack.c.bf16 %v459, %v458
        %464 = vst [vmem:[#allocation3] sm:$0xff] %v460
        %465 = vst [vmem:[#allocation3 + $0x48] sm:$0xff] %v461
        %466 = vst [vmem:[#allocation3 + $0x90] sm:$0xff] %v462
        %467 = vst [vmem:[#allocation3 + $0xd8] sm:$0xff] %v463
        %v468 = vld [vmem:[#allocation2 + $0x8] sm:$0xff]
        %v469 = vld [vmem:[#allocation2 + $0x20] sm:$0xff]
        %v470 = vld [vmem:[#allocation2 + $0x38] sm:$0xff]
        %v471 = vld [vmem:[#allocation2 + $0x50] sm:$0xff]
        %v472 = vld [vmem:[#allocation2 + $0x68] sm:$0xff]
        %v473 = vld [vmem:[#allocation2 + $0x80] sm:$0xff]
        %v474 = vld [vmem:[#allocation2 + $0x98] sm:$0xff]
        %v475 = vld [vmem:[#allocation2 + $0xb0] sm:$0xff]
        %v476 = vpack.c.bf16 %v469, %v468
        %v477 = vpack.c.bf16 %v471, %v470
        %v478 = vpack.c.bf16 %v473, %v472
        %v479 = vpack.c.bf16 %v475, %v474
        %480 = vst [vmem:[#allocation3 + $0x8] sm:$0xff] %v476
        %481 = vst [vmem:[#allocation3 + $0x50] sm:$0xff] %v477
        %482 = vst [vmem:[#allocation3 + $0x98] sm:$0xff] %v478
        %483 = vst [vmem:[#allocation3 + $0xe0] sm:$0xff] %v479
        %v484 = vld [vmem:[#allocation2 + $0x9] sm:$0xff]
        %v485 = vld [vmem:[#allocation2 + $0x21] sm:$0xff]
        %v486 = vld [vmem:[#allocation2 + $0x39] sm:$0xff]
        %v487 = vld [vmem:[#allocation2 + $0x51] sm:$0xff]
        %v488 = vld [vmem:[#allocation2 + $0x69] sm:$0xff]
        %v489 = vld [vmem:[#allocation2 + $0x81] sm:$0xff]
        %v490 = vld [vmem:[#allocation2 + $0x99] sm:$0xff]
        %v491 = vld [vmem:[#allocation2 + $0xb1] sm:$0xff]
        %v492 = vpack.c.bf16 %v485, %v484
        %v493 = vpack.c.bf16 %v487, %v486
        %v494 = vpack.c.bf16 %v489, %v488
        %v495 = vpack.c.bf16 %v491, %v490
        %496 = vst [vmem:[#allocation3 + $0x10] sm:$0xff] %v492
        %497 = vst [vmem:[#allocation3 + $0x58] sm:$0xff] %v493
        %498 = vst [vmem:[#allocation3 + $0xa0] sm:$0xff] %v494
        %499 = vst [vmem:[#allocation3 + $0xe8] sm:$0xff] %v495
        %v500 = vld [vmem:[%s442 + $0x7] sm:$0xff]
        %v501 = vld [vmem:[%s442 + $0x1f] sm:$0xff]
        %v502 = vld [vmem:[%s442 + $0x37] sm:$0xff]
        %v503 = vld [vmem:[%s442 + $0x4f] sm:$0xff]
        %v504 = vld [vmem:[%s442 + $0x67] sm:$0xff]
        %v505 = vld [vmem:[%s442 + $0x7f] sm:$0xff]
        %v506 = vld [vmem:[%s442 + $0x97] sm:$0xff]
        %v507 = vld [vmem:[%s442 + $0xaf] sm:$0xff]
        %v508 = vpack.c.bf16 %v501, %v500
        %v509 = vpack.c.bf16 %v503, %v502
        %v510 = vpack.c.bf16 %v505, %v504
        %v511 = vpack.c.bf16 %v507, %v506
        %512 = vst [vmem:[#allocation3 + $0x18] sm:$0xff] %v508
        %513 = vst [vmem:[#allocation3 + $0x60] sm:$0xff] %v509
        %514 = vst [vmem:[#allocation3 + $0xa8] sm:$0xff] %v510
        %515 = vst [vmem:[#allocation3 + $0xf0] sm:$0xff] %v511
        %v516 = vld [vmem:[%s442 + $0x8] sm:$0xff]
        %v517 = vld [vmem:[%s442 + $0x20] sm:$0xff]
        %v518 = vld [vmem:[%s442 + $0x38] sm:$0xff]
        %v519 = vld [vmem:[%s442 + $0x50] sm:$0xff]
        %v520 = vld [vmem:[%s442 + $0x68] sm:$0xff]
        %v521 = vld [vmem:[%s442 + $0x80] sm:$0xff]
        %v522 = vld [vmem:[%s442 + $0x98] sm:$0xff]
        %v523 = vld [vmem:[%s442 + $0xb0] sm:$0xff]
        %v524 = vpack.c.bf16 %v517, %v516
        %v525 = vpack.c.bf16 %v519, %v518
        %v526 = vpack.c.bf16 %v521, %v520
        %v527 = vpack.c.bf16 %v523, %v522
        %528 = vst [vmem:[#allocation3 + $0x20] sm:$0xff] %v524
        %529 = vst [vmem:[#allocation3 + $0x68] sm:$0xff] %v525
        %530 = vst [vmem:[#allocation3 + $0xb0] sm:$0xff] %v526
        %531 = vst [vmem:[#allocation3 + $0xf8] sm:$0xff] %v527
        %v532 = vld [vmem:[%s442 + $0x9] sm:$0xff]
        %v533 = vld [vmem:[%s442 + $0x21] sm:$0xff]
        %v534 = vld [vmem:[%s442 + $0x39] sm:$0xff]
        %v535 = vld [vmem:[%s442 + $0x51] sm:$0xff]
        %v536 = vld [vmem:[%s442 + $0x69] sm:$0xff]
        %v537 = vld [vmem:[%s442 + $0x81] sm:$0xff]
        %v538 = vld [vmem:[%s442 + $0x99] sm:$0xff]
        %v539 = vld [vmem:[%s442 + $0xb1] sm:$0xff]
        %v540 = vpack.c.bf16 %v533, %v532
        %v541 = vpack.c.bf16 %v535, %v534
        %v542 = vpack.c.bf16 %v537, %v536
        %v543 = vpack.c.bf16 %v539, %v538
        %544 = vst [vmem:[#allocation3 + $0x28] sm:$0xff] %v540
        %545 = vst [vmem:[#allocation3 + $0x70] sm:$0xff] %v541
        %546 = vst [vmem:[#allocation3 + $0xb8] sm:$0xff] %v542
        %547 = vst [vmem:[#allocation3 + $0x100] sm:$0xff] %v543
        %s548 = scalar_lea.vmem [#allocation2], 48
        %v549 = vld [vmem:[%s548 + $0x7] sm:$0xff]
        %v550 = vld [vmem:[%s548 + $0x1f] sm:$0xff]
        %v551 = vld [vmem:[%s548 + $0x37] sm:$0xff]
        %v552 = vld [vmem:[%s548 + $0x4f] sm:$0xff]
        %v553 = vld [vmem:[%s548 + $0x67] sm:$0xff]
        %v554 = vld [vmem:[%s548 + $0x7f] sm:$0xff]
        %v555 = vld [vmem:[%s548 + $0x97] sm:$0xff]
        %v556 = vld [vmem:[%s548 + $0xaf] sm:$0xff]
        %v557 = vpack.c.bf16 %v550, %v549
        %v558 = vpack.c.bf16 %v552, %v551
        %v559 = vpack.c.bf16 %v554, %v553
        %v560 = vpack.c.bf16 %v556, %v555
        %561 = vst [vmem:[#allocation3 + $0x30] sm:$0xff] %v557
        %562 = vst [vmem:[#allocation3 + $0x78] sm:$0xff] %v558
        %563 = vst [vmem:[#allocation3 + $0xc0] sm:$0xff] %v559
        %564 = vst [vmem:[#allocation3 + $0x108] sm:$0xff] %v560
        %v565 = vld [vmem:[%s548 + $0x8] sm:$0xff]
        %v566 = vld [vmem:[%s548 + $0x20] sm:$0xff]
        %v567 = vld [vmem:[%s548 + $0x38] sm:$0xff]
        %v568 = vld [vmem:[%s548 + $0x50] sm:$0xff]
        %v569 = vld [vmem:[%s548 + $0x68] sm:$0xff]
        %v570 = vld [vmem:[%s548 + $0x80] sm:$0xff]
        %v571 = vld [vmem:[%s548 + $0x98] sm:$0xff]
        %v572 = vld [vmem:[%s548 + $0xb0] sm:$0xff]
        %v573 = vpack.c.bf16 %v566, %v565
        %v574 = vpack.c.bf16 %v568, %v567
        %v575 = vpack.c.bf16 %v570, %v569
        %v576 = vpack.c.bf16 %v572, %v571
        %577 = vst [vmem:[#allocation3 + $0x38] sm:$0xff] %v573
        %578 = vst [vmem:[#allocation3 + $0x80] sm:$0xff] %v574
        %579 = vst [vmem:[#allocation3 + $0xc8] sm:$0xff] %v575
        %580 = vst [vmem:[#allocation3 + $0x110] sm:$0xff] %v576
        %v581 = vld [vmem:[%s548 + $0x9] sm:$0xff]
        %v582 = vld [vmem:[%s548 + $0x21] sm:$0xff]
        %v583 = vld [vmem:[%s548 + $0x39] sm:$0xff]
        %v584 = vld [vmem:[%s548 + $0x51] sm:$0xff]
        %v585 = vld [vmem:[%s548 + $0x69] sm:$0xff]
        %v586 = vld [vmem:[%s548 + $0x81] sm:$0xff]
        %v587 = vld [vmem:[%s548 + $0x99] sm:$0xff]
        %v588 = vld [vmem:[%s548 + $0xb1] sm:$0xff]
        %v589 = vpack.c.bf16 %v582, %v581
        %v590 = vpack.c.bf16 %v584, %v583
        %v591 = vpack.c.bf16 %v586, %v585
        %v592 = vpack.c.bf16 %v588, %v587
        %593 = vst [vmem:[#allocation3 + $0x40] sm:$0xff] %v589
        %594 = vst [vmem:[#allocation3 + $0x88] sm:$0xff] %v590
        %595 = vst [vmem:[#allocation3 + $0xd0] sm:$0xff] %v591
        %596 = vst [vmem:[#allocation3 + $0x118] sm:$0xff] %v592
        %v597 = vld [vmem:[#allocation3] sm:$0xff]
        %v598 = vld [vmem:[#allocation3 + $0x8] sm:$0xff]
        %v599 = vld [vmem:[#allocation3 + $0x10] sm:$0xff]
        %v600 = vld [vmem:[#allocation3 + $0x18] sm:$0xff]
        %v601 = vld [vmem:[#allocation3 + $0x20] sm:$0xff]
        %v602 = vld [vmem:[#allocation3 + $0x28] sm:$0xff]
        %v603 = vld [vmem:[#allocation3 + $0x30] sm:$0xff]
        %v604 = vld [vmem:[#allocation3 + $0x38] sm:$0xff]
        %v605 = vld [vmem:[#allocation3 + $0x40] sm:$0xff]
        %v606 = vld [vmem:[#allocation3 + $0x48] sm:$0xff]
        %v607 = vld [vmem:[#allocation3 + $0x50] sm:$0xff]
        %v608 = vld [vmem:[#allocation3 + $0x58] sm:$0xff]
        %v609 = vld [vmem:[#allocation3 + $0x60] sm:$0xff]
        %v610 = vld [vmem:[#allocation3 + $0x68] sm:$0xff]
        %v611 = vld [vmem:[#allocation3 + $0x70] sm:$0xff]
        %v612 = vld [vmem:[#allocation3 + $0x78] sm:$0xff]
        %v613 = vld [vmem:[#allocation3 + $0x80] sm:$0xff]
        %v614 = vld [vmem:[#allocation3 + $0x88] sm:$0xff]
        %v615 = vld [vmem:[#allocation3 + $0x90] sm:$0xff]
        %v616 = vld [vmem:[#allocation3 + $0x98] sm:$0xff]
        %v617 = vld [vmem:[#allocation3 + $0xa0] sm:$0xff]
        %v618 = vld [vmem:[#allocation3 + $0xa8] sm:$0xff]
        %v619 = vld [vmem:[#allocation3 + $0xb0] sm:$0xff]
        %v620 = vld [vmem:[#allocation3 + $0xb8] sm:$0xff]
        %v621 = vld [vmem:[#allocation3 + $0xc0] sm:$0xff]
        %v622 = vld [vmem:[#allocation3 + $0xc8] sm:$0xff]
        %v623 = vld [vmem:[#allocation3 + $0xd0] sm:$0xff]
        %v624 = vld [vmem:[#allocation3 + $0xd8] sm:$0xff]
        %v625 = vld [vmem:[#allocation3 + $0xe0] sm:$0xff]
        %v626 = vld [vmem:[#allocation3 + $0xe8] sm:$0xff]
        %v627 = vld [vmem:[#allocation3 + $0xf0] sm:$0xff]
        %v628 = vld [vmem:[#allocation3 + $0xf8] sm:$0xff]
        %v629 = vld [vmem:[#allocation3 + $0x100] sm:$0xff]
        %v630 = vld [vmem:[#allocation3 + $0x108] sm:$0xff]
        %v631 = vld [vmem:[#allocation3 + $0x110] sm:$0xff]
        %v632 = vld [vmem:[#allocation3 + $0x118] sm:$0xff]
        %v633 = vld [vmem:[#allocation4] sm:$0xf]
        %v634 = vld [vmem:[#allocation4 + $0x4] sm:$0xf]
        %v635 = vld [vmem:[#allocation4 + $0x8] sm:$0xf]
        %v636 = vld [vmem:[#allocation4 + $0xc] sm:$0xf]
        %v637 = vld [vmem:[#allocation4 + $0x10] sm:$0xf]
        %v638 = vld [vmem:[#allocation4 + $0x14] sm:$0xf]
        %v639 = vld [vmem:[#allocation4 + $0x18] sm:$0xf]
        %v640 = vld [vmem:[#allocation4 + $0x1c] sm:$0xf]
        %v641 = vld [vmem:[#allocation4 + $0x20] sm:$0xf]
        %v642 = vld [vmem:[#allocation4 + $0x24] sm:$0xf]
        %v643 = vld [vmem:[#allocation4 + $0x28] sm:$0xf]
        %v644 = vld [vmem:[#allocation4 + $0x2c] sm:$0xf]
        %v645 = vld [vmem:[#allocation4 + $0x30] sm:$0xf]
        %v646 = vld [vmem:[#allocation4 + $0x34] sm:$0xf]
        %v647 = vld [vmem:[#allocation4 + $0x38] sm:$0xf]
        %v648 = vld [vmem:[#allocation4 + $0x3c] sm:$0xf]
        %v649 = vld [vmem:[#allocation4 + $0x40] sm:$0xf]
        %v650 = vld [vmem:[#allocation4 + $0x44] sm:$0xf]
        %v651 = vld [vmem:[#allocation4 + $0x48] sm:$0xf]
        %v652 = vld [vmem:[#allocation4 + $0x4c] sm:$0xf]
        %v653 = vld [vmem:[#allocation4 + $0x50] sm:$0xf]
        %v654 = vld [vmem:[#allocation4 + $0x54] sm:$0xf]
        %v655 = vld [vmem:[#allocation4 + $0x58] sm:$0xf]
        %v656 = vld [vmem:[#allocation4 + $0x5c] sm:$0xf]
        %v657 = vld [vmem:[#allocation4 + $0x60] sm:$0xf]
        %v658 = vld [vmem:[#allocation4 + $0x64] sm:$0xf]
        %v659 = vld [vmem:[#allocation4 + $0x68] sm:$0xf]
        %v660 = vld [vmem:[#allocation4 + $0x6c] sm:$0xf]
        %v661 = vld [vmem:[#allocation4 + $0x70] sm:$0xf]
        %v662 = vld [vmem:[#allocation4 + $0x74] sm:$0xf]
        %v663 = vld [vmem:[#allocation4 + $0x78] sm:$0xf]
        %v664 = vld [vmem:[#allocation4 + $0x7c] sm:$0xf]
        %v665 = vld [vmem:[#allocation4 + $0x80] sm:$0xf]
        %v666 = vld [vmem:[#allocation4 + $0x84] sm:$0xf]
        %v667 = vld [vmem:[#allocation4 + $0x88] sm:$0xf]
        %v668 = vld [vmem:[#allocation4 + $0x8c] sm:$0xf]
        %v669 = vld [vmem:[#allocation4 + $0x90] sm:$0xf]
        %v670 = vld [vmem:[#allocation4 + $0x94] sm:$0xf]
        %v671 = vld [vmem:[#allocation4 + $0x98] sm:$0xf]
        %v672 = vld [vmem:[#allocation4 + $0x9c] sm:$0xf]
        %v673 = vld [vmem:[#allocation4 + $0xa0] sm:$0xf]
        %v674 = vld [vmem:[#allocation4 + $0xa4] sm:$0xf]
        %v675 = vld [vmem:[#allocation4 + $0xa8] sm:$0xf]
        %v676 = vld [vmem:[#allocation4 + $0xac] sm:$0xf]
        %v677 = vld [vmem:[#allocation4 + $0xb0] sm:$0xf]
        %v678 = vld [vmem:[#allocation4 + $0xb4] sm:$0xf]
        %v679 = vld [vmem:[#allocation4 + $0xb8] sm:$0xf]
        %v680 = vld [vmem:[#allocation4 + $0xbc] sm:$0xf]
        %v681 = vld [vmem:[#allocation4 + $0xc0] sm:$0xf]
        %v682 = vld [vmem:[#allocation4 + $0xc4] sm:$0xf]
        %v683 = vld [vmem:[#allocation4 + $0xc8] sm:$0xf]
        %v684 = vld [vmem:[#allocation4 + $0xcc] sm:$0xf]
        %v685 = vld [vmem:[#allocation4 + $0xd0] sm:$0xf]
        %v686 = vld [vmem:[#allocation4 + $0xd4] sm:$0xf]
        %v687 = vld [vmem:[#allocation4 + $0xd8] sm:$0xf]
        %v688 = vld [vmem:[#allocation4 + $0xdc] sm:$0xf]
        %v689 = vld [vmem:[#allocation4 + $0xe0] sm:$0xf]
        %v690 = vld [vmem:[#allocation4 + $0xe4] sm:$0xf]
        %v691 = vld [vmem:[#allocation4 + $0xe8] sm:$0xf]
        %v692 = vld [vmem:[#allocation4 + $0xec] sm:$0xf]
        %v693 = vld [vmem:[#allocation4 + $0xf0] sm:$0xf]
        %v694 = vld [vmem:[#allocation4 + $0xf4] sm:$0xf]
        %v695 = vld [vmem:[#allocation4 + $0xf8] sm:$0xf]
        %v696 = vld [vmem:[#allocation4 + $0xfc] sm:$0xf]
        %v697 = vld [vmem:[#allocation4 + $0x100] sm:$0xf]
        %v698 = vld [vmem:[#allocation4 + $0x104] sm:$0xf]
        %v699 = vld [vmem:[#allocation4 + $0x108] sm:$0xf]
        %v700 = vld [vmem:[#allocation4 + $0x10c] sm:$0xf]
        %v701 = vld [vmem:[#allocation4 + $0x110] sm:$0xf]
        %v702 = vld [vmem:[#allocation4 + $0x114] sm:$0xf]
        %v703 = vld [vmem:[#allocation4 + $0x118] sm:$0xf]
        %v704 = vld [vmem:[#allocation4 + $0x11c] sm:$0xf]
        %v705 = vld [vmem:[#allocation4 + $0x120] sm:$0xf]
        %v706 = vld [vmem:[#allocation4 + $0x124] sm:$0xf]
        %v707 = vld [vmem:[#allocation4 + $0x128] sm:$0xf]
        %v708 = vld [vmem:[#allocation4 + $0x12c] sm:$0xf]
        %v709 = vld [vmem:[#allocation4 + $0x130] sm:$0xf]
        %v710 = vld [vmem:[#allocation4 + $0x134] sm:$0xf]
        %v711 = vld [vmem:[#allocation4 + $0x138] sm:$0xf]
        %v712 = vld [vmem:[#allocation4 + $0x13c] sm:$0xf]
        %v713 = vld [vmem:[#allocation4 + $0x140] sm:$0xf]
        %v714 = vld [vmem:[#allocation4 + $0x144] sm:$0xf]
        %v715 = vld [vmem:[#allocation4 + $0x148] sm:$0xf]
        %v716 = vld [vmem:[#allocation4 + $0x14c] sm:$0xf]
        %v717 = vld [vmem:[#allocation4 + $0x150] sm:$0xf]
        %v718 = vld [vmem:[#allocation4 + $0x154] sm:$0xf]
        %v719 = vld [vmem:[#allocation4 + $0x158] sm:$0xf]
        %v720 = vld [vmem:[#allocation4 + $0x15c] sm:$0xf]
        %v721 = vld [vmem:[#allocation4 + $0x160] sm:$0xf]
        %v722 = vld [vmem:[#allocation4 + $0x164] sm:$0xf]
        %v723 = vld [vmem:[#allocation4 + $0x168] sm:$0xf]
        %v724 = vld [vmem:[#allocation4 + $0x16c] sm:$0xf]
        %v725 = vld [vmem:[#allocation4 + $0x170] sm:$0xf]
        %v726 = vld [vmem:[#allocation4 + $0x174] sm:$0xf]
        %v727 = vld [vmem:[#allocation4 + $0x178] sm:$0xf]
        %v728 = vld [vmem:[#allocation4 + $0x17c] sm:$0xf]
        %v729 = vld [vmem:[#allocation4 + $0x180] sm:$0xf]
        %v730 = vld [vmem:[#allocation4 + $0x184] sm:$0xf]
        %v731 = vld [vmem:[#allocation4 + $0x188] sm:$0xf]
        %v732 = vld [vmem:[#allocation4 + $0x18c] sm:$0xf]
        %v733 = vld [vmem:[#allocation4 + $0x190] sm:$0xf]
        %v734 = vld [vmem:[#allocation4 + $0x194] sm:$0xf]
        %v735 = vld [vmem:[#allocation4 + $0x198] sm:$0xf]
        %v736 = vld [vmem:[#allocation4 + $0x19c] sm:$0xf]
        %v737 = vld [vmem:[#allocation4 + $0x1a0] sm:$0xf]
        %v738 = vld [vmem:[#allocation4 + $0x1a4] sm:$0xf]
        %v739 = vld [vmem:[#allocation4 + $0x1a8] sm:$0xf]
        %v740 = vld [vmem:[#allocation4 + $0x1ac] sm:$0xf]
        %v741 = vld [vmem:[#allocation4 + $0x1b0] sm:$0xf]
        %v742 = vld [vmem:[#allocation4 + $0x1b4] sm:$0xf]
        %v743 = vld [vmem:[#allocation4 + $0x1b8] sm:$0xf]
        %v744 = vld [vmem:[#allocation4 + $0x1bc] sm:$0xf]
        %v745 = vld [vmem:[#allocation4 + $0x1c0] sm:$0xf]
        %v746 = vld [vmem:[#allocation4 + $0x1c4] sm:$0xf]
        %v747 = vld [vmem:[#allocation4 + $0x1c8] sm:$0xf]
        %v748 = vld [vmem:[#allocation4 + $0x1cc] sm:$0xf]
        %v749 = vld [vmem:[#allocation4 + $0x1d0] sm:$0xf]
        %v750 = vld [vmem:[#allocation4 + $0x1d4] sm:$0xf]
        %v751 = vld [vmem:[#allocation4 + $0x1d8] sm:$0xf]
        %v752 = vld [vmem:[#allocation4 + $0x1dc] sm:$0xf]
        %v753 = vld [vmem:[#allocation4 + $0x1e0] sm:$0xf]
        %v754 = vld [vmem:[#allocation4 + $0x1e4] sm:$0xf]
        %v755 = vld [vmem:[#allocation4 + $0x1e8] sm:$0xf]
        %v756 = vld [vmem:[#allocation4 + $0x1ec] sm:$0xf]
        %v757 = vld [vmem:[#allocation4 + $0x1f0] sm:$0xf]
        %v758 = vld [vmem:[#allocation4 + $0x1f4] sm:$0xf]
        %v759 = vld [vmem:[#allocation4 + $0x1f8] sm:$0xf]
        %v760 = vld [vmem:[#allocation4 + $0x1fc] sm:$0xf]
        %v761 = vld [vmem:[#allocation4 + $0x200] sm:$0xf]
        %v762 = vld [vmem:[#allocation4 + $0x204] sm:$0xf]
        %v763 = vld [vmem:[#allocation4 + $0x208] sm:$0xf]
        %v764 = vld [vmem:[#allocation4 + $0x20c] sm:$0xf]
        %v765 = vld [vmem:[#allocation4 + $0x210] sm:$0xf]
        %v766 = vld [vmem:[#allocation4 + $0x214] sm:$0xf]
        %v767 = vld [vmem:[#allocation4 + $0x218] sm:$0xf]
        %v768 = vld [vmem:[#allocation4 + $0x21c] sm:$0xf]
        %v769 = vld [vmem:[#allocation4 + $0x220] sm:$0xf]
        %v770 = vld [vmem:[#allocation4 + $0x224] sm:$0xf]
        %v771 = vld [vmem:[#allocation4 + $0x228] sm:$0xf]
        %v772 = vld [vmem:[#allocation4 + $0x22c] sm:$0xf]
        %v773 = vld [vmem:[#allocation4 + $0x230] sm:$0xf]
        %v774 = vld [vmem:[#allocation4 + $0x234] sm:$0xf]
        %v775 = vld [vmem:[#allocation4 + $0x238] sm:$0xf]
        %v776 = vld [vmem:[#allocation4 + $0x23c] sm:$0xf]
        %v921 = vunpack.c.l.b16 %v633
        %v922 = vunpack.c.l.b16 %v634
        %v923 = vunpack.c.l.b16 %v635
        %v924 = vunpack.c.l.b16 %v636
        %v925 = vunpack.c.l.b16 %v637
        %v926 = vunpack.c.l.b16 %v638
        %v927 = vunpack.c.l.b16 %v639
        %v928 = vunpack.c.l.b16 %v640
        %v929 = vunpack.c.l.b16 %v641
        %v930 = vunpack.c.l.b16 %v642
        %v931 = vunpack.c.l.b16 %v643
        %v932 = vunpack.c.l.b16 %v644
        %v933 = vunpack.c.l.b16 %v645
        %v934 = vunpack.c.l.b16 %v646
        %v935 = vunpack.c.l.b16 %v647
        %v936 = vunpack.c.l.b16 %v648
        %v937 = vunpack.c.l.b16 %v649
        %v938 = vunpack.c.l.b16 %v650
        %v939 = vunpack.c.l.b16 %v651
        %v940 = vunpack.c.l.b16 %v652
        %v941 = vunpack.c.l.b16 %v653
        %v942 = vunpack.c.l.b16 %v654
        %v943 = vunpack.c.l.b16 %v655
        %v944 = vunpack.c.l.b16 %v656
        %v945 = vunpack.c.l.b16 %v657
        %v946 = vunpack.c.l.b16 %v658
        %v947 = vunpack.c.l.b16 %v659
        %v948 = vunpack.c.l.b16 %v660
        %v949 = vunpack.c.l.b16 %v661
        %v950 = vunpack.c.l.b16 %v662
        %v951 = vunpack.c.l.b16 %v663
        %v952 = vunpack.c.l.b16 %v664
        %v953 = vunpack.c.l.b16 %v665
        %v954 = vunpack.c.l.b16 %v666
        %v955 = vunpack.c.l.b16 %v667
        %v956 = vunpack.c.l.b16 %v668
        %v957 = vunpack.c.l.b16 %v669
        %v958 = vunpack.c.l.b16 %v670
        %v959 = vunpack.c.l.b16 %v671
        %v960 = vunpack.c.l.b16 %v672
        %v961 = vunpack.c.l.b16 %v673
        %v962 = vunpack.c.l.b16 %v674
        %v963 = vunpack.c.l.b16 %v675
        %v964 = vunpack.c.l.b16 %v676
        %v965 = vunpack.c.l.b16 %v677
        %v966 = vunpack.c.l.b16 %v678
        %v967 = vunpack.c.l.b16 %v679
        %v968 = vunpack.c.l.b16 %v680
        %v969 = vunpack.c.l.b16 %v681
        %v970 = vunpack.c.l.b16 %v682
        %v971 = vunpack.c.l.b16 %v683
        %v972 = vunpack.c.l.b16 %v684
        %v973 = vunpack.c.l.b16 %v685
        %v974 = vunpack.c.l.b16 %v686
        %v975 = vunpack.c.l.b16 %v687
        %v976 = vunpack.c.l.b16 %v688
        %v977 = vunpack.c.l.b16 %v689
        %v978 = vunpack.c.l.b16 %v690
        %v979 = vunpack.c.l.b16 %v691
        %v980 = vunpack.c.l.b16 %v692
        %v981 = vunpack.c.l.b16 %v693
        %v982 = vunpack.c.l.b16 %v694
        %v983 = vunpack.c.l.b16 %v695
        %v984 = vunpack.c.l.b16 %v696
        %v985 = vunpack.c.l.b16 %v697
        %v986 = vunpack.c.l.b16 %v698
        %v987 = vunpack.c.l.b16 %v699
        %v988 = vunpack.c.l.b16 %v700
        %v989 = vunpack.c.l.b16 %v701
        %v990 = vunpack.c.l.b16 %v702
        %v991 = vunpack.c.l.b16 %v703
        %v992 = vunpack.c.l.b16 %v704
        %v993 = vunpack.c.l.b16 %v705
        %v994 = vunpack.c.l.b16 %v706
        %v995 = vunpack.c.l.b16 %v707
        %v996 = vunpack.c.l.b16 %v708
        %v997 = vunpack.c.l.b16 %v709
        %v998 = vunpack.c.l.b16 %v710
        %v999 = vunpack.c.l.b16 %v711
        %v1000 = vunpack.c.l.b16 %v712
        %v1001 = vunpack.c.l.b16 %v713
        %v1002 = vunpack.c.l.b16 %v714
        %v1003 = vunpack.c.l.b16 %v715
        %v1004 = vunpack.c.l.b16 %v716
        %v1005 = vunpack.c.l.b16 %v717
        %v1006 = vunpack.c.l.b16 %v718
        %v1007 = vunpack.c.l.b16 %v719
        %v1008 = vunpack.c.l.b16 %v720
        %v1009 = vunpack.c.l.b16 %v721
        %v1010 = vunpack.c.l.b16 %v722
        %v1011 = vunpack.c.l.b16 %v723
        %v1012 = vunpack.c.l.b16 %v724
        %v1013 = vunpack.c.l.b16 %v725
        %v1014 = vunpack.c.l.b16 %v726
        %v1015 = vunpack.c.l.b16 %v727
        %v1016 = vunpack.c.l.b16 %v728
        %v1017 = vunpack.c.l.b16 %v729
        %v1018 = vunpack.c.l.b16 %v730
        %v1019 = vunpack.c.l.b16 %v731
        %v1020 = vunpack.c.l.b16 %v732
        %v1021 = vunpack.c.l.b16 %v733
        %v1022 = vunpack.c.l.b16 %v734
        %v1023 = vunpack.c.l.b16 %v735
        %v1024 = vunpack.c.l.b16 %v736
        %v1025 = vunpack.c.l.b16 %v737
        %v1026 = vunpack.c.l.b16 %v738
        %v1027 = vunpack.c.l.b16 %v739
        %v1028 = vunpack.c.l.b16 %v740
        %v1029 = vunpack.c.l.b16 %v741
        %v1030 = vunpack.c.l.b16 %v742
        %v1031 = vunpack.c.l.b16 %v743
        %v1032 = vunpack.c.l.b16 %v744
        %v1033 = vunpack.c.l.b16 %v745
        %v1034 = vunpack.c.l.b16 %v746
        %v1035 = vunpack.c.l.b16 %v747
        %v1036 = vunpack.c.l.b16 %v748
        %v1037 = vunpack.c.l.b16 %v749
        %v1038 = vunpack.c.l.b16 %v750
        %v1039 = vunpack.c.l.b16 %v751
        %v1040 = vunpack.c.l.b16 %v752
        %v1041 = vunpack.c.l.b16 %v753
        %v1042 = vunpack.c.l.b16 %v754
        %v1043 = vunpack.c.l.b16 %v755
        %v1044 = vunpack.c.l.b16 %v756
        %v1045 = vunpack.c.l.b16 %v757
        %v1046 = vunpack.c.l.b16 %v758
        %v1047 = vunpack.c.l.b16 %v759
        %v1048 = vunpack.c.l.b16 %v760
        %v1049 = vunpack.c.l.b16 %v761
        %v1050 = vunpack.c.l.b16 %v762
        %v1051 = vunpack.c.l.b16 %v763
        %v1052 = vunpack.c.l.b16 %v764
        %v1053 = vunpack.c.l.b16 %v765
        %v1054 = vunpack.c.l.b16 %v766
        %v1055 = vunpack.c.l.b16 %v767
        %v1056 = vunpack.c.l.b16 %v768
        %v1057 = vunpack.c.l.b16 %v769
        %v1058 = vunpack.c.l.b16 %v770
        %v1059 = vunpack.c.l.b16 %v771
        %v1060 = vunpack.c.l.b16 %v772
        %v1061 = vunpack.c.l.b16 %v773
        %v1062 = vunpack.c.l.b16 %v774
        %v1063 = vunpack.c.l.b16 %v775
        %v1064 = vunpack.c.l.b16 %v776
        %v1065 = vpack.c.b16 %v922, %v921
        %v1066 = vpack.c.b16 %v924, %v923
        %v1067 = vpack.c.b16 %v926, %v925
        %v1068 = vpack.c.b16 %v928, %v927
        %v1069 = vpack.c.b16 %v930, %v929
        %v1070 = vpack.c.b16 %v932, %v931
        %v1071 = vpack.c.b16 %v934, %v933
        %v1072 = vpack.c.b16 %v936, %v935
        %v1073 = vpack.c.b16 %v938, %v937
        %v1074 = vpack.c.b16 %v940, %v939
        %v1075 = vpack.c.b16 %v942, %v941
        %v1076 = vpack.c.b16 %v944, %v943
        %v1077 = vpack.c.b16 %v946, %v945
        %v1078 = vpack.c.b16 %v948, %v947
        %v1079 = vpack.c.b16 %v950, %v949
        %v1080 = vpack.c.b16 %v952, %v951
        %v1081 = vpack.c.b16 %v954, %v953
        %v1082 = vpack.c.b16 %v956, %v955
        %v1083 = vpack.c.b16 %v958, %v957
        %v1084 = vpack.c.b16 %v960, %v959
        %v1085 = vpack.c.b16 %v962, %v961
        %v1086 = vpack.c.b16 %v964, %v963
        %v1087 = vpack.c.b16 %v966, %v965
        %v1088 = vpack.c.b16 %v968, %v967
        %v1089 = vpack.c.b16 %v970, %v969
        %v1090 = vpack.c.b16 %v972, %v971
        %v1091 = vpack.c.b16 %v974, %v973
        %v1092 = vpack.c.b16 %v976, %v975
        %v1093 = vpack.c.b16 %v978, %v977
        %v1094 = vpack.c.b16 %v980, %v979
        %v1095 = vpack.c.b16 %v982, %v981
        %v1096 = vpack.c.b16 %v984, %v983
        %v1097 = vpack.c.b16 %v986, %v985
        %v1098 = vpack.c.b16 %v988, %v987
        %v1099 = vpack.c.b16 %v990, %v989
        %v1100 = vpack.c.b16 %v992, %v991
        %v1101 = vpack.c.b16 %v994, %v993
        %v1102 = vpack.c.b16 %v996, %v995
        %v1103 = vpack.c.b16 %v998, %v997
        %v1104 = vpack.c.b16 %v1000, %v999
        %v1105 = vpack.c.b16 %v1002, %v1001
        %v1106 = vpack.c.b16 %v1004, %v1003
        %v1107 = vpack.c.b16 %v1006, %v1005
        %v1108 = vpack.c.b16 %v1008, %v1007
        %v1109 = vpack.c.b16 %v1010, %v1009
        %v1110 = vpack.c.b16 %v1012, %v1011
        %v1111 = vpack.c.b16 %v1014, %v1013
        %v1112 = vpack.c.b16 %v1016, %v1015
        %v1113 = vpack.c.b16 %v1018, %v1017
        %v1114 = vpack.c.b16 %v1020, %v1019
        %v1115 = vpack.c.b16 %v1022, %v1021
        %v1116 = vpack.c.b16 %v1024, %v1023
        %v1117 = vpack.c.b16 %v1026, %v1025
        %v1118 = vpack.c.b16 %v1028, %v1027
        %v1119 = vpack.c.b16 %v1030, %v1029
        %v1120 = vpack.c.b16 %v1032, %v1031
        %v1121 = vpack.c.b16 %v1034, %v1033
        %v1122 = vpack.c.b16 %v1036, %v1035
        %v1123 = vpack.c.b16 %v1038, %v1037
        %v1124 = vpack.c.b16 %v1040, %v1039
        %v1125 = vpack.c.b16 %v1042, %v1041
        %v1126 = vpack.c.b16 %v1044, %v1043
        %v1127 = vpack.c.b16 %v1046, %v1045
        %v1128 = vpack.c.b16 %v1048, %v1047
        %v1129 = vpack.c.b16 %v1050, %v1049
        %v1130 = vpack.c.b16 %v1052, %v1051
        %v1131 = vpack.c.b16 %v1054, %v1053
        %v1132 = vpack.c.b16 %v1056, %v1055
        %v1133 = vpack.c.b16 %v1058, %v1057
        %v1134 = vpack.c.b16 %v1060, %v1059
        %v1135 = vpack.c.b16 %v1062, %v1061
        %v1136 = vpack.c.b16 %v1064, %v1063
        %1209 = vmatprep.subr.bf16.mxu0 0
        %1210 = vmatpush1.bf16.msra.mxu0 %v1065
        %1211 = vmatprep.subr.bf16.mxu0 0
        %1212 = vmatpush1.bf16.msra.mxu0 %v1066
        %1213 = vmatprep.subr.bf16.mxu0 0
        %1214 = vmatpush1.bf16.msra.mxu0 %v1067
        %1215 = vmatprep.subr.bf16.mxu0 0
        %1216 = vmatpush1.bf16.msra.mxu0 %v1068
        %1217 = vmatprep.subr.bf16.mxu0 0
        %1218 = vmatpush1.bf16.msra.mxu0 %v1069
        %1219 = vmatprep.subr.bf16.mxu0 0
        %1220 = vmatpush1.bf16.msra.mxu0 %v1070
        %1221 = vmatprep.subr.bf16.mxu0 0
        %1222 = vmatpush1.bf16.msra.mxu0 %v1071
        %1223 = vmatprep.subr.bf16.mxu0 0
        %1224 = vmatpush1.bf16.msra.mxu0 %v1072
        %1225 = vmatprep.subr.bf16.mxu0 0
        %1226 = vmatpush1.bf16.msra.mxu0 %v1073
        %1227 = vmatprep.subr.bf16.mxu0 0
        %1228 = vmatpush1.bf16.msra.mxu0 %v1074
        %1229 = vmatprep.subr.bf16.mxu0 0
        %1230 = vmatpush1.bf16.msra.mxu0 %v1075
        %1231 = vmatprep.subr.bf16.mxu0 0
        %1232 = vmatpush1.bf16.msra.mxu0 %v1076
        %1233 = vmatprep.subr.bf16.mxu0 0
        %1234 = vmatpush1.bf16.msra.mxu0 %v1077
        %1235 = vmatprep.subr.bf16.mxu0 0
        %1236 = vmatpush1.bf16.msra.mxu0 %v1078
        %1237 = vmatprep.subr.bf16.mxu0 0
        %1238 = vmatpush1.bf16.msra.mxu0 %v1079
        %1239 = vmatprep.subr.bf16.mxu0 0
        %1240 = vmatpush1.bf16.msra.mxu0 %v1080
        %1241 = vmatprep.mubr.bf16.mxu0 %v598
        %1242 = vmatmul.mubr.bf16.gmra.mrb[0].mxu0 %v597
        %v1243 = vpop.f32.mrb[0].mxu0
        %v1244 = vadd.f32 0.0, %v1243
        %v1245 = vpop.f32.mrb[0].mxu0
        %v1246 = vpop.f32.mrb[0].mxu0
        %v1247 = vadd.f32 0.0, %v1246
        %v1248 = vpop.f32.mrb[0].mxu0
        %1249 = vmatprep.mubr.bf16.mxu0 %v607
        %1250 = vmatmul.mubr.bf16.gmra.mrb[0].mxu0 %v606
        %v1251 = vpop.f32.mrb[0].mxu0
        %v1252 = vadd.f32 0.0, %v1251
        %v1253 = vpop.f32.mrb[0].mxu0
        %v1254 = vpop.f32.mrb[0].mxu0
        %v1255 = vadd.f32 0.0, %v1254
        %v1256 = vpop.f32.mrb[0].mxu0
        %1257 = vmatprep.mubr.bf16.mxu0 %v616
        %1258 = vmatmul.mubr.bf16.gmra.mrb[0].mxu0 %v615
        %v1259 = vpop.f32.mrb[0].mxu0
        %v1260 = vadd.f32 0.0, %v1259
        %v1261 = vpop.f32.mrb[0].mxu0
        %v1262 = vpop.f32.mrb[0].mxu0
        %v1263 = vadd.f32 0.0, %v1262
        %v1264 = vpop.f32.mrb[0].mxu0
        %1265 = vmatprep.mubr.bf16.mxu0 %v625
        %1266 = vmatmul.mubr.bf16.gmra.mrb[0].mxu0 %v624
        %v1267 = vpop.f32.mrb[0].mxu0
        %v1268 = vadd.f32 0.0, %v1267
        %v1269 = vpop.f32.mrb[0].mxu0
        %v1270 = vpop.f32.mrb[0].mxu0
        %v1271 = vadd.f32 0.0, %v1270
        %v1272 = vpop.f32.mrb[0].mxu0
        %1273 = vdwg.mxu0
        %1274 = vmatprep.subr.bf16.mxu0 0
        %1275 = vmatpush1.bf16.msra.mxu0 %v1081
        %1276 = vmatprep.subr.bf16.mxu0 0
        %1277 = vmatpush1.bf16.msra.mxu0 %v1082
        %1278 = vmatprep.subr.bf16.mxu0 0
        %1279 = vmatpush1.bf16.msra.mxu0 %v1083
        %1280 = vmatprep.subr.bf16.mxu0 0
        %1281 = vmatpush1.bf16.msra.mxu0 %v1084
        %1282 = vmatprep.subr.bf16.mxu0 0
        %1283 = vmatpush1.bf16.msra.mxu0 %v1085
        %1284 = vmatprep.subr.bf16.mxu0 0
        %1285 = vmatpush1.bf16.msra.mxu0 %v1086
        %1286 = vmatprep.subr.bf16.mxu0 0
        %1287 = vmatpush1.bf16.msra.mxu0 %v1087
        %1288 = vmatprep.subr.bf16.mxu0 0
        %1289 = vmatpush1.bf16.msra.mxu0 %v1088
        %1290 = vmatprep.subr.bf16.mxu0 0
        %1291 = vmatpush1.bf16.msra.mxu0 %v1089
        %1292 = vmatprep.subr.bf16.mxu0 0
        %1293 = vmatpush1.bf16.msra.mxu0 %v1090
        %1294 = vmatprep.subr.bf16.mxu0 0
        %1295 = vmatpush1.bf16.msra.mxu0 %v1091
        %1296 = vmatprep.subr.bf16.mxu0 0
        %1297 = vmatpush1.bf16.msra.mxu0 %v1092
        %1298 = vmatprep.subr.bf16.mxu0 0
        %1299 = vmatpush1.bf16.msra.mxu0 %v1093
        %1300 = vmatprep.subr.bf16.mxu0 0
        %1301 = vmatpush1.bf16.msra.mxu0 %v1094
        %1302 = vmatprep.subr.bf16.mxu0 0
        %1303 = vmatpush1.bf16.msra.mxu0 %v1095
        %1304 = vmatprep.subr.bf16.mxu0 0
        %1305 = vmatpush1.bf16.msra.mxu0 %v1096
        %1306 = vmatprep.mubr.bf16.mxu0 %v600
        %1307 = vmatmul.mubr.bf16.gmra.mrb[0].mxu0 %v599
        %v1308 = vpop.f32.mrb[0].mxu0
        %v1309 = vadd.f32 %v1244, %v1308
        %v1310 = vpop.f32.mrb[0].mxu0
        %v1311 = vpop.f32.mrb[0].mxu0
        %v1312 = vadd.f32 %v1247, %v1311
        %v1313 = vpop.f32.mrb[0].mxu0
        %1314 = vmatprep.mubr.bf16.mxu0 %v609
        %1315 = vmatmul.mubr.bf16.gmra.mrb[0].mxu0 %v608
        %v1316 = vpop.f32.mrb[0].mxu0
        %v1317 = vadd.f32 %v1252, %v1316
        %v1318 = vpop.f32.mrb[0].mxu0
        %v1319 = vpop.f32.mrb[0].mxu0
        %v1320 = vadd.f32 %v1255, %v1319
        %v1321 = vpop.f32.mrb[0].mxu0
        %1322 = vmatprep.mubr.bf16.mxu0 %v618
        %1323 = vmatmul.mubr.bf16.gmra.mrb[0].mxu0 %v617
        %v1324 = vpop.f32.mrb[0].mxu0
        %v1325 = vadd.f32 %v1260, %v1324
        %v1326 = vpop.f32.mrb[0].mxu0
        %v1327 = vpop.f32.mrb[0].mxu0
        %v1328 = vadd.f32 %v1263, %v1327
        %v1329 = vpop.f32.mrb[0].mxu0
        %1330 = vmatprep.mubr.bf16.mxu0 %v627
        %1331 = vmatmul.mubr.bf16.gmra.mrb[0].mxu0 %v626
        %v1332 = vpop.f32.mrb[0].mxu0
        %v1333 = vadd.f32 %v1268, %v1332
        %v1334 = vpop.f32.mrb[0].mxu0
        %v1335 = vpop.f32.mrb[0].mxu0
        %v1336 = vadd.f32 %v1271, %v1335
        %v1337 = vpop.f32.mrb[0].mxu0
        %1338 = vdwg.mxu0
        %1339 = vmatprep.subr.bf16.mxu0 0
        %1340 = vmatpush1.bf16.msra.mxu0 %v1097
        %1341 = vmatprep.subr.bf16.mxu0 0
        %1342 = vmatpush1.bf16.msra.mxu0 %v1098
        %1343 = vmatprep.subr.bf16.mxu0 0
        %1344 = vmatpush1.bf16.msra.mxu0 %v1099
        %1345 = vmatprep.subr.bf16.mxu0 0
        %1346 = vmatpush1.bf16.msra.mxu0 %v1100
        %1347 = vmatprep.subr.bf16.mxu0 0
        %1348 = vmatpush1.bf16.msra.mxu0 %v1101
        %1349 = vmatprep.subr.bf16.mxu0 0
        %1350 = vmatpush1.bf16.msra.mxu0 %v1102
        %1351 = vmatprep.subr.bf16.mxu0 0
        %1352 = vmatpush1.bf16.msra.mxu0 %v1103
        %1353 = vmatprep.subr.bf16.mxu0 0
        %1354 = vmatpush1.bf16.msra.mxu0 %v1104
        %1355 = vmatprep.subr.bf16.mxu0 0
        %1356 = vmatpush1.bf16.msra.mxu0 %v1105
        %1357 = vmatprep.subr.bf16.mxu0 0
        %1358 = vmatpush1.bf16.msra.mxu0 %v1106
        %1359 = vmatprep.subr.bf16.mxu0 0
        %1360 = vmatpush1.bf16.msra.mxu0 %v1107
        %1361 = vmatprep.subr.bf16.mxu0 0
        %1362 = vmatpush1.bf16.msra.mxu0 %v1108
        %1363 = vmatprep.subr.bf16.mxu0 0
        %1364 = vmatpush1.bf16.msra.mxu0 %v1109
        %1365 = vmatprep.subr.bf16.mxu0 0
        %1366 = vmatpush1.bf16.msra.mxu0 %v1110
        %1367 = vmatprep.subr.bf16.mxu0 0
        %1368 = vmatpush1.bf16.msra.mxu0 %v1111
        %1369 = vmatprep.subr.bf16.mxu0 0
        %1370 = vmatpush1.bf16.msra.mxu0 %v1112
        %1371 = vmatprep.mubr.bf16.mxu0 %v602
        %1372 = vmatmul.mubr.bf16.gmra.mrb[0].mxu0 %v601
        %v1373 = vpop.f32.mrb[0].mxu0
        %v1374 = vadd.f32 %v1309, %v1373
        %v1375 = vpop.f32.mrb[0].mxu0
        %v1376 = vpop.f32.mrb[0].mxu0
        %v1377 = vadd.f32 %v1312, %v1376
        %v1378 = vpop.f32.mrb[0].mxu0
        %1379 = vmatprep.mubr.bf16.mxu0 %v611
        %1380 = vmatmul.mubr.bf16.gmra.mrb[0].mxu0 %v610
        %v1381 = vpop.f32.mrb[0].mxu0
        %v1382 = vadd.f32 %v1317, %v1381
        %v1383 = vpop.f32.mrb[0].mxu0
        %v1384 = vpop.f32.mrb[0].mxu0
        %v1385 = vadd.f32 %v1320, %v1384
        %v1386 = vpop.f32.mrb[0].mxu0
        %1387 = vmatprep.mubr.bf16.mxu0 %v620
        %1388 = vmatmul.mubr.bf16.gmra.mrb[0].mxu0 %v619
        %v1389 = vpop.f32.mrb[0].mxu0
        %v1390 = vadd.f32 %v1325, %v1389
        %v1391 = vpop.f32.mrb[0].mxu0
        %v1392 = vpop.f32.mrb[0].mxu0
        %v1393 = vadd.f32 %v1328, %v1392
        %v1394 = vpop.f32.mrb[0].mxu0
        %1395 = vmatprep.mubr.bf16.mxu0 %v629
        %1396 = vmatmul.mubr.bf16.gmra.mrb[0].mxu0 %v628
        %v1397 = vpop.f32.mrb[0].mxu0
        %v1398 = vadd.f32 %v1333, %v1397
        %v1399 = vpop.f32.mrb[0].mxu0
        %v1400 = vpop.f32.mrb[0].mxu0
        %v1401 = vadd.f32 %v1336, %v1400
        %v1402 = vpop.f32.mrb[0].mxu0
        %1403 = vdwg.mxu0
        %1404 = vmatprep.subr.bf16.mxu0 0
        %1405 = vmatpush1.bf16.msra.mxu0 %v1113
        %1406 = vmatprep.subr.bf16.mxu0 0
        %1407 = vmatpush1.bf16.msra.mxu0 %v1114
        %1408 = vmatprep.subr.bf16.mxu0 0
        %1409 = vmatpush1.bf16.msra.mxu0 %v1115
        %1410 = vmatprep.subr.bf16.mxu0 0
        %1411 = vmatpush1.bf16.msra.mxu0 %v1116
        %1412 = vmatprep.subr.bf16.mxu0 0
        %1413 = vmatpush1.bf16.msra.mxu0 %v1117
        %1414 = vmatprep.subr.bf16.mxu0 0
        %1415 = vmatpush1.bf16.msra.mxu0 %v1118
        %1416 = vmatprep.subr.bf16.mxu0 0
        %1417 = vmatpush1.bf16.msra.mxu0 %v1119
        %1418 = vmatprep.subr.bf16.mxu0 0
        %1419 = vmatpush1.bf16.msra.mxu0 %v1120
        %1420 = vmatprep.subr.bf16.mxu0 0
        %1421 = vmatpush1.bf16.msra.mxu0 %v1121
        %1422 = vmatprep.subr.bf16.mxu0 0
        %1423 = vmatpush1.bf16.msra.mxu0 %v1122
        %1424 = vmatprep.subr.bf16.mxu0 0
        %1425 = vmatpush1.bf16.msra.mxu0 %v1123
        %1426 = vmatprep.subr.bf16.mxu0 0
        %1427 = vmatpush1.bf16.msra.mxu0 %v1124
        %1428 = vmatprep.subr.bf16.mxu0 0
        %1429 = vmatpush1.bf16.msra.mxu0 %v1125
        %1430 = vmatprep.subr.bf16.mxu0 0
        %1431 = vmatpush1.bf16.msra.mxu0 %v1126
        %1432 = vmatprep.subr.bf16.mxu0 0
        %1433 = vmatpush1.bf16.msra.mxu0 %v1127
        %1434 = vmatprep.subr.bf16.mxu0 0
        %1435 = vmatpush1.bf16.msra.mxu0 %v1128
        %1436 = vmatprep.mubr.bf16.mxu0 %v604
        %1437 = vmatmul.mubr.bf16.gmra.mrb[0].mxu0 %v603
        %v1438 = vpop.f32.mrb[0].mxu0
        %v1439 = vadd.f32 %v1374, %v1438
        %v1440 = vpop.f32.mrb[0].mxu0
        %v1441 = vpop.f32.mrb[0].mxu0
        %v1442 = vadd.f32 %v1377, %v1441
        %v1443 = vpop.f32.mrb[0].mxu0
        %1444 = vmatprep.mubr.bf16.mxu0 %v613
        %1445 = vmatmul.mubr.bf16.gmra.mrb[0].mxu0 %v612
        %v1446 = vpop.f32.mrb[0].mxu0
        %v1447 = vadd.f32 %v1382, %v1446
        %v1448 = vpop.f32.mrb[0].mxu0
        %v1449 = vpop.f32.mrb[0].mxu0
        %v1450 = vadd.f32 %v1385, %v1449
        %v1451 = vpop.f32.mrb[0].mxu0
        %1452 = vmatprep.mubr.bf16.mxu0 %v622
        %1453 = vmatmul.mubr.bf16.gmra.mrb[0].mxu0 %v621
        %v1454 = vpop.f32.mrb[0].mxu0
        %v1455 = vadd.f32 %v1390, %v1454
        %v1456 = vpop.f32.mrb[0].mxu0
        %v1457 = vpop.f32.mrb[0].mxu0
        %v1458 = vadd.f32 %v1393, %v1457
        %v1459 = vpop.f32.mrb[0].mxu0
        %1460 = vmatprep.mubr.bf16.mxu0 %v631
        %1461 = vmatmul.mubr.bf16.gmra.mrb[0].mxu0 %v630
        %v1462 = vpop.f32.mrb[0].mxu0
        %v1463 = vadd.f32 %v1398, %v1462
        %v1464 = vpop.f32.mrb[0].mxu0
        %v1465 = vpop.f32.mrb[0].mxu0
        %v1466 = vadd.f32 %v1401, %v1465
        %v1467 = vpop.f32.mrb[0].mxu0
        %1468 = vdwg.mxu0
        %1469 = vmatprep.subr.bf16.mxu0 0
        %1470 = vmatpush1.bf16.msra.mxu0 %v1129
        %1471 = vmatprep.subr.bf16.mxu0 0
        %1472 = vmatpush1.bf16.msra.mxu0 %v1130
        %1473 = vmatprep.subr.bf16.mxu0 0
        %1474 = vmatpush1.bf16.msra.mxu0 %v1131
        %1475 = vmatprep.subr.bf16.mxu0 0
        %1476 = vmatpush1.bf16.msra.mxu0 %v1132
        %1477 = vmatprep.subr.bf16.mxu0 0
        %1478 = vmatpush1.bf16.msra.mxu0 %v1133
        %1479 = vmatprep.subr.bf16.mxu0 0
        %1480 = vmatpush1.bf16.msra.mxu0 %v1134
        %1481 = vmatprep.subr.bf16.mxu0 0
        %1482 = vmatpush1.bf16.msra.mxu0 %v1135
        %1483 = vmatprep.subr.bf16.mxu0 0
        %1484 = vmatpush1.bf16.msra.mxu0 %v1136
        %1485 = vmatprep.subr.bf16.mxu0 0
        %1486 = vmatpush1.bf16.msra.mxu0 0
        %1487 = vmatprep.subr.bf16.mxu0 0
        %1488 = vmatpush1.bf16.msra.mxu0 0
        %1489 = vmatprep.subr.bf16.mxu0 0
        %1490 = vmatpush1.bf16.msra.mxu0 0
        %1491 = vmatprep.subr.bf16.mxu0 0
        %1492 = vmatpush1.bf16.msra.mxu0 0
        %1493 = vmatprep.subr.bf16.mxu0 0
        %1494 = vmatpush1.bf16.msra.mxu0 0
        %1495 = vmatprep.subr.bf16.mxu0 0
        %1496 = vmatpush1.bf16.msra.mxu0 0
        %1497 = vmatprep.subr.bf16.mxu0 0
        %1498 = vmatpush1.bf16.msra.mxu0 0
        %1499 = vmatprep.subr.bf16.mxu0 0
        %1500 = vmatpush1.bf16.msra.mxu0 0
        %1501 = vmatprep.mubr.bf16.mxu0 0
        %1502 = vmatmul.mubr.bf16.gmra.mrb[0].mxu0 %v605
        %v1503 = vpop.f32.mrb[0].mxu0
        %v1504 = vadd.f32 %v1439, %v1503
        %v1505 = vpop.f32.mrb[0].mxu0
        %v1506 = vpop.f32.mrb[0].mxu0
        %v1507 = vadd.f32 %v1442, %v1506
        %v1508 = vpop.f32.mrb[0].mxu0
        %1509 = vmatprep.mubr.bf16.mxu0 0
        %1510 = vmatmul.mubr.bf16.gmra.mrb[0].mxu0 %v614
        %v1511 = vpop.f32.mrb[0].mxu0
        %v1512 = vadd.f32 %v1447, %v1511
        %v1513 = vpop.f32.mrb[0].mxu0
        %v1514 = vpop.f32.mrb[0].mxu0
        %v1515 = vadd.f32 %v1450, %v1514
        %v1516 = vpop.f32.mrb[0].mxu0
        %1517 = vmatprep.mubr.bf16.mxu0 0
        %1518 = vmatmul.mubr.bf16.gmra.mrb[0].mxu0 %v623
        %v1519 = vpop.f32.mrb[0].mxu0
        %v1520 = vadd.f32 %v1455, %v1519
        %v1521 = vpop.f32.mrb[0].mxu0
        %v1522 = vpop.f32.mrb[0].mxu0
        %v1523 = vadd.f32 %v1458, %v1522
        %v1524 = vpop.f32.mrb[0].mxu0
        %1525 = vmatprep.mubr.bf16.mxu0 0
        %1526 = vmatmul.mubr.bf16.gmra.mrb[0].mxu0 %v632
        %v1527 = vpop.f32.mrb[0].mxu0
        %v1528 = vadd.f32 %v1463, %v1527
        %v1529 = vpop.f32.mrb[0].mxu0
        %v1530 = vpop.f32.mrb[0].mxu0
        %v1531 = vadd.f32 %v1466, %v1530
        %v1532 = vpop.f32.mrb[0].mxu0
        %1533 = vdwg.mxu0
        %v1534 = vld [vmem:[%s2] sm:$0x1]
        %v1536 = vlaneseq
        %v1537 = vshrl.u32 %v1536, 7
        %v1538 = vsub.s32 0, %v1537
        %v1539 = vrot.slane %v1534, %v1538
        %v1541 = vmul.f32 %v1504, %v1539
        %v1542 = vmul.f32 %v1507, %v1539
        %v1543 = vmul.f32 %v1512, %v1539
        %v1544 = vmul.f32 %v1515, %v1539
        %v1545 = vmul.f32 %v1520, %v1539
        %v1546 = vmul.f32 %v1523, %v1539
        %v1547 = vmul.f32 %v1528, %v1539
        %v1548 = vmul.f32 %v1531, %v1539
        %v1549 = vld [vmem:[%s3] sm:$0x1]
        %v1551 = vlaneseq
        %v1552 = vshrl.u32 %v1551, 7
        %v1553 = vsub.s32 0, %v1552
        %v1554 = vrot.slane %v1549, %v1553
        %v1556 = vadd.f32 %v1541, %v1554
        %v1557 = vadd.f32 %v1542, %v1554
        %v1558 = vadd.f32 %v1543, %v1554
        %v1559 = vadd.f32 %v1544, %v1554
        %v1560 = vadd.f32 %v1545, %v1554
        %v1561 = vadd.f32 %v1546, %v1554
        %v1562 = vadd.f32 %v1547, %v1554
        %v1563 = vadd.f32 %v1548, %v1554
        %v1564 = vxor.u32 %v1556, 2147483648
        %v1565 = vxor.u32 %v1557, 2147483648
        %v1566 = vxor.u32 %v1558, 2147483648
        %v1567 = vxor.u32 %v1559, 2147483648
        %v1568 = vxor.u32 %v1560, 2147483648
        %v1569 = vxor.u32 %v1561, 2147483648
        %v1570 = vxor.u32 %v1562, 2147483648
        %v1571 = vxor.u32 %v1563, 2147483648
        %v1572 = vmul.f32 %v1564, 1.442695
        %v1573 = vpow.pop %v1572
        %v1574 = vmul.f32 %v1565, 1.442695
        %v1575 = vpow.pop %v1574
        %v1576 = vmul.f32 %v1566, 1.442695
        %v1577 = vpow.pop %v1576
        %v1578 = vmul.f32 %v1567, 1.442695
        %v1579 = vpow.pop %v1578
        %v1580 = vmul.f32 %v1568, 1.442695
        %v1581 = vpow.pop %v1580
        %v1582 = vmul.f32 %v1569, 1.442695
        %v1583 = vpow.pop %v1582
        %v1584 = vmul.f32 %v1570, 1.442695
        %v1585 = vpow.pop %v1584
        %v1586 = vmul.f32 %v1571, 1.442695
        %v1587 = vpow.pop %v1586
        %v1588 = vadd.f32 %v1573, 1.0
        %v1589 = vadd.f32 %v1575, 1.0
        %v1590 = vadd.f32 %v1577, 1.0
        %v1591 = vadd.f32 %v1579, 1.0
        %v1592 = vadd.f32 %v1581, 1.0
        %v1593 = vadd.f32 %v1583, 1.0
        %v1594 = vadd.f32 %v1585, 1.0
        %v1595 = vadd.f32 %v1587, 1.0
        %v1596 = vrcp.pop %v1588
        %v1597 = vmul.f32 1.0, %v1596
        %v1598 = vrcp.pop %v1589
        %v1599 = vmul.f32 1.0, %v1598
        %v1600 = vrcp.pop %v1590
        %v1601 = vmul.f32 1.0, %v1600
        %v1602 = vrcp.pop %v1591
        %v1603 = vmul.f32 1.0, %v1602
        %v1604 = vrcp.pop %v1592
        %v1605 = vmul.f32 1.0, %v1604
        %v1606 = vrcp.pop %v1593
        %v1607 = vmul.f32 1.0, %v1606
        %v1608 = vrcp.pop %v1594
        %v1609 = vmul.f32 1.0, %v1608
        %v1610 = vrcp.pop %v1595
        %v1611 = vmul.f32 1.0, %v1610
        %v1612 = vmul.f32 %v1556, %v1597
        %v1613 = vmul.f32 %v1557, %v1599
        %v1614 = vmul.f32 %v1558, %v1601
        %v1615 = vmul.f32 %v1559, %v1603
        %v1616 = vmul.f32 %v1560, %v1605
        %v1617 = vmul.f32 %v1561, %v1607
        %v1618 = vmul.f32 %v1562, %v1609
        %v1619 = vmul.f32 %v1563, %v1611
        %1620 = vst [vmem:[%s442 + $0x8] sm:$0xff] %v1612
        %1621 = vst [vmem:[%s442 + $0x20] sm:$0xff] %v1613
        %1622 = vst [vmem:[%s442 + $0x38] sm:$0xff] %v1614
        %1623 = vst [vmem:[%s442 + $0x50] sm:$0xff] %v1615
        %1624 = vst [vmem:[%s442 + $0x68] sm:$0xff] %v1616
        %1625 = vst [vmem:[%s442 + $0x80] sm:$0xff] %v1617
        %1626 = vst [vmem:[%s442 + $0x98] sm:$0xff] %v1618
        %1627 = vst [vmem:[%s442 + $0xb0] sm:$0xff] %v1619
        %v1628 = vld [vmem:[#allocation2 + $0x7] sm:$0xff]
        %v1629 = vld [vmem:[#allocation2 + $0x1f] sm:$0xff]
        %v1630 = vld [vmem:[#allocation2 + $0x37] sm:$0xff]
        %v1631 = vld [vmem:[#allocation2 + $0x4f] sm:$0xff]
        %v1632 = vld [vmem:[#allocation2 + $0x67] sm:$0xff]
        %v1633 = vld [vmem:[#allocation2 + $0x7f] sm:$0xff]
        %v1634 = vld [vmem:[#allocation2 + $0x97] sm:$0xff]
        %v1635 = vld [vmem:[#allocation2 + $0xaf] sm:$0xff]
        %v1636 = vpack.c.bf16 %v1629, %v1628
        %v1637 = vpack.c.bf16 %v1631, %v1630
        %v1638 = vpack.c.bf16 %v1633, %v1632
        %v1639 = vpack.c.bf16 %v1635, %v1634
        %1640 = vst [vmem:[#allocation3] sm:$0xff] %v1636
        %1641 = vst [vmem:[#allocation3 + $0x48] sm:$0xff] %v1637
        %1642 = vst [vmem:[#allocation3 + $0x90] sm:$0xff] %v1638
        %1643 = vst [vmem:[#allocation3 + $0xd8] sm:$0xff] %v1639
        %v1644 = vld [vmem:[#allocation2 + $0x8] sm:$0xff]
        %v1645 = vld [vmem:[#allocation2 + $0x20] sm:$0xff]
        %v1646 = vld [vmem:[#allocation2 + $0x38] sm:$0xff]
        %v1647 = vld [vmem:[#allocation2 + $0x50] sm:$0xff]
        %v1648 = vld [vmem:[#allocation2 + $0x68] sm:$0xff]
        %v1649 = vld [vmem:[#allocation2 + $0x80] sm:$0xff]
        %v1650 = vld [vmem:[#allocation2 + $0x98] sm:$0xff]
        %v1651 = vld [vmem:[#allocation2 + $0xb0] sm:$0xff]
        %v1652 = vpack.c.bf16 %v1645, %v1644
        %v1653 = vpack.c.bf16 %v1647, %v1646
        %v1654 = vpack.c.bf16 %v1649, %v1648
        %v1655 = vpack.c.bf16 %v1651, %v1650
        %1656 = vst [vmem:[#allocation3 + $0x8] sm:$0xff] %v1652
        %1657 = vst [vmem:[#allocation3 + $0x50] sm:$0xff] %v1653
        %1658 = vst [vmem:[#allocation3 + $0x98] sm:$0xff] %v1654
        %1659 = vst [vmem:[#allocation3 + $0xe0] sm:$0xff] %v1655
        %v1660 = vld [vmem:[#allocation2 + $0x9] sm:$0xff]
        %v1661 = vld [vmem:[#allocation2 + $0x21] sm:$0xff]
        %v1662 = vld [vmem:[#allocation2 + $0x39] sm:$0xff]
        %v1663 = vld [vmem:[#allocation2 + $0x51] sm:$0xff]
        %v1664 = vld [vmem:[#allocation2 + $0x69] sm:$0xff]
        %v1665 = vld [vmem:[#allocation2 + $0x81] sm:$0xff]
        %v1666 = vld [vmem:[#allocation2 + $0x99] sm:$0xff]
        %v1667 = vld [vmem:[#allocation2 + $0xb1] sm:$0xff]
        %v1668 = vpack.c.bf16 %v1661, %v1660
        %v1669 = vpack.c.bf16 %v1663, %v1662
        %v1670 = vpack.c.bf16 %v1665, %v1664
        %v1671 = vpack.c.bf16 %v1667, %v1666
        %1672 = vst [vmem:[#allocation3 + $0x10] sm:$0xff] %v1668
        %1673 = vst [vmem:[#allocation3 + $0x58] sm:$0xff] %v1669
        %1674 = vst [vmem:[#allocation3 + $0xa0] sm:$0xff] %v1670
        %1675 = vst [vmem:[#allocation3 + $0xe8] sm:$0xff] %v1671
        %v1676 = vld [vmem:[%s442 + $0x7] sm:$0xff]
        %v1677 = vld [vmem:[%s442 + $0x1f] sm:$0xff]
        %v1678 = vld [vmem:[%s442 + $0x37] sm:$0xff]
        %v1679 = vld [vmem:[%s442 + $0x4f] sm:$0xff]
        %v1680 = vld [vmem:[%s442 + $0x67] sm:$0xff]
        %v1681 = vld [vmem:[%s442 + $0x7f] sm:$0xff]
        %v1682 = vld [vmem:[%s442 + $0x97] sm:$0xff]
        %v1683 = vld [vmem:[%s442 + $0xaf] sm:$0xff]
        %v1684 = vpack.c.bf16 %v1677, %v1676
        %v1685 = vpack.c.bf16 %v1679, %v1678
        %v1686 = vpack.c.bf16 %v1681, %v1680
        %v1687 = vpack.c.bf16 %v1683, %v1682
        %1688 = vst [vmem:[#allocation3 + $0x18] sm:$0xff] %v1684
        %1689 = vst [vmem:[#allocation3 + $0x60] sm:$0xff] %v1685
        %1690 = vst [vmem:[#allocation3 + $0xa8] sm:$0xff] %v1686
        %1691 = vst [vmem:[#allocation3 + $0xf0] sm:$0xff] %v1687
        %v1692 = vld [vmem:[%s442 + $0x8] sm:$0xff]
        %v1693 = vld [vmem:[%s442 + $0x20] sm:$0xff]
        %v1694 = vld [vmem:[%s442 + $0x38] sm:$0xff]
        %v1695 = vld [vmem:[%s442 + $0x50] sm:$0xff]
        %v1696 = vld [vmem:[%s442 + $0x68] sm:$0xff]
        %v1697 = vld [vmem:[%s442 + $0x80] sm:$0xff]
        %v1698 = vld [vmem:[%s442 + $0x98] sm:$0xff]
        %v1699 = vld [vmem:[%s442 + $0xb0] sm:$0xff]
        %v1700 = vpack.c.bf16 %v1693, %v1692
        %v1701 = vpack.c.bf16 %v1695, %v1694
        %v1702 = vpack.c.bf16 %v1697, %v1696
        %v1703 = vpack.c.bf16 %v1699, %v1698
        %1704 = vst [vmem:[#allocation3 + $0x20] sm:$0xff] %v1700
        %1705 = vst [vmem:[#allocation3 + $0x68] sm:$0xff] %v1701
        %1706 = vst [vmem:[#allocation3 + $0xb0] sm:$0xff] %v1702
        %1707 = vst [vmem:[#allocation3 + $0xf8] sm:$0xff] %v1703
        %v1708 = vld [vmem:[%s442 + $0x9] sm:$0xff]
        %v1709 = vld [vmem:[%s442 + $0x21] sm:$0xff]
        %v1710 = vld [vmem:[%s442 + $0x39] sm:$0xff]
        %v1711 = vld [vmem:[%s442 + $0x51] sm:$0xff]
        %v1712 = vld [vmem:[%s442 + $0x69] sm:$0xff]
        %v1713 = vld [vmem:[%s442 + $0x81] sm:$0xff]
        %v1714 = vld [vmem:[%s442 + $0x99] sm:$0xff]
        %v1715 = vld [vmem:[%s442 + $0xb1] sm:$0xff]
        %v1716 = vpack.c.bf16 %v1709, %v1708
        %v1717 = vpack.c.bf16 %v1711, %v1710
        %v1718 = vpack.c.bf16 %v1713, %v1712
        %v1719 = vpack.c.bf16 %v1715, %v1714
        %1720 = vst [vmem:[#allocation3 + $0x28] sm:$0xff] %v1716
        %1721 = vst [vmem:[#allocation3 + $0x70] sm:$0xff] %v1717
        %1722 = vst [vmem:[#allocation3 + $0xb8] sm:$0xff] %v1718
        %1723 = vst [vmem:[#allocation3 + $0x100] sm:$0xff] %v1719
        %v1724 = vld [vmem:[%s548 + $0x7] sm:$0xff]
        %v1725 = vld [vmem:[%s548 + $0x1f] sm:$0xff]
        %v1726 = vld [vmem:[%s548 + $0x37] sm:$0xff]
        %v1727 = vld [vmem:[%s548 + $0x4f] sm:$0xff]
        %v1728 = vld [vmem:[%s548 + $0x67] sm:$0xff]
        %v1729 = vld [vmem:[%s548 + $0x7f] sm:$0xff]
        %v1730 = vld [vmem:[%s548 + $0x97] sm:$0xff]
        %v1731 = vld [vmem:[%s548 + $0xaf] sm:$0xff]
        %v1732 = vpack.c.bf16 %v1725, %v1724
        %v1733 = vpack.c.bf16 %v1727, %v1726
        %v1734 = vpack.c.bf16 %v1729, %v1728
        %v1735 = vpack.c.bf16 %v1731, %v1730
        %1736 = vst [vmem:[#allocation3 + $0x30] sm:$0xff] %v1732
        %1737 = vst [vmem:[#allocation3 + $0x78] sm:$0xff] %v1733
        %1738 = vst [vmem:[#allocation3 + $0xc0] sm:$0xff] %v1734
        %1739 = vst [vmem:[#allocation3 + $0x108] sm:$0xff] %v1735
        %v1740 = vld [vmem:[%s548 + $0x8] sm:$0xff]
        %v1741 = vld [vmem:[%s548 + $0x20] sm:$0xff]
        %v1742 = vld [vmem:[%s548 + $0x38] sm:$0xff]
        %v1743 = vld [vmem:[%s548 + $0x50] sm:$0xff]
        %v1744 = vld [vmem:[%s548 + $0x68] sm:$0xff]
        %v1745 = vld [vmem:[%s548 + $0x80] sm:$0xff]
        %v1746 = vld [vmem:[%s548 + $0x98] sm:$0xff]
        %v1747 = vld [vmem:[%s548 + $0xb0] sm:$0xff]
        %v1748 = vpack.c.bf16 %v1741, %v1740
        %v1749 = vpack.c.bf16 %v1743, %v1742
        %v1750 = vpack.c.bf16 %v1745, %v1744
        %v1751 = vpack.c.bf16 %v1747, %v1746
        %1752 = vst [vmem:[#allocation3 + $0x38] sm:$0xff] %v1748
        %1753 = vst [vmem:[#allocation3 + $0x80] sm:$0xff] %v1749
        %1754 = vst [vmem:[#allocation3 + $0xc8] sm:$0xff] %v1750
        %1755 = vst [vmem:[#allocation3 + $0x110] sm:$0xff] %v1751
        %v1756 = vld [vmem:[%s548 + $0x9] sm:$0xff]
        %v1757 = vld [vmem:[%s548 + $0x21] sm:$0xff]
        %v1758 = vld [vmem:[%s548 + $0x39] sm:$0xff]
        %v1759 = vld [vmem:[%s548 + $0x51] sm:$0xff]
        %v1760 = vld [vmem:[%s548 + $0x69] sm:$0xff]
        %v1761 = vld [vmem:[%s548 + $0x81] sm:$0xff]
        %v1762 = vld [vmem:[%s548 + $0x99] sm:$0xff]
        %v1763 = vld [vmem:[%s548 + $0xb1] sm:$0xff]
        %v1764 = vpack.c.bf16 %v1757, %v1756
        %v1765 = vpack.c.bf16 %v1759, %v1758
        %v1766 = vpack.c.bf16 %v1761, %v1760
        %v1767 = vpack.c.bf16 %v1763, %v1762
        %1768 = vst [vmem:[#allocation3 + $0x40] sm:$0xff] %v1764
        %1769 = vst [vmem:[#allocation3 + $0x88] sm:$0xff] %v1765
        %1770 = vst [vmem:[#allocation3 + $0xd0] sm:$0xff] %v1766
        %1771 = vst [vmem:[#allocation3 + $0x118] sm:$0xff] %v1767
        %v1772 = vld [vmem:[#allocation3] sm:$0xff]
        %v1773 = vld [vmem:[#allocation3 + $0x8] sm:$0xff]
        %v1774 = vld [vmem:[#allocation3 + $0x10] sm:$0xff]
        %v1775 = vld [vmem:[#allocation3 + $0x18] sm:$0xff]
        %v1776 = vld [vmem:[#allocation3 + $0x20] sm:$0xff]
        %v1777 = vld [vmem:[#allocation3 + $0x28] sm:$0xff]
        %v1778 = vld [vmem:[#allocation3 + $0x30] sm:$0xff]
        %v1779 = vld [vmem:[#allocation3 + $0x38] sm:$0xff]
        %v1780 = vld [vmem:[#allocation3 + $0x40] sm:$0xff]
        %v1781 = vld [vmem:[#allocation3 + $0x48] sm:$0xff]
        %v1782 = vld [vmem:[#allocation3 + $0x50] sm:$0xff]
        %v1783 = vld [vmem:[#allocation3 + $0x58] sm:$0xff]
        %v1784 = vld [vmem:[#allocation3 + $0x60] sm:$0xff]
        %v1785 = vld [vmem:[#allocation3 + $0x68] sm:$0xff]
        %v1786 = vld [vmem:[#allocation3 + $0x70] sm:$0xff]
        %v1787 = vld [vmem:[#allocation3 + $0x78] sm:$0xff]
        %v1788 = vld [vmem:[#allocation3 + $0x80] sm:$0xff]
        %v1789 = vld [vmem:[#allocation3 + $0x88] sm:$0xff]
        %v1790 = vld [vmem:[#allocation3 + $0x90] sm:$0xff]
        %v1791 = vld [vmem:[#allocation3 + $0x98] sm:$0xff]
        %v1792 = vld [vmem:[#allocation3 + $0xa0] sm:$0xff]
        %v1793 = vld [vmem:[#allocation3 + $0xa8] sm:$0xff]
        %v1794 = vld [vmem:[#allocation3 + $0xb0] sm:$0xff]
        %v1795 = vld [vmem:[#allocation3 + $0xb8] sm:$0xff]
        %v1796 = vld [vmem:[#allocation3 + $0xc0] sm:$0xff]
        %v1797 = vld [vmem:[#allocation3 + $0xc8] sm:$0xff]
        %v1798 = vld [vmem:[#allocation3 + $0xd0] sm:$0xff]
        %v1799 = vld [vmem:[#allocation3 + $0xd8] sm:$0xff]
        %v1800 = vld [vmem:[#allocation3 + $0xe0] sm:$0xff]
        %v1801 = vld [vmem:[#allocation3 + $0xe8] sm:$0xff]
        %v1802 = vld [vmem:[#allocation3 + $0xf0] sm:$0xff]
        %v1803 = vld [vmem:[#allocation3 + $0xf8] sm:$0xff]
        %v1804 = vld [vmem:[#allocation3 + $0x100] sm:$0xff]
        %v1805 = vld [vmem:[#allocation3 + $0x108] sm:$0xff]
        %v1806 = vld [vmem:[#allocation3 + $0x110] sm:$0xff]
        %v1807 = vld [vmem:[#allocation3 + $0x118] sm:$0xff]
        %v1808 = vld [vmem:[#allocation7] sm:$0xf]
        %v1809 = vld [vmem:[#allocation7 + $0x4] sm:$0xf]
        %v1810 = vld [vmem:[#allocation7 + $0x8] sm:$0xf]
        %v1811 = vld [vmem:[#allocation7 + $0xc] sm:$0xf]
        %v1812 = vld [vmem:[#allocation7 + $0x10] sm:$0xf]
        %v1813 = vld [vmem:[#allocation7 + $0x14] sm:$0xf]
        %v1814 = vld [vmem:[#allocation7 + $0x18] sm:$0xf]
        %v1815 = vld [vmem:[#allocation7 + $0x1c] sm:$0xf]
        %v1816 = vld [vmem:[#allocation7 + $0x20] sm:$0xf]
        %v1817 = vld [vmem:[#allocation7 + $0x24] sm:$0xf]
        %v1818 = vld [vmem:[#allocation7 + $0x28] sm:$0xf]
        %v1819 = vld [vmem:[#allocation7 + $0x2c] sm:$0xf]
        %v1820 = vld [vmem:[#allocation7 + $0x30] sm:$0xf]
        %v1821 = vld [vmem:[#allocation7 + $0x34] sm:$0xf]
        %v1822 = vld [vmem:[#allocation7 + $0x38] sm:$0xf]
        %v1823 = vld [vmem:[#allocation7 + $0x3c] sm:$0xf]
        %v1824 = vld [vmem:[#allocation7 + $0x40] sm:$0xf]
        %v1825 = vld [vmem:[#allocation7 + $0x44] sm:$0xf]
        %v1826 = vld [vmem:[#allocation7 + $0x48] sm:$0xf]
        %v1827 = vld [vmem:[#allocation7 + $0x4c] sm:$0xf]
        %v1828 = vld [vmem:[#allocation7 + $0x50] sm:$0xf]
        %v1829 = vld [vmem:[#allocation7 + $0x54] sm:$0xf]
        %v1830 = vld [vmem:[#allocation7 + $0x58] sm:$0xf]
        %v1831 = vld [vmem:[#allocation7 + $0x5c] sm:$0xf]
        %v1832 = vld [vmem:[#allocation7 + $0x60] sm:$0xf]
        %v1833 = vld [vmem:[#allocation7 + $0x64] sm:$0xf]
        %v1834 = vld [vmem:[#allocation7 + $0x68] sm:$0xf]
        %v1835 = vld [vmem:[#allocation7 + $0x6c] sm:$0xf]
        %v1836 = vld [vmem:[#allocation7 + $0x70] sm:$0xf]
        %v1837 = vld [vmem:[#allocation7 + $0x74] sm:$0xf]
        %v1838 = vld [vmem:[#allocation7 + $0x78] sm:$0xf]
        %v1839 = vld [vmem:[#allocation7 + $0x7c] sm:$0xf]
        %v1840 = vld [vmem:[#allocation7 + $0x80] sm:$0xf]
        %v1841 = vld [vmem:[#allocation7 + $0x84] sm:$0xf]
        %v1842 = vld [vmem:[#allocation7 + $0x88] sm:$0xf]
        %v1843 = vld [vmem:[#allocation7 + $0x8c] sm:$0xf]
        %v1844 = vld [vmem:[#allocation7 + $0x90] sm:$0xf]
        %v1845 = vld [vmem:[#allocation7 + $0x94] sm:$0xf]
        %v1846 = vld [vmem:[#allocation7 + $0x98] sm:$0xf]
        %v1847 = vld [vmem:[#allocation7 + $0x9c] sm:$0xf]
        %v1848 = vld [vmem:[#allocation7 + $0xa0] sm:$0xf]
        %v1849 = vld [vmem:[#allocation7 + $0xa4] sm:$0xf]
        %v1850 = vld [vmem:[#allocation7 + $0xa8] sm:$0xf]
        %v1851 = vld [vmem:[#allocation7 + $0xac] sm:$0xf]
        %v1852 = vld [vmem:[#allocation7 + $0xb0] sm:$0xf]
        %v1853 = vld [vmem:[#allocation7 + $0xb4] sm:$0xf]
        %v1854 = vld [vmem:[#allocation7 + $0xb8] sm:$0xf]
        %v1855 = vld [vmem:[#allocation7 + $0xbc] sm:$0xf]
        %v1856 = vld [vmem:[#allocation7 + $0xc0] sm:$0xf]
        %v1857 = vld [vmem:[#allocation7 + $0xc4] sm:$0xf]
        %v1858 = vld [vmem:[#allocation7 + $0xc8] sm:$0xf]
        %v1859 = vld [vmem:[#allocation7 + $0xcc] sm:$0xf]
        %v1860 = vld [vmem:[#allocation7 + $0xd0] sm:$0xf]
        %v1861 = vld [vmem:[#allocation7 + $0xd4] sm:$0xf]
        %v1862 = vld [vmem:[#allocation7 + $0xd8] sm:$0xf]
        %v1863 = vld [vmem:[#allocation7 + $0xdc] sm:$0xf]
        %v1864 = vld [vmem:[#allocation7 + $0xe0] sm:$0xf]
        %v1865 = vld [vmem:[#allocation7 + $0xe4] sm:$0xf]
        %v1866 = vld [vmem:[#allocation7 + $0xe8] sm:$0xf]
        %v1867 = vld [vmem:[#allocation7 + $0xec] sm:$0xf]
        %v1868 = vld [vmem:[#allocation7 + $0xf0] sm:$0xf]
        %v1869 = vld [vmem:[#allocation7 + $0xf4] sm:$0xf]
        %v1870 = vld [vmem:[#allocation7 + $0xf8] sm:$0xf]
        %v1871 = vld [vmem:[#allocation7 + $0xfc] sm:$0xf]
        %v1872 = vld [vmem:[#allocation7 + $0x100] sm:$0xf]
        %v1873 = vld [vmem:[#allocation7 + $0x104] sm:$0xf]
        %v1874 = vld [vmem:[#allocation7 + $0x108] sm:$0xf]
        %v1875 = vld [vmem:[#allocation7 + $0x10c] sm:$0xf]
        %v1876 = vld [vmem:[#allocation7 + $0x110] sm:$0xf]
        %v1877 = vld [vmem:[#allocation7 + $0x114] sm:$0xf]
        %v1878 = vld [vmem:[#allocation7 + $0x118] sm:$0xf]
        %v1879 = vld [vmem:[#allocation7 + $0x11c] sm:$0xf]
        %v1880 = vld [vmem:[#allocation7 + $0x120] sm:$0xf]
        %v1881 = vld [vmem:[#allocation7 + $0x124] sm:$0xf]
        %v1882 = vld [vmem:[#allocation7 + $0x128] sm:$0xf]
        %v1883 = vld [vmem:[#allocation7 + $0x12c] sm:$0xf]
        %v1884 = vld [vmem:[#allocation7 + $0x130] sm:$0xf]
        %v1885 = vld [vmem:[#allocation7 + $0x134] sm:$0xf]
        %v1886 = vld [vmem:[#allocation7 + $0x138] sm:$0xf]
        %v1887 = vld [vmem:[#allocation7 + $0x13c] sm:$0xf]
        %v1888 = vld [vmem:[#allocation7 + $0x140] sm:$0xf]
        %v1889 = vld [vmem:[#allocation7 + $0x144] sm:$0xf]
        %v1890 = vld [vmem:[#allocation7 + $0x148] sm:$0xf]
        %v1891 = vld [vmem:[#allocation7 + $0x14c] sm:$0xf]
        %v1892 = vld [vmem:[#allocation7 + $0x150] sm:$0xf]
        %v1893 = vld [vmem:[#allocation7 + $0x154] sm:$0xf]
        %v1894 = vld [vmem:[#allocation7 + $0x158] sm:$0xf]
        %v1895 = vld [vmem:[#allocation7 + $0x15c] sm:$0xf]
        %v1896 = vld [vmem:[#allocation7 + $0x160] sm:$0xf]
        %v1897 = vld [vmem:[#allocation7 + $0x164] sm:$0xf]
        %v1898 = vld [vmem:[#allocation7 + $0x168] sm:$0xf]
        %v1899 = vld [vmem:[#allocation7 + $0x16c] sm:$0xf]
        %v1900 = vld [vmem:[#allocation7 + $0x170] sm:$0xf]
        %v1901 = vld [vmem:[#allocation7 + $0x174] sm:$0xf]
        %v1902 = vld [vmem:[#allocation7 + $0x178] sm:$0xf]
        %v1903 = vld [vmem:[#allocation7 + $0x17c] sm:$0xf]
        %v1904 = vld [vmem:[#allocation7 + $0x180] sm:$0xf]
        %v1905 = vld [vmem:[#allocation7 + $0x184] sm:$0xf]
        %v1906 = vld [vmem:[#allocation7 + $0x188] sm:$0xf]
        %v1907 = vld [vmem:[#allocation7 + $0x18c] sm:$0xf]
        %v1908 = vld [vmem:[#allocation7 + $0x190] sm:$0xf]
        %v1909 = vld [vmem:[#allocation7 + $0x194] sm:$0xf]
        %v1910 = vld [vmem:[#allocation7 + $0x198] sm:$0xf]
        %v1911 = vld [vmem:[#allocation7 + $0x19c] sm:$0xf]
        %v1912 = vld [vmem:[#allocation7 + $0x1a0] sm:$0xf]
        %v1913 = vld [vmem:[#allocation7 + $0x1a4] sm:$0xf]
        %v1914 = vld [vmem:[#allocation7 + $0x1a8] sm:$0xf]
        %v1915 = vld [vmem:[#allocation7 + $0x1ac] sm:$0xf]
        %v1916 = vld [vmem:[#allocation7 + $0x1b0] sm:$0xf]
        %v1917 = vld [vmem:[#allocation7 + $0x1b4] sm:$0xf]
        %v1918 = vld [vmem:[#allocation7 + $0x1b8] sm:$0xf]
        %v1919 = vld [vmem:[#allocation7 + $0x1bc] sm:$0xf]
        %v1920 = vld [vmem:[#allocation7 + $0x1c0] sm:$0xf]
        %v1921 = vld [vmem:[#allocation7 + $0x1c4] sm:$0xf]
        %v1922 = vld [vmem:[#allocation7 + $0x1c8] sm:$0xf]
        %v1923 = vld [vmem:[#allocation7 + $0x1cc] sm:$0xf]
        %v1924 = vld [vmem:[#allocation7 + $0x1d0] sm:$0xf]
        %v1925 = vld [vmem:[#allocation7 + $0x1d4] sm:$0xf]
        %v1926 = vld [vmem:[#allocation7 + $0x1d8] sm:$0xf]
        %v1927 = vld [vmem:[#allocation7 + $0x1dc] sm:$0xf]
        %v1928 = vld [vmem:[#allocation7 + $0x1e0] sm:$0xf]
        %v1929 = vld [vmem:[#allocation7 + $0x1e4] sm:$0xf]
        %v1930 = vld [vmem:[#allocation7 + $0x1e8] sm:$0xf]
        %v1931 = vld [vmem:[#allocation7 + $0x1ec] sm:$0xf]
        %v1932 = vld [vmem:[#allocation7 + $0x1f0] sm:$0xf]
        %v1933 = vld [vmem:[#allocation7 + $0x1f4] sm:$0xf]
        %v1934 = vld [vmem:[#allocation7 + $0x1f8] sm:$0xf]
        %v1935 = vld [vmem:[#allocation7 + $0x1fc] sm:$0xf]
        %v1936 = vld [vmem:[#allocation7 + $0x200] sm:$0xf]
        %v1937 = vld [vmem:[#allocation7 + $0x204] sm:$0xf]
        %v1938 = vld [vmem:[#allocation7 + $0x208] sm:$0xf]
        %v1939 = vld [vmem:[#allocation7 + $0x20c] sm:$0xf]
        %v1940 = vld [vmem:[#allocation7 + $0x210] sm:$0xf]
        %v1941 = vld [vmem:[#allocation7 + $0x214] sm:$0xf]
        %v1942 = vld [vmem:[#allocation7 + $0x218] sm:$0xf]
        %v1943 = vld [vmem:[#allocation7 + $0x21c] sm:$0xf]
        %v1944 = vld [vmem:[#allocation7 + $0x220] sm:$0xf]
        %v1945 = vld [vmem:[#allocation7 + $0x224] sm:$0xf]
        %v1946 = vld [vmem:[#allocation7 + $0x228] sm:$0xf]
        %v1947 = vld [vmem:[#allocation7 + $0x22c] sm:$0xf]
        %v1948 = vld [vmem:[#allocation7 + $0x230] sm:$0xf]
        %v1949 = vld [vmem:[#allocation7 + $0x234] sm:$0xf]
        %v1950 = vld [vmem:[#allocation7 + $0x238] sm:$0xf]
        %v1951 = vld [vmem:[#allocation7 + $0x23c] sm:$0xf]
        %v2096 = vunpack.c.l.b16 %v1808
        %v2097 = vunpack.c.l.b16 %v1809
        %v2098 = vunpack.c.l.b16 %v1810
        %v2099 = vunpack.c.l.b16 %v1811
        %v2100 = vunpack.c.l.b16 %v1812
        %v2101 = vunpack.c.l.b16 %v1813
        %v2102 = vunpack.c.l.b16 %v1814
        %v2103 = vunpack.c.l.b16 %v1815
        %v2104 = vunpack.c.l.b16 %v1816
        %v2105 = vunpack.c.l.b16 %v1817
        %v2106 = vunpack.c.l.b16 %v1818
        %v2107 = vunpack.c.l.b16 %v1819
        %v2108 = vunpack.c.l.b16 %v1820
        %v2109 = vunpack.c.l.b16 %v1821
        %v2110 = vunpack.c.l.b16 %v1822
        %v2111 = vunpack.c.l.b16 %v1823
        %v2112 = vunpack.c.l.b16 %v1824
        %v2113 = vunpack.c.l.b16 %v1825
        %v2114 = vunpack.c.l.b16 %v1826
        %v2115 = vunpack.c.l.b16 %v1827
        %v2116 = vunpack.c.l.b16 %v1828
        %v2117 = vunpack.c.l.b16 %v1829
        %v2118 = vunpack.c.l.b16 %v1830
        %v2119 = vunpack.c.l.b16 %v1831
        %v2120 = vunpack.c.l.b16 %v1832
        %v2121 = vunpack.c.l.b16 %v1833
        %v2122 = vunpack.c.l.b16 %v1834
        %v2123 = vunpack.c.l.b16 %v1835
        %v2124 = vunpack.c.l.b16 %v1836
        %v2125 = vunpack.c.l.b16 %v1837
        %v2126 = vunpack.c.l.b16 %v1838
        %v2127 = vunpack.c.l.b16 %v1839
        %v2128 = vunpack.c.l.b16 %v1840
        %v2129 = vunpack.c.l.b16 %v1841
        %v2130 = vunpack.c.l.b16 %v1842
        %v2131 = vunpack.c.l.b16 %v1843
        %v2132 = vunpack.c.l.b16 %v1844
        %v2133 = vunpack.c.l.b16 %v1845
        %v2134 = vunpack.c.l.b16 %v1846
        %v2135 = vunpack.c.l.b16 %v1847
        %v2136 = vunpack.c.l.b16 %v1848
        %v2137 = vunpack.c.l.b16 %v1849
        %v2138 = vunpack.c.l.b16 %v1850
        %v2139 = vunpack.c.l.b16 %v1851
        %v2140 = vunpack.c.l.b16 %v1852
        %v2141 = vunpack.c.l.b16 %v1853
        %v2142 = vunpack.c.l.b16 %v1854
        %v2143 = vunpack.c.l.b16 %v1855
        %v2144 = vunpack.c.l.b16 %v1856
        %v2145 = vunpack.c.l.b16 %v1857
        %v2146 = vunpack.c.l.b16 %v1858
        %v2147 = vunpack.c.l.b16 %v1859
        %v2148 = vunpack.c.l.b16 %v1860
        %v2149 = vunpack.c.l.b16 %v1861
        %v2150 = vunpack.c.l.b16 %v1862
        %v2151 = vunpack.c.l.b16 %v1863
        %v2152 = vunpack.c.l.b16 %v1864
        %v2153 = vunpack.c.l.b16 %v1865
        %v2154 = vunpack.c.l.b16 %v1866
        %v2155 = vunpack.c.l.b16 %v1867
        %v2156 = vunpack.c.l.b16 %v1868
        %v2157 = vunpack.c.l.b16 %v1869
        %v2158 = vunpack.c.l.b16 %v1870
        %v2159 = vunpack.c.l.b16 %v1871
        %v2160 = vunpack.c.l.b16 %v1872
        %v2161 = vunpack.c.l.b16 %v1873
        %v2162 = vunpack.c.l.b16 %v1874
        %v2163 = vunpack.c.l.b16 %v1875
        %v2164 = vunpack.c.l.b16 %v1876
        %v2165 = vunpack.c.l.b16 %v1877
        %v2166 = vunpack.c.l.b16 %v1878
        %v2167 = vunpack.c.l.b16 %v1879
        %v2168 = vunpack.c.l.b16 %v1880
        %v2169 = vunpack.c.l.b16 %v1881
        %v2170 = vunpack.c.l.b16 %v1882
        %v2171 = vunpack.c.l.b16 %v1883
        %v2172 = vunpack.c.l.b16 %v1884
        %v2173 = vunpack.c.l.b16 %v1885
        %v2174 = vunpack.c.l.b16 %v1886
        %v2175 = vunpack.c.l.b16 %v1887
        %v2176 = vunpack.c.l.b16 %v1888
        %v2177 = vunpack.c.l.b16 %v1889
        %v2178 = vunpack.c.l.b16 %v1890
        %v2179 = vunpack.c.l.b16 %v1891
        %v2180 = vunpack.c.l.b16 %v1892
        %v2181 = vunpack.c.l.b16 %v1893
        %v2182 = vunpack.c.l.b16 %v1894
        %v2183 = vunpack.c.l.b16 %v1895
        %v2184 = vunpack.c.l.b16 %v1896
        %v2185 = vunpack.c.l.b16 %v1897
        %v2186 = vunpack.c.l.b16 %v1898
        %v2187 = vunpack.c.l.b16 %v1899
        %v2188 = vunpack.c.l.b16 %v1900
        %v2189 = vunpack.c.l.b16 %v1901
        %v2190 = vunpack.c.l.b16 %v1902
        %v2191 = vunpack.c.l.b16 %v1903
        %v2192 = vunpack.c.l.b16 %v1904
        %v2193 = vunpack.c.l.b16 %v1905
        %v2194 = vunpack.c.l.b16 %v1906
        %v2195 = vunpack.c.l.b16 %v1907
        %v2196 = vunpack.c.l.b16 %v1908
        %v2197 = vunpack.c.l.b16 %v1909
        %v2198 = vunpack.c.l.b16 %v1910
        %v2199 = vunpack.c.l.b16 %v1911
        %v2200 = vunpack.c.l.b16 %v1912
        %v2201 = vunpack.c.l.b16 %v1913
        %v2202 = vunpack.c.l.b16 %v1914
        %v2203 = vunpack.c.l.b16 %v1915
        %v2204 = vunpack.c.l.b16 %v1916
        %v2205 = vunpack.c.l.b16 %v1917
        %v2206 = vunpack.c.l.b16 %v1918
        %v2207 = vunpack.c.l.b16 %v1919
        %v2208 = vunpack.c.l.b16 %v1920
        %v2209 = vunpack.c.l.b16 %v1921
        %v2210 = vunpack.c.l.b16 %v1922
        %v2211 = vunpack.c.l.b16 %v1923
        %v2212 = vunpack.c.l.b16 %v1924
        %v2213 = vunpack.c.l.b16 %v1925
        %v2214 = vunpack.c.l.b16 %v1926
        %v2215 = vunpack.c.l.b16 %v1927
        %v2216 = vunpack.c.l.b16 %v1928
        %v2217 = vunpack.c.l.b16 %v1929
        %v2218 = vunpack.c.l.b16 %v1930
        %v2219 = vunpack.c.l.b16 %v1931
        %v2220 = vunpack.c.l.b16 %v1932
        %v2221 = vunpack.c.l.b16 %v1933
        %v2222 = vunpack.c.l.b16 %v1934
        %v2223 = vunpack.c.l.b16 %v1935
        %v2224 = vunpack.c.l.b16 %v1936
        %v2225 = vunpack.c.l.b16 %v1937
        %v2226 = vunpack.c.l.b16 %v1938
        %v2227 = vunpack.c.l.b16 %v1939
        %v2228 = vunpack.c.l.b16 %v1940
        %v2229 = vunpack.c.l.b16 %v1941
        %v2230 = vunpack.c.l.b16 %v1942
        %v2231 = vunpack.c.l.b16 %v1943
        %v2232 = vunpack.c.l.b16 %v1944
        %v2233 = vunpack.c.l.b16 %v1945
        %v2234 = vunpack.c.l.b16 %v1946
        %v2235 = vunpack.c.l.b16 %v1947
        %v2236 = vunpack.c.l.b16 %v1948
        %v2237 = vunpack.c.l.b16 %v1949
        %v2238 = vunpack.c.l.b16 %v1950
        %v2239 = vunpack.c.l.b16 %v1951
        %v2240 = vpack.c.b16 %v2097, %v2096
        %v2241 = vpack.c.b16 %v2099, %v2098
        %v2242 = vpack.c.b16 %v2101, %v2100
        %v2243 = vpack.c.b16 %v2103, %v2102
        %v2244 = vpack.c.b16 %v2105, %v2104
        %v2245 = vpack.c.b16 %v2107, %v2106
        %v2246 = vpack.c.b16 %v2109, %v2108
        %v2247 = vpack.c.b16 %v2111, %v2110
        %v2248 = vpack.c.b16 %v2113, %v2112
        %v2249 = vpack.c.b16 %v2115, %v2114
        %v2250 = vpack.c.b16 %v2117, %v2116
        %v2251 = vpack.c.b16 %v2119, %v2118
        %v2252 = vpack.c.b16 %v2121, %v2120
        %v2253 = vpack.c.b16 %v2123, %v2122
        %v2254 = vpack.c.b16 %v2125, %v2124
        %v2255 = vpack.c.b16 %v2127, %v2126
        %v2256 = vpack.c.b16 %v2129, %v2128
        %v2257 = vpack.c.b16 %v2131, %v2130
        %v2258 = vpack.c.b16 %v2133, %v2132
        %v2259 = vpack.c.b16 %v2135, %v2134
        %v2260 = vpack.c.b16 %v2137, %v2136
        %v2261 = vpack.c.b16 %v2139, %v2138
        %v2262 = vpack.c.b16 %v2141, %v2140
        %v2263 = vpack.c.b16 %v2143, %v2142
        %v2264 = vpack.c.b16 %v2145, %v2144
        %v2265 = vpack.c.b16 %v2147, %v2146
        %v2266 = vpack.c.b16 %v2149, %v2148
        %v2267 = vpack.c.b16 %v2151, %v2150
        %v2268 = vpack.c.b16 %v2153, %v2152
        %v2269 = vpack.c.b16 %v2155, %v2154
        %v2270 = vpack.c.b16 %v2157, %v2156
        %v2271 = vpack.c.b16 %v2159, %v2158
        %v2272 = vpack.c.b16 %v2161, %v2160
        %v2273 = vpack.c.b16 %v2163, %v2162
        %v2274 = vpack.c.b16 %v2165, %v2164
        %v2275 = vpack.c.b16 %v2167, %v2166
        %v2276 = vpack.c.b16 %v2169, %v2168
        %v2277 = vpack.c.b16 %v2171, %v2170
        %v2278 = vpack.c.b16 %v2173, %v2172
        %v2279 = vpack.c.b16 %v2175, %v2174
        %v2280 = vpack.c.b16 %v2177, %v2176
        %v2281 = vpack.c.b16 %v2179, %v2178
        %v2282 = vpack.c.b16 %v2181, %v2180
        %v2283 = vpack.c.b16 %v2183, %v2182
        %v2284 = vpack.c.b16 %v2185, %v2184
        %v2285 = vpack.c.b16 %v2187, %v2186
        %v2286 = vpack.c.b16 %v2189, %v2188
        %v2287 = vpack.c.b16 %v2191, %v2190
        %v2288 = vpack.c.b16 %v2193, %v2192
        %v2289 = vpack.c.b16 %v2195, %v2194
        %v2290 = vpack.c.b16 %v2197, %v2196
        %v2291 = vpack.c.b16 %v2199, %v2198
        %v2292 = vpack.c.b16 %v2201, %v2200
        %v2293 = vpack.c.b16 %v2203, %v2202
        %v2294 = vpack.c.b16 %v2205, %v2204
        %v2295 = vpack.c.b16 %v2207, %v2206
        %v2296 = vpack.c.b16 %v2209, %v2208
        %v2297 = vpack.c.b16 %v2211, %v2210
        %v2298 = vpack.c.b16 %v2213, %v2212
        %v2299 = vpack.c.b16 %v2215, %v2214
        %v2300 = vpack.c.b16 %v2217, %v2216
        %v2301 = vpack.c.b16 %v2219, %v2218
        %v2302 = vpack.c.b16 %v2221, %v2220
        %v2303 = vpack.c.b16 %v2223, %v2222
        %v2304 = vpack.c.b16 %v2225, %v2224
        %v2305 = vpack.c.b16 %v2227, %v2226
        %v2306 = vpack.c.b16 %v2229, %v2228
        %v2307 = vpack.c.b16 %v2231, %v2230
        %v2308 = vpack.c.b16 %v2233, %v2232
        %v2309 = vpack.c.b16 %v2235, %v2234
        %v2310 = vpack.c.b16 %v2237, %v2236
        %v2311 = vpack.c.b16 %v2239, %v2238
        %2384 = vmatprep.subr.bf16.mxu0 0
        %2385 = vmatpush1.bf16.msra.mxu0 %v2240
        %2386 = vmatprep.subr.bf16.mxu0 0
        %2387 = vmatpush1.bf16.msra.mxu0 %v2241
        %2388 = vmatprep.subr.bf16.mxu0 0
        %2389 = vmatpush1.bf16.msra.mxu0 %v2242
        %2390 = vmatprep.subr.bf16.mxu0 0
        %2391 = vmatpush1.bf16.msra.mxu0 %v2243
        %2392 = vmatprep.subr.bf16.mxu0 0
        %2393 = vmatpush1.bf16.msra.mxu0 %v2244
        %2394 = vmatprep.subr.bf16.mxu0 0
        %2395 = vmatpush1.bf16.msra.mxu0 %v2245
        %2396 = vmatprep.subr.bf16.mxu0 0
        %2397 = vmatpush1.bf16.msra.mxu0 %v2246
        %2398 = vmatprep.subr.bf16.mxu0 0
        %2399 = vmatpush1.bf16.msra.mxu0 %v2247
        %2400 = vmatprep.subr.bf16.mxu0 0
        %2401 = vmatpush1.bf16.msra.mxu0 %v2248
        %2402 = vmatprep.subr.bf16.mxu0 0
        %2403 = vmatpush1.bf16.msra.mxu0 %v2249
        %2404 = vmatprep.subr.bf16.mxu0 0
        %2405 = vmatpush1.bf16.msra.mxu0 %v2250
        %2406 = vmatprep.subr.bf16.mxu0 0
        %2407 = vmatpush1.bf16.msra.mxu0 %v2251
        %2408 = vmatprep.subr.bf16.mxu0 0
        %2409 = vmatpush1.bf16.msra.mxu0 %v2252
        %2410 = vmatprep.subr.bf16.mxu0 0
        %2411 = vmatpush1.bf16.msra.mxu0 %v2253
        %2412 = vmatprep.subr.bf16.mxu0 0
        %2413 = vmatpush1.bf16.msra.mxu0 %v2254
        %2414 = vmatprep.subr.bf16.mxu0 0
        %2415 = vmatpush1.bf16.msra.mxu0 %v2255
        %2416 = vmatprep.mubr.bf16.mxu0 %v1773
        %2417 = vmatmul.mubr.bf16.gmra.mrb[0].mxu0 %v1772
        %v2418 = vpop.f32.mrb[0].mxu0
        %v2419 = vadd.f32 0.0, %v2418
        %v2420 = vpop.f32.mrb[0].mxu0
        %v2421 = vpop.f32.mrb[0].mxu0
        %v2422 = vadd.f32 0.0, %v2421
        %v2423 = vpop.f32.mrb[0].mxu0
        %2424 = vmatprep.mubr.bf16.mxu0 %v1782
        %2425 = vmatmul.mubr.bf16.gmra.mrb[0].mxu0 %v1781
        %v2426 = vpop.f32.mrb[0].mxu0
        %v2427 = vadd.f32 0.0, %v2426
        %v2428 = vpop.f32.mrb[0].mxu0
        %v2429 = vpop.f32.mrb[0].mxu0
        %v2430 = vadd.f32 0.0, %v2429
        %v2431 = vpop.f32.mrb[0].mxu0
        %2432 = vmatprep.mubr.bf16.mxu0 %v1791
        %2433 = vmatmul.mubr.bf16.gmra.mrb[0].mxu0 %v1790
        %v2434 = vpop.f32.mrb[0].mxu0
        %v2435 = vadd.f32 0.0, %v2434
        %v2436 = vpop.f32.mrb[0].mxu0
        %v2437 = vpop.f32.mrb[0].mxu0
        %v2438 = vadd.f32 0.0, %v2437
        %v2439 = vpop.f32.mrb[0].mxu0
        %2440 = vmatprep.mubr.bf16.mxu0 %v1800
        %2441 = vmatmul.mubr.bf16.gmra.mrb[0].mxu0 %v1799
        %v2442 = vpop.f32.mrb[0].mxu0
        %v2443 = vadd.f32 0.0, %v2442
        %v2444 = vpop.f32.mrb[0].mxu0
        %v2445 = vpop.f32.mrb[0].mxu0
        %v2446 = vadd.f32 0.0, %v2445
        %v2447 = vpop.f32.mrb[0].mxu0
        %2448 = vdwg.mxu0
        %2449 = vmatprep.subr.bf16.mxu0 0
        %2450 = vmatpush1.bf16.msra.mxu0 %v2256
        %2451 = vmatprep.subr.bf16.mxu0 0
        %2452 = vmatpush1.bf16.msra.mxu0 %v2257
        %2453 = vmatprep.subr.bf16.mxu0 0
        %2454 = vmatpush1.bf16.msra.mxu0 %v2258
        %2455 = vmatprep.subr.bf16.mxu0 0
        %2456 = vmatpush1.bf16.msra.mxu0 %v2259
        %2457 = vmatprep.subr.bf16.mxu0 0
        %2458 = vmatpush1.bf16.msra.mxu0 %v2260
        %2459 = vmatprep.subr.bf16.mxu0 0
        %2460 = vmatpush1.bf16.msra.mxu0 %v2261
        %2461 = vmatprep.subr.bf16.mxu0 0
        %2462 = vmatpush1.bf16.msra.mxu0 %v2262
        %2463 = vmatprep.subr.bf16.mxu0 0
        %2464 = vmatpush1.bf16.msra.mxu0 %v2263
        %2465 = vmatprep.subr.bf16.mxu0 0
        %2466 = vmatpush1.bf16.msra.mxu0 %v2264
        %2467 = vmatprep.subr.bf16.mxu0 0
        %2468 = vmatpush1.bf16.msra.mxu0 %v2265
        %2469 = vmatprep.subr.bf16.mxu0 0
        %2470 = vmatpush1.bf16.msra.mxu0 %v2266
        %2471 = vmatprep.subr.bf16.mxu0 0
        %2472 = vmatpush1.bf16.msra.mxu0 %v2267
        %2473 = vmatprep.subr.bf16.mxu0 0
        %2474 = vmatpush1.bf16.msra.mxu0 %v2268
        %2475 = vmatprep.subr.bf16.mxu0 0
        %2476 = vmatpush1.bf16.msra.mxu0 %v2269
        %2477 = vmatprep.subr.bf16.mxu0 0
        %2478 = vmatpush1.bf16.msra.mxu0 %v2270
        %2479 = vmatprep.subr.bf16.mxu0 0
        %2480 = vmatpush1.bf16.msra.mxu0 %v2271
        %2481 = vmatprep.mubr.bf16.mxu0 %v1775
        %2482 = vmatmul.mubr.bf16.gmra.mrb[0].mxu0 %v1774
        %v2483 = vpop.f32.mrb[0].mxu0
        %v2484 = vadd.f32 %v2419, %v2483
        %v2485 = vpop.f32.mrb[0].mxu0
        %v2486 = vpop.f32.mrb[0].mxu0
        %v2487 = vadd.f32 %v2422, %v2486
        %v2488 = vpop.f32.mrb[0].mxu0
        %2489 = vmatprep.mubr.bf16.mxu0 %v1784
        %2490 = vmatmul.mubr.bf16.gmra.mrb[0].mxu0 %v1783
        %v2491 = vpop.f32.mrb[0].mxu0
        %v2492 = vadd.f32 %v2427, %v2491
        %v2493 = vpop.f32.mrb[0].mxu0
        %v2494 = vpop.f32.mrb[0].mxu0
        %v2495 = vadd.f32 %v2430, %v2494
        %v2496 = vpop.f32.mrb[0].mxu0
        %2497 = vmatprep.mubr.bf16.mxu0 %v1793
        %2498 = vmatmul.mubr.bf16.gmra.mrb[0].mxu0 %v1792
        %v2499 = vpop.f32.mrb[0].mxu0
        %v2500 = vadd.f32 %v2435, %v2499
        %v2501 = vpop.f32.mrb[0].mxu0
        %v2502 = vpop.f32.mrb[0].mxu0
        %v2503 = vadd.f32 %v2438, %v2502
        %v2504 = vpop.f32.mrb[0].mxu0
        %2505 = vmatprep.mubr.bf16.mxu0 %v1802
        %2506 = vmatmul.mubr.bf16.gmra.mrb[0].mxu0 %v1801
        %v2507 = vpop.f32.mrb[0].mxu0
        %v2508 = vadd.f32 %v2443, %v2507
        %v2509 = vpop.f32.mrb[0].mxu0
        %v2510 = vpop.f32.mrb[0].mxu0
        %v2511 = vadd.f32 %v2446, %v2510
        %v2512 = vpop.f32.mrb[0].mxu0
        %2513 = vdwg.mxu0
        %2514 = vmatprep.subr.bf16.mxu0 0
        %2515 = vmatpush1.bf16.msra.mxu0 %v2272
        %2516 = vmatprep.subr.bf16.mxu0 0
        %2517 = vmatpush1.bf16.msra.mxu0 %v2273
        %2518 = vmatprep.subr.bf16.mxu0 0
        %2519 = vmatpush1.bf16.msra.mxu0 %v2274
        %2520 = vmatprep.subr.bf16.mxu0 0
        %2521 = vmatpush1.bf16.msra.mxu0 %v2275
        %2522 = vmatprep.subr.bf16.mxu0 0
        %2523 = vmatpush1.bf16.msra.mxu0 %v2276
        %2524 = vmatprep.subr.bf16.mxu0 0
        %2525 = vmatpush1.bf16.msra.mxu0 %v2277
        %2526 = vmatprep.subr.bf16.mxu0 0
        %2527 = vmatpush1.bf16.msra.mxu0 %v2278
        %2528 = vmatprep.subr.bf16.mxu0 0
        %2529 = vmatpush1.bf16.msra.mxu0 %v2279
        %2530 = vmatprep.subr.bf16.mxu0 0
        %2531 = vmatpush1.bf16.msra.mxu0 %v2280
        %2532 = vmatprep.subr.bf16.mxu0 0
        %2533 = vmatpush1.bf16.msra.mxu0 %v2281
        %2534 = vmatprep.subr.bf16.mxu0 0
        %2535 = vmatpush1.bf16.msra.mxu0 %v2282
        %2536 = vmatprep.subr.bf16.mxu0 0
        %2537 = vmatpush1.bf16.msra.mxu0 %v2283
        %2538 = vmatprep.subr.bf16.mxu0 0
        %2539 = vmatpush1.bf16.msra.mxu0 %v2284
        %2540 = vmatprep.subr.bf16.mxu0 0
        %2541 = vmatpush1.bf16.msra.mxu0 %v2285
        %2542 = vmatprep.subr.bf16.mxu0 0
        %2543 = vmatpush1.bf16.msra.mxu0 %v2286
        %2544 = vmatprep.subr.bf16.mxu0 0
        %2545 = vmatpush1.bf16.msra.mxu0 %v2287
        %2546 = vmatprep.mubr.bf16.mxu0 %v1777
        %2547 = vmatmul.mubr.bf16.gmra.mrb[0].mxu0 %v1776
        %v2548 = vpop.f32.mrb[0].mxu0
        %v2549 = vadd.f32 %v2484, %v2548
        %v2550 = vpop.f32.mrb[0].mxu0
        %v2551 = vpop.f32.mrb[0].mxu0
        %v2552 = vadd.f32 %v2487, %v2551
        %v2553 = vpop.f32.mrb[0].mxu0
        %2554 = vmatprep.mubr.bf16.mxu0 %v1786
        %2555 = vmatmul.mubr.bf16.gmra.mrb[0].mxu0 %v1785
        %v2556 = vpop.f32.mrb[0].mxu0
        %v2557 = vadd.f32 %v2492, %v2556
        %v2558 = vpop.f32.mrb[0].mxu0
        %v2559 = vpop.f32.mrb[0].mxu0
        %v2560 = vadd.f32 %v2495, %v2559
        %v2561 = vpop.f32.mrb[0].mxu0
        %2562 = vmatprep.mubr.bf16.mxu0 %v1795
        %2563 = vmatmul.mubr.bf16.gmra.mrb[0].mxu0 %v1794
        %v2564 = vpop.f32.mrb[0].mxu0
        %v2565 = vadd.f32 %v2500, %v2564
        %v2566 = vpop.f32.mrb[0].mxu0
        %v2567 = vpop.f32.mrb[0].mxu0
        %v2568 = vadd.f32 %v2503, %v2567
        %v2569 = vpop.f32.mrb[0].mxu0
        %2570 = vmatprep.mubr.bf16.mxu0 %v1804
        %2571 = vmatmul.mubr.bf16.gmra.mrb[0].mxu0 %v1803
        %v2572 = vpop.f32.mrb[0].mxu0
        %v2573 = vadd.f32 %v2508, %v2572
        %v2574 = vpop.f32.mrb[0].mxu0
        %v2575 = vpop.f32.mrb[0].mxu0
        %v2576 = vadd.f32 %v2511, %v2575
        %v2577 = vpop.f32.mrb[0].mxu0
        %2578 = vdwg.mxu0
        %2579 = vmatprep.subr.bf16.mxu0 0
        %2580 = vmatpush1.bf16.msra.mxu0 %v2288
        %2581 = vmatprep.subr.bf16.mxu0 0
        %2582 = vmatpush1.bf16.msra.mxu0 %v2289
        %2583 = vmatprep.subr.bf16.mxu0 0
        %2584 = vmatpush1.bf16.msra.mxu0 %v2290
        %2585 = vmatprep.subr.bf16.mxu0 0
        %2586 = vmatpush1.bf16.msra.mxu0 %v2291
        %2587 = vmatprep.subr.bf16.mxu0 0
        %2588 = vmatpush1.bf16.msra.mxu0 %v2292
        %2589 = vmatprep.subr.bf16.mxu0 0
        %2590 = vmatpush1.bf16.msra.mxu0 %v2293
        %2591 = vmatprep.subr.bf16.mxu0 0
        %2592 = vmatpush1.bf16.msra.mxu0 %v2294
        %2593 = vmatprep.subr.bf16.mxu0 0
        %2594 = vmatpush1.bf16.msra.mxu0 %v2295
        %2595 = vmatprep.subr.bf16.mxu0 0
        %2596 = vmatpush1.bf16.msra.mxu0 %v2296
        %2597 = vmatprep.subr.bf16.mxu0 0
        %2598 = vmatpush1.bf16.msra.mxu0 %v2297
        %2599 = vmatprep.subr.bf16.mxu0 0
        %2600 = vmatpush1.bf16.msra.mxu0 %v2298
        %2601 = vmatprep.subr.bf16.mxu0 0
        %2602 = vmatpush1.bf16.msra.mxu0 %v2299
        %2603 = vmatprep.subr.bf16.mxu0 0
        %2604 = vmatpush1.bf16.msra.mxu0 %v2300
        %2605 = vmatprep.subr.bf16.mxu0 0
        %2606 = vmatpush1.bf16.msra.mxu0 %v2301
        %2607 = vmatprep.subr.bf16.mxu0 0
        %2608 = vmatpush1.bf16.msra.mxu0 %v2302
        %2609 = vmatprep.subr.bf16.mxu0 0
        %2610 = vmatpush1.bf16.msra.mxu0 %v2303
        %2611 = vmatprep.mubr.bf16.mxu0 %v1779
        %2612 = vmatmul.mubr.bf16.gmra.mrb[0].mxu0 %v1778
        %v2613 = vpop.f32.mrb[0].mxu0
        %v2614 = vadd.f32 %v2549, %v2613
        %v2615 = vpop.f32.mrb[0].mxu0
        %v2616 = vpop.f32.mrb[0].mxu0
        %v2617 = vadd.f32 %v2552, %v2616
        %v2618 = vpop.f32.mrb[0].mxu0
        %2619 = vmatprep.mubr.bf16.mxu0 %v1788
        %2620 = vmatmul.mubr.bf16.gmra.mrb[0].mxu0 %v1787
        %v2621 = vpop.f32.mrb[0].mxu0
        %v2622 = vadd.f32 %v2557, %v2621
        %v2623 = vpop.f32.mrb[0].mxu0
        %v2624 = vpop.f32.mrb[0].mxu0
        %v2625 = vadd.f32 %v2560, %v2624
        %v2626 = vpop.f32.mrb[0].mxu0
        %2627 = vmatprep.mubr.bf16.mxu0 %v1797
        %2628 = vmatmul.mubr.bf16.gmra.mrb[0].mxu0 %v1796
        %v2629 = vpop.f32.mrb[0].mxu0
        %v2630 = vadd.f32 %v2565, %v2629
        %v2631 = vpop.f32.mrb[0].mxu0
        %v2632 = vpop.f32.mrb[0].mxu0
        %v2633 = vadd.f32 %v2568, %v2632
        %v2634 = vpop.f32.mrb[0].mxu0
        %2635 = vmatprep.mubr.bf16.mxu0 %v1806
        %2636 = vmatmul.mubr.bf16.gmra.mrb[0].mxu0 %v1805
        %v2637 = vpop.f32.mrb[0].mxu0
        %v2638 = vadd.f32 %v2573, %v2637
        %v2639 = vpop.f32.mrb[0].mxu0
        %v2640 = vpop.f32.mrb[0].mxu0
        %v2641 = vadd.f32 %v2576, %v2640
        %v2642 = vpop.f32.mrb[0].mxu0
        %2643 = vdwg.mxu0
        %2644 = vmatprep.subr.bf16.mxu0 0
        %2645 = vmatpush1.bf16.msra.mxu0 %v2304
        %2646 = vmatprep.subr.bf16.mxu0 0
        %2647 = vmatpush1.bf16.msra.mxu0 %v2305
        %2648 = vmatprep.subr.bf16.mxu0 0
        %2649 = vmatpush1.bf16.msra.mxu0 %v2306
        %2650 = vmatprep.subr.bf16.mxu0 0
        %2651 = vmatpush1.bf16.msra.mxu0 %v2307
        %2652 = vmatprep.subr.bf16.mxu0 0
        %2653 = vmatpush1.bf16.msra.mxu0 %v2308
        %2654 = vmatprep.subr.bf16.mxu0 0
        %2655 = vmatpush1.bf16.msra.mxu0 %v2309
        %2656 = vmatprep.subr.bf16.mxu0 0
        %2657 = vmatpush1.bf16.msra.mxu0 %v2310
        %2658 = vmatprep.subr.bf16.mxu0 0
        %2659 = vmatpush1.bf16.msra.mxu0 %v2311
        %2660 = vmatprep.subr.bf16.mxu0 0
        %2661 = vmatpush1.bf16.msra.mxu0 0
        %2662 = vmatprep.subr.bf16.mxu0 0
        %2663 = vmatpush1.bf16.msra.mxu0 0
        %2664 = vmatprep.subr.bf16.mxu0 0
        %2665 = vmatpush1.bf16.msra.mxu0 0
        %2666 = vmatprep.subr.bf16.mxu0 0
        %2667 = vmatpush1.bf16.msra.mxu0 0
        %2668 = vmatprep.subr.bf16.mxu0 0
        %2669 = vmatpush1.bf16.msra.mxu0 0
        %2670 = vmatprep.subr.bf16.mxu0 0
        %2671 = vmatpush1.bf16.msra.mxu0 0
        %2672 = vmatprep.subr.bf16.mxu0 0
        %2673 = vmatpush1.bf16.msra.mxu0 0
        %2674 = vmatprep.subr.bf16.mxu0 0
        %2675 = vmatpush1.bf16.msra.mxu0 0
        %2676 = vmatprep.mubr.bf16.mxu0 0
        %2677 = vmatmul.mubr.bf16.gmra.mrb[0].mxu0 %v1780
        %v2678 = vpop.f32.mrb[0].mxu0
        %v2679 = vadd.f32 %v2614, %v2678
        %v2680 = vpop.f32.mrb[0].mxu0
        %v2681 = vpop.f32.mrb[0].mxu0
        %v2682 = vadd.f32 %v2617, %v2681
        %v2683 = vpop.f32.mrb[0].mxu0
        %2684 = vmatprep.mubr.bf16.mxu0 0
        %2685 = vmatmul.mubr.bf16.gmra.mrb[0].mxu0 %v1789
        %v2686 = vpop.f32.mrb[0].mxu0
        %v2687 = vadd.f32 %v2622, %v2686
        %v2688 = vpop.f32.mrb[0].mxu0
        %v2689 = vpop.f32.mrb[0].mxu0
        %v2690 = vadd.f32 %v2625, %v2689
        %v2691 = vpop.f32.mrb[0].mxu0
        %2692 = vmatprep.mubr.bf16.mxu0 0
        %2693 = vmatmul.mubr.bf16.gmra.mrb[0].mxu0 %v1798
        %v2694 = vpop.f32.mrb[0].mxu0
        %v2695 = vadd.f32 %v2630, %v2694
        %v2696 = vpop.f32.mrb[0].mxu0
        %v2697 = vpop.f32.mrb[0].mxu0
        %v2698 = vadd.f32 %v2633, %v2697
        %v2699 = vpop.f32.mrb[0].mxu0
        %2700 = vmatprep.mubr.bf16.mxu0 0
        %2701 = vmatmul.mubr.bf16.gmra.mrb[0].mxu0 %v1807
        %v2702 = vpop.f32.mrb[0].mxu0
        %v2703 = vadd.f32 %v2638, %v2702
        %v2704 = vpop.f32.mrb[0].mxu0
        %v2705 = vpop.f32.mrb[0].mxu0
        %v2706 = vadd.f32 %v2641, %v2705
        %v2707 = vpop.f32.mrb[0].mxu0
        %2708 = vdwg.mxu0
        %v2709 = vld [vmem:[%s5] sm:$0x1]
        %v2711 = vlaneseq
        %v2712 = vshrl.u32 %v2711, 7
        %v2713 = vsub.s32 0, %v2712
        %v2714 = vrot.slane %v2709, %v2713
        %v2716 = vmul.f32 %v2679, %v2714
        %v2717 = vmul.f32 %v2682, %v2714
        %v2718 = vmul.f32 %v2687, %v2714
        %v2719 = vmul.f32 %v2690, %v2714
        %v2720 = vmul.f32 %v2695, %v2714
        %v2721 = vmul.f32 %v2698, %v2714
        %v2722 = vmul.f32 %v2703, %v2714
        %v2723 = vmul.f32 %v2706, %v2714
        %v2724 = vld [vmem:[%s6] sm:$0x1]
        %v2726 = vlaneseq
        %v2727 = vshrl.u32 %v2726, 7
        %v2728 = vsub.s32 0, %v2727
        %v2729 = vrot.slane %v2724, %v2728
        %v2731 = vadd.f32 %v2716, %v2729
        %v2732 = vadd.f32 %v2717, %v2729
        %v2733 = vadd.f32 %v2718, %v2729
        %v2734 = vadd.f32 %v2719, %v2729
        %v2735 = vadd.f32 %v2720, %v2729
        %v2736 = vadd.f32 %v2721, %v2729
        %v2737 = vadd.f32 %v2722, %v2729
        %v2738 = vadd.f32 %v2723, %v2729
        %v2739 = vxor.u32 %v2731, 2147483648
        %v2740 = vxor.u32 %v2732, 2147483648
        %v2741 = vxor.u32 %v2733, 2147483648
        %v2742 = vxor.u32 %v2734, 2147483648
        %v2743 = vxor.u32 %v2735, 2147483648
        %v2744 = vxor.u32 %v2736, 2147483648
        %v2745 = vxor.u32 %v2737, 2147483648
        %v2746 = vxor.u32 %v2738, 2147483648
        %v2747 = vmul.f32 %v2739, 1.442695
        %v2748 = vpow.pop %v2747
        %v2749 = vmul.f32 %v2740, 1.442695
        %v2750 = vpow.pop %v2749
        %v2751 = vmul.f32 %v2741, 1.442695
        %v2752 = vpow.pop %v2751
        %v2753 = vmul.f32 %v2742, 1.442695
        %v2754 = vpow.pop %v2753
        %v2755 = vmul.f32 %v2743, 1.442695
        %v2756 = vpow.pop %v2755
        %v2757 = vmul.f32 %v2744, 1.442695
        %v2758 = vpow.pop %v2757
        %v2759 = vmul.f32 %v2745, 1.442695
        %v2760 = vpow.pop %v2759
        %v2761 = vmul.f32 %v2746, 1.442695
        %v2762 = vpow.pop %v2761
        %v2763 = vadd.f32 %v2748, 1.0
        %v2764 = vadd.f32 %v2750, 1.0
        %v2765 = vadd.f32 %v2752, 1.0
        %v2766 = vadd.f32 %v2754, 1.0
        %v2767 = vadd.f32 %v2756, 1.0
        %v2768 = vadd.f32 %v2758, 1.0
        %v2769 = vadd.f32 %v2760, 1.0
        %v2770 = vadd.f32 %v2762, 1.0
        %v2771 = vrcp.pop %v2763
        %v2772 = vmul.f32 1.0, %v2771
        %v2773 = vrcp.pop %v2764
        %v2774 = vmul.f32 1.0, %v2773
        %v2775 = vrcp.pop %v2765
        %v2776 = vmul.f32 1.0, %v2775
        %v2777 = vrcp.pop %v2766
        %v2778 = vmul.f32 1.0, %v2777
        %v2779 = vrcp.pop %v2767
        %v2780 = vmul.f32 1.0, %v2779
        %v2781 = vrcp.pop %v2768
        %v2782 = vmul.f32 1.0, %v2781
        %v2783 = vrcp.pop %v2769
        %v2784 = vmul.f32 1.0, %v2783
        %v2785 = vrcp.pop %v2770
        %v2786 = vmul.f32 1.0, %v2785
        %v2787 = vmul.f32 %v2731, %v2772
        %v2788 = vmul.f32 %v2732, %v2774
        %v2789 = vmul.f32 %v2733, %v2776
        %v2790 = vmul.f32 %v2734, %v2778
        %v2791 = vmul.f32 %v2735, %v2780
        %v2792 = vmul.f32 %v2736, %v2782
        %v2793 = vmul.f32 %v2737, %v2784
        %v2794 = vmul.f32 %v2738, %v2786
        %vm2795 = vcmask 64512
        %2796 = vst.msk [vmem:[%s301] sm:$0xff] %vm2795, %v2787
        %2797 = vst.msk [vmem:[%s301 + $0x8] sm:$0xff] %vm2795, %v2788
        %2798 = vst.msk [vmem:[%s301 + $0x10] sm:$0xff] %vm2795, %v2789
        %2799 = vst.msk [vmem:[%s301 + $0x18] sm:$0xff] %vm2795, %v2790
        %2800 = vst.msk [vmem:[%s301 + $0x20] sm:$0xff] %vm2795, %v2791
        %2801 = vst.msk [vmem:[%s301 + $0x28] sm:$0xff] %vm2795, %v2792
        %2802 = vst.msk [vmem:[%s301 + $0x30] sm:$0xff] %vm2795, %v2793
        %2803 = vst.msk [vmem:[%s301 + $0x38] sm:$0xff] %vm2795, %v2794
        %s2804 = sand.u32 %s183, 1
        %s2805 = scalar_lea.sflag [#allocation6], %s2804
        %s2806 = sand.u32 %s183, 1
        %s2807 = smul.addr %s2806, 64
        %s2808 = scalar_lea.vmem [#allocation9], %s2807
        // Predicated region
        $region57: #{tpu_custom_call.1} parent=47 // pred_check
          %p2809 = pneg %p193
        $region58: #{tpu_custom_call.1} parent=47 // pred_check_branch
          %2811 = sbr.rel (%p2809) target = $region60
        $region59: #{tpu_custom_call.1} parent=47 // pred_region
          %s2813 = ssub.s32 1024, 1024
          %2814 = vsyncadd %s2805, %s2813
          %s2815 = smul.addr %s23, 8
          %s2816 = smul.addr %s2815, 128
          %s2817 = scalar_lea.hbm %s7, %s2816
          %s2818 = sshll.u32 %s2808, 4
          %s2819 = int_to_ptr.vmem [resolvable:$true] %s2818
          %2824 = dma.vmem_to_hbm [thread:$0]  %s2819, 1024, %s2817, %s2805, 128, 128, 8
        $region60: #{tpu_custom_call.1} parent=47 // pred_fallthru
          _
      $region48: #{tpu_custom_call.1} parent=5 // pred_fallthru
        _
      %p2825 = scmp.le.s32.totalorder 2, %s18
      // Predicated region
      $region61: #{tpu_custom_call.1} parent=5 // pred_check
        %p2826 = pneg %p2825
      $region62: #{tpu_custom_call.1} parent=5 // pred_check_branch
        %2828 = sbr.rel (%p2826) target = $region64
      $region63: #{tpu_custom_call.1} parent=5 // pred_region
        %s2829 = ssub.s32 %s18, 2
        // Predicated region
        $region65: #{tpu_custom_call.1} parent=63 // pred_check
          %p2830 = pneg %p199
        $region66: #{tpu_custom_call.1} parent=63 // pred_check_branch
          %2832 = sbr.rel (%p2830) target = $region68
        $region67: #{tpu_custom_call.1} parent=63 // pred_region
          %s2833 = sand.u32 %s184, 1
          %s2834 = scalar_lea.sflag [#allocation6], %s2833
          %s2835 = sand.u32 %s184, 1
          %s2836 = smul.addr %s2835, 64
          %s2837 = scalar_lea.vmem [#allocation9], %s2836
          %2838 = dma.done %s2834, 1024
        $region68: #{tpu_custom_call.1} parent=63 // pred_fallthru
          _
      $region64: #{tpu_custom_call.1} parent=5 // pred_fallthru
        _
    $region6: #{tpu_custom_call.1} parent=1 // loop_footer
      %s22 = sadd.s32 1, %s18
    $region7: #{tpu_custom_call.1} parent=1 // loop_footer_branch
      %17 = sbr.rel target = $region3
    $region8: #{tpu_custom_call.1} parent=1 // loop_exit
      _
    %2839 = vsyncpa [#allocation5], 1
    %s2840 = scalar_lea.sflag [#allocation5], 1
    %2841 = vsyncpa %s2840, 1
    %2842 = vsyncpa [#allocation8], 1
    %2843 = vsyncpa [#allocation6], 1
    %s2844 = scalar_lea.sflag [#allocation6], 1
    %2845 = vsyncpa %s2844, 1

</llo_original>
